<compile_context>
chip_gen: v5e
topology: v5e:2x2
jax: 0.10.0
libtpu: 0.0.40
codegen_flags: <defaults>
</compile_context>

<pallas_src>
import numpy as np
import jax
import jax.numpy as jnp
from jax.experimental import pallas as pl
from jax.experimental.pallas import tpu as pltpu


# --------------------------------------------------------------------------
# Parameter bookkeeping (one CrossDecoderLayer worth of weights).
# --------------------------------------------------------------------------
def _param_specs(D):
    F = 2 * D
    return [
        # self attention (MultiheadedAttention): q/k/v/out projections
        ("wq_s", (D, D)), ("bq_s", (1, D)),
        ("wk_s", (D, D)), ("bk_s", (1, D)),
        ("wv_s", (D, D)), ("bv_s", (1, D)),
        ("wo_s", (D, D)), ("bo_s", (1, D)),
        # res1 layer norm
        ("ln1_g", (1, D)), ("ln1_b", (1, D)),
        # cross attention norms + projections + output norm
        ("tn_g", (1, D)), ("tn_b", (1, D)),
        ("avn_g", (1, D)), ("avn_b", (1, D)),
        ("wq_c", (D, D)), ("bq_c", (1, D)),
        ("wk_c", (D, D)), ("bk_c", (1, D)),
        ("wv_c", (D, D)), ("bv_c", (1, D)),
        ("cn_g", (1, D)), ("cn_b", (1, D)),
        # memory gate MLP (2D -> D -> 1), gate output layer norm
        ("wg1", (F, D)), ("bg1", (1, D)),
        ("wg2", (1, D)), ("bg2", (1, 1)),
        ("gn_g", (1, D)), ("gn_b", (1, D)),
        # res2 layer norm + positionwise FF (D -> 2D -> D)
        ("ln2_g", (1, D)), ("ln2_b", (1, D)),
        ("wf1", (D, F)), ("bf1", (1, F)),
        ("wf2", (F, D)), ("bf2", (1, D)),
    ]


def init_layer_params(key, D):
    params = {}
    specs = _param_specs(D)
    keys = jax.random.split(key, len(specs))
    for (name, shape), k in zip(specs, keys):
        if name.startswith("w"):
            fan_in = D if name == "wg2" else shape[0]
            bound = 1.0 / np.sqrt(fan_in)
            params[name] = jax.random.uniform(k, shape, jnp.float32, -bound, bound)
        elif name.startswith("b"):
            bound = 1.0 / np.sqrt(D)
            params[name] = jax.random.uniform(k, shape, jnp.float32, -bound, bound)
        elif name.endswith("_g"):   # LayerNorm gamma
            params[name] = jnp.ones(shape, jnp.float32)
        else:                       # LayerNorm beta
            params[name] = jnp.zeros(shape, jnp.float32)
    return params


# Row layout of the coalesced "small parameter" array (one (NS, D) tile / layer).
_SMALL_ROWS = (
    "bq_s", "bk_s", "bv_s", "bo_s",
    "ln1_g", "ln1_b",
    "tn_g", "tn_b", "avn_g", "avn_b",
    "bq_c", "bk_c", "bv_c",
    "cn_g", "cn_b",
    "bg1", "wg2",
    "gn_g", "gn_b",
    "ln2_g", "ln2_b",
    "bf2",
)
_ROW = {name: i for i, name in enumerate(_SMALL_ROWS)}
_ROW_BG2 = len(_SMALL_ROWS)          # bg2 scalar lives at [_ROW_BG2, 0]
_NS = len(_SMALL_ROWS) + 1           # 23 rows


def prepare_fused_params(layer_params, D, compute_dtype):
    """Stack per-layer weights along a leading L axis, fuse Q/K/V (and cross K/V)
    projections along their output dim, and coalesce all tiny parameters into
    one (L, NS, D) array.  Host-side layout plumbing: zero in-kernel cost."""
    cdt = compute_dtype

    def stack(name):
        return jnp.stack([p[name] for p in layer_params], axis=0)

    wqkv_s = jnp.concatenate([stack("wq_s"), stack("wk_s"), stack("wv_s")],
                             axis=-1).astype(cdt)                       # (L, D, 3D)
    wo_s = stack("wo_s").astype(cdt)                                    # (L, D, D)
    wq_c = stack("wq_c").astype(cdt)                                    # (L, D, D)
    wkv_c = jnp.concatenate([stack("wk_c"), stack("wv_c")],
                            axis=-1).astype(cdt)                        # (L, D, 2D)
    wg1 = stack("wg1").astype(cdt)                                      # (L, 2D, D)
    wf1 = stack("wf1").astype(cdt)                                      # (L, D, 2D)
    wf2 = stack("wf2").astype(cdt)                                      # (L, 2D, D)

    rows = [stack(n).astype(jnp.float32) for n in _SMALL_ROWS]          # each (L, 1, D)
    bg2 = stack("bg2").astype(jnp.float32)                              # (L, 1, 1)
    bg2_row = jnp.pad(bg2, ((0, 0), (0, 0), (0, D - 1)))                # (L, 1, D)
    small = jnp.concatenate(rows + [bg2_row], axis=1)                   # (L, NS, D) f32
    bf1 = stack("bf1").astype(jnp.float32)                              # (L, 1, 2D)

    return [wqkv_s, wo_s, wq_c, wkv_c, wg1, wf1, wf2, small, bf1]


# --------------------------------------------------------------------------
# Fused CrossDecoder kernel: grid = (B // Bt, L); the running text state lives
# in the VMEM-resident output block across the L axis, per-layer attention /
# memory-gate statistics accumulate in VMEM scratch, and the sentence-level
# attention (compute_sentence_attn_w) is produced in-kernel at l == L-1.
# --------------------------------------------------------------------------
def _make_fused_kernel(Bt, Wn, S, Nv, D, H, n_layers, compute_dtype):
    dk = D // H
    inv_scale = 1.0 / float(np.sqrt(dk))
    J = S * Nv
    cdt = compute_dtype

    def mm(x3, w):
        """(Bt, M, K) @ (K, N) -> (Bt, M, N), f32 accumulation on the MXU.
        Leading dims are flattened into the M (sublane) axis — full MXU width."""
        b, m, k = x3.shape
        y = jnp.dot(x3.reshape(b * m, k), w, preferred_element_type=jnp.float32)
        return y.reshape(b, m, w.shape[-1])

    def bmm_qkT(q, k):          # (Bt, M, d) x (Bt, N, d) -> (Bt, M, N)
        return jnp.einsum("bqd,bkd->bqk", q, k, preferred_element_type=jnp.float32)

    def bmm_pv(p, v):           # (Bt, M, N) x (Bt, N, d) -> (Bt, M, d)
        return jnp.einsum("bqk,bkd->bqd", p, v, preferred_element_type=jnp.float32)

    def layer_norm(x, g, b, eps=1e-5):
        mu = jnp.mean(x, axis=-1, keepdims=True)
        var = jnp.mean(jnp.square(x - mu), axis=-1, keepdims=True)
        return (x - mu) * jax.lax.rsqrt(var + eps) * g + b

    def softmax_lastdim(s):     # divide goes to the EUP via approx reciprocal
        m = jnp.max(s, axis=-1, keepdims=True)
        e = jnp.exp(s - m)
        return e * pl.reciprocal(jnp.sum(e, axis=-1, keepdims=True), approx=True)

    def kernel(text_ref, av_ref, bias_ref, idx_ref, pad_ref, fold_ref,
               wqkv_s_ref, wo_s_ref, wq_c_ref, wkv_c_ref, wg1_ref, wf1_ref, wf2_ref,
               small_ref, bf1_ref,
               text_out_ref, sent_attn_ref,
               a_acc, mem_acc, co_scr):
        l = pl.program_id(1)
        n_l = pl.num_programs(1)

        # ---- init the carried text state / accumulators at the first layer ----
        @pl.when(l == 0)
        def _init():
            text_out_ref[...] = text_ref[...]
            a_acc[...] = jnp.zeros_like(a_acc)
            mem_acc[...] = jnp.zeros_like(mem_acc)

        def row(name):                                   # (1, D) small-param row
            r = _ROW[name]
            return small_ref[0, r:r + 1, :]

        x = text_out_ref[...]                            # (Bt, Wn, D) carried text (f32)
        bias = bias_ref[...].astype(jnp.float32)         # (Bt, Wn, Wn) additive mask

        # ---------------- res1: text1 = text + SelfAttn(LN(text)) ----------------
        xn = layer_norm(x, row("ln1_g"), row("ln1_b")).astype(cdt)     # cast hoisted
        qkv = mm(xn, wqkv_s_ref[0])                      # one full-width (D->3D) matmul
        q_all = (qkv[:, :, 0 * D:1 * D] + row("bq_s")).astype(cdt)
        k_all = (qkv[:, :, 1 * D:2 * D] + row("bk_s")).astype(cdt)
        v_all = (qkv[:, :, 2 * D:3 * D] + row("bv_s")).astype(cdt)
        wo = wo_s_ref[0]                                 # (D, D)
        sa = jnp.zeros((Bt, Wn, D), jnp.float32)
        for h in range(H):                               # static lane slices per head
            sl = slice(h * dk, (h + 1) * dk)
            sc = bmm_qkT(q_all[:, :, sl], k_all[:, :, sl]) * inv_scale + bias
            prob = softmax_lastdim(sc).astype(cdt)
            ctx = bmm_pv(prob, v_all[:, :, sl]).astype(cdt)            # (Bt, Wn, dk)
            sa = sa + mm(ctx, wo[sl, :])                 # fold head into output proj
        text1 = x + sa + row("bo_s")

        # ---------------- CrossAttention (sigmoid attn over the word's sentence) --
        tn = layer_norm(text1, row("tn_g"), row("tn_b")).astype(cdt)
        an = layer_norm(av_ref[...].astype(jnp.float32),
                        row("avn_g"), row("avn_b")).astype(cdt)        # (Bt, J, D)
        qc = mm(tn, wq_c_ref[0])                         # (Bt, Wn, D)
        kv = mm(an, wkv_c_ref[0])                        # (Bt, J, 2D) fused K/V proj
        qc_all = (qc + row("bq_c")).astype(cdt)
        kc_all = (kv[:, :, 0 * D:1 * D] + row("bk_c")).astype(cdt)
        vc_all = (kv[:, :, 1 * D:2 * D] + row("bv_c")).astype(cdt)

        idx = idx_ref[...]                               # (Bt, Wn, 1) int32 sentence id
        jvec = jax.lax.broadcasted_iota(jnp.int32, (Bt, Wn, J), 2)
        lo = idx * Nv
        sel = ((jvec >= lo) & (jvec < lo + Nv)).astype(jnp.float32)    # sentence membership

        a_layer = jnp.zeros((Bt, Wn, J), jnp.float32)
        for h in range(H):
            sl = slice(h * dk, (h + 1) * dk)
            a = jax.nn.sigmoid(bmm_qkT(qc_all[:, :, sl], kc_all[:, :, sl])
                               * inv_scale) * sel                      # (Bt, Wn, J)
            a_layer = a_layer + a
            # write head result at its static lane offset -> no lane concat
            co_scr[:, :, sl] = bmm_pv(a.astype(cdt), vc_all[:, :, sl])
        a_acc[...] = a_acc[...] + a_layer                # raw sum; folded once at finalize
        res = layer_norm(co_scr[...], row("cn_g"), row("cn_b"))

        # ---------------- MemoryGate + gated merge ----------------
        wg1 = wg1_ref[0]                                 # (2D, D): rows split => no concat
        h1 = jax.nn.relu(mm(text1.astype(cdt), wg1[:D, :])
                         + mm(res.astype(cdt), wg1[D:, :]) + row("bg1"))
        bg2 = small_ref[0, _ROW_BG2:_ROW_BG2 + 1, 0:1]   # (1, 1)
        g = jax.nn.sigmoid(jnp.sum(h1 * row("wg2"), axis=-1, keepdims=True) + bg2)
        mem_acc[...] = mem_acc[...] + g
        text2 = layer_norm((1.0 - g) * text1 + g * res, row("gn_g"), row("gn_b"))

        # ---------------- res2: text = text2 + FF(LN(text2)) ----------------
        yn = layer_norm(text2, row("ln2_g"), row("ln2_b")).astype(cdt)
        hid = jax.nn.relu(mm(yn, wf1_ref[0]) + bf1_ref[0]).astype(cdt)
        ff = mm(hid, wf2_ref[0]) + row("bf2")
        text_out_ref[...] = text2 + ff

        # ---------------- finalize: sentence-level attention (once, in-kernel) ----
        @pl.when(l == n_l - 1)
        def _finalize():
            # fold S*Nv -> Nv once over the layer/head-accumulated attention
            attn_mean = mm(a_acc[...], fold_ref[...]) * (1.0 / (H * n_layers))  # (Bt, Wn, Nv)
            mem_mean = mem_acc[...] * (1.0 / n_layers)                          # (Bt, Wn, 1)
            oh = (jax.lax.broadcasted_iota(jnp.int32, (Bt, Wn, S), 2) == idx
                  ).astype(jnp.float32)                                         # (Bt, Wn, S)
            mw = oh * (pad_ref[...] * mem_mean)                                 # word weights
            mw_t = jnp.swapaxes(mw, 1, 2)                                       # (Bt, S, Wn)
            num = jnp.einsum("bsw,bwn->bsn", mw_t, attn_mean,
                             preferred_element_type=jnp.float32)                # (Bt, S, Nv)
            den = jnp.sum(mw_t, axis=-1, keepdims=True)                         # (Bt, S, 1)
            # clamp guards empty (static) sentence slots -> no NaN/Inf
            sent_attn_ref[...] = num * pl.reciprocal(jnp.maximum(den, 1e-9),
                                                     approx=True)

    return kernel


# --------------------------------------------------------------------------
# Full CrossDecoder forward (single pallas_call).
# --------------------------------------------------------------------------
def _pick_batch_tile(B, max_bt=8):
    # Largest divisor of B that is <= max_bt.  On v7x with tiny B//Bt consider
    # halving Bt so both TensorCores are fed (only matters when compute-bound).
    return max(d for d in range(1, min(B, max_bt) + 1) if B % d == 0)


def _default_vmem_limit():
    # ~75% of physical VMEM: ~96 MiB on v5e/v6e (raises their 16/32 MiB scoped
    # defaults), ~48 MiB on v7x (stays under its 64 MiB physical budget).
    try:
        return int(pltpu.get_tpu_info().vmem_capacity_bytes * 3 // 4)
    except Exception:
        return 48 * 1024 * 1024


def cross_decoder_forward(text, av_feat, padding_mask, text_mask, attn_sent_index,
                          layer_params, num_head, compute_dtype=jnp.bfloat16,
                          batch_tile=None, vmem_limit_bytes=None):
    B, Wn, D = text.shape
    _, S, Nv, _ = av_feat.shape
    L = len(layer_params)
    J = S * Nv
    H = num_head
    cdt = compute_dtype

    Bt = _pick_batch_tile(B) if batch_tile is None else batch_tile
    assert B % Bt == 0, "batch_tile must divide batch"
    if vmem_limit_bytes is None:
        vmem_limit_bytes = _default_vmem_limit()

    # Host-side layout plumbing (free): flatten av, additive mask bias, column-
    # shaped sentence index / padding mask, sentence->slot fold matrix.
    # av / mask bias in compute dtype: halves their DMA + VMEM footprint.
    av_flat = av_feat.reshape(B, J, D).astype(cdt)
    mask_bias = ((1.0 - text_mask.astype(jnp.float32)) * (-1e9)).astype(cdt)
    idx_col = attn_sent_index.astype(jnp.int32).reshape(B, Wn, 1)
    pad_col = padding_mask.astype(jnp.float32).reshape(B, Wn, 1)
    fold_mat = jnp.tile(jnp.eye(Nv, dtype=jnp.float32), (S, 1))        # (J, Nv)

    params = prepare_fused_params(layer_params, D, cdt)

    def batch_spec(rest):     # block index depends only on b -> fetched once per tile
        return pl.BlockSpec((Bt,) + rest, lambda b, l: (b,) + (0,) * len(rest))

    def layer_spec(arr):      # per-layer weight slabs, pipelined behind compute
        rest = arr.shape[1:]
        return pl.BlockSpec((1,) + rest, lambda b, l, _n=len(rest): (l,) + (0,) * _n)

    in_specs = [
        batch_spec((Wn, D)),                               # text
        batch_spec((J, D)),                                # av_feat (flattened, cdt)
        batch_spec((Wn, Wn)),                              # additive mask bias (cdt)
        batch_spec((Wn, 1)),                               # attn_sent_index
        batch_spec((Wn, 1)),                               # padding mask
        pl.BlockSpec((J, Nv), lambda b, l: (0, 0)),        # fold matrix
    ] + [layer_spec(a) for a in params]

    out_specs = [
        batch_spec((Wn, D)),                               # text (carried across l)
        batch_spec((S, Nv)),                               # sentence attention
    ]
    out_shape = [
        jax.ShapeDtypeStruct((B, Wn, D), jnp.float32),
        jax.ShapeDtypeStruct((B, S, Nv), jnp.float32),
    ]

    kernel = _make_fused_kernel(Bt, Wn, S, Nv, D, H, L, cdt)
    return pl.pallas_call(
        kernel,
        grid=(B // Bt, L),
        in_specs=in_specs,
        out_specs=out_specs,
        out_shape=out_shape,
        scratch_shapes=[pltpu.VMEM((Bt, Wn, J), jnp.float32),   # running sigmoid-attn sum
                        pltpu.VMEM((Bt, Wn, 1), jnp.float32),   # running memory-ratio sum
                        pltpu.VMEM((Bt, Wn, D), jnp.float32)],  # cross-attn head assembly
        compiler_params=pltpu.CompilerParams(
            dimension_semantics=("parallel", "arbitrary"),
            vmem_limit_bytes=vmem_limit_bytes),
    )(text, av_flat, mask_bias, idx_col, pad_col, fold_mat, *params)


if __name__ == "__main__":
    B, Wn, S, Nv, D, H, L = 2, 8, 2, 8, 32, 4, 2   # bs, num_word, num_sent, num_valid, d_model
    key = jax.random.PRNGKey(0)
    k_text, k_av, k_par = jax.random.split(key, 3)

    text = jax.random.normal(k_text, (B, Wn, D), jnp.float32)
    av_feat = jax.random.normal(k_av, (B, S, Nv, D), jnp.float32)
    text_mask = jnp.ones((B, Wn, Wn), jnp.float32)
    padding_mask = jnp.ones((B, Wn), jnp.bool_)
    attn_sent_index = jnp.array([[0, 0, 0, 0, 1, 1, 1, 1],
                                 [0, 0, 1, 1, 1, 1, 1, 1]], jnp.int32)

    layer_params = [init_layer_params(k, D) for k in jax.random.split(k_par, L)]

    out_text, sent_attn = cross_decoder_forward(
        text, av_feat, padding_mask, text_mask, attn_sent_index, layer_params, H)
    jax.block_until_ready((out_text, sent_attn))
    assert out_text.shape == (B, Wn, D) and sent_attn.shape == (B, S, Nv)
    assert bool(jnp.all(jnp.isfinite(out_text))) and bool(jnp.all(jnp.isfinite(sent_attn)))
    print("KERNEL_OK")
</pallas_src>

<mosaic_0001>
module attributes {stable_mosaic.version = 11 : i64} {
  func.func @kernel(%arg0: i32, %arg1: i32, %arg2: memref<2x8x32xf32, #tpu.memory_space<vmem>>, %arg3: memref<2x16x32xbf16, #tpu.memory_space<vmem>>, %arg4: memref<2x8x8xbf16, #tpu.memory_space<vmem>>, %arg5: memref<2x8x1xi32, #tpu.memory_space<vmem>>, %arg6: memref<2x8x1xf32, #tpu.memory_space<vmem>>, %arg7: memref<16x8xf32, #tpu.memory_space<vmem>>, %arg8: memref<1x32x96xbf16, #tpu.memory_space<vmem>>, %arg9: memref<1x32x32xbf16, #tpu.memory_space<vmem>>, %arg10: memref<1x32x32xbf16, #tpu.memory_space<vmem>>, %arg11: memref<1x32x64xbf16, #tpu.memory_space<vmem>>, %arg12: memref<1x64x32xbf16, #tpu.memory_space<vmem>>, %arg13: memref<1x32x64xbf16, #tpu.memory_space<vmem>>, %arg14: memref<1x64x32xbf16, #tpu.memory_space<vmem>>, %arg15: memref<1x23x32xf32, #tpu.memory_space<vmem>>, %arg16: memref<1x1x64xf32, #tpu.memory_space<vmem>>, %arg17: memref<2x8x32xf32, #tpu.memory_space<vmem>>, %arg18: memref<2x2x8xf32, #tpu.memory_space<vmem>>, %arg19: memref<2x8x16xf32, #tpu.memory_space<vmem>>, %arg20: memref<2x8x1xf32, #tpu.memory_space<vmem>>, %arg21: memref<2x8x32xf32, #tpu.memory_space<vmem>>) attributes {dimension_semantics = [#tpu.dimension_semantics<parallel>, #tpu.dimension_semantics<arbitrary>], iteration_bounds = array<i64: 1, 2>, scalar_prefetch = 0 : i64, scratch_operands = 3 : i64, tpu.core_type = #tpu.core_type<tc>, window_params = [{transform_indices = @transform_0, window_bounds = array<i64: 2, 8, 32>}, {transform_indices = @transform_1, window_bounds = array<i64: 2, 16, 32>}, {transform_indices = @transform_2, window_bounds = array<i64: 2, 8, 8>}, {transform_indices = @transform_3, window_bounds = array<i64: 2, 8, 1>}, {transform_indices = @transform_4, window_bounds = array<i64: 2, 8, 1>}, {pipeline_mode = #tpu.pipeline_mode<synchronous>, transform_indices = @transform_5, window_bounds = array<i64: 16, 8>}, {transform_indices = @transform_6, window_bounds = array<i64: 1, 32, 96>}, {transform_indices = @transform_7, window_bounds = array<i64: 1, 32, 32>}, {transform_indices = @transform_8, window_bounds = array<i64: 1, 32, 32>}, {transform_indices = @transform_9, window_bounds = array<i64: 1, 32, 64>}, {transform_indices = @transform_10, window_bounds = array<i64: 1, 64, 32>}, {transform_indices = @transform_11, window_bounds = array<i64: 1, 32, 64>}, {transform_indices = @transform_12, window_bounds = array<i64: 1, 64, 32>}, {transform_indices = @transform_13, window_bounds = array<i64: 1, 23, 32>}, {transform_indices = @transform_14, window_bounds = array<i64: 1, 1, 64>}, {transform_indices = @transform_15, window_bounds = array<i64: 2, 8, 32>}, {transform_indices = @transform_16, window_bounds = array<i64: 2, 2, 8>}]} {
    %c0_i32 = arith.constant 0 : i32
    %0 = arith.cmpi eq, %arg1, %c0_i32 : i32
    %1 = arith.extui %0 : i1 to i32
    %c0_i32_0 = arith.constant 0 : i32
    %2 = arith.cmpi ne, %1, %c0_i32_0 : i32
    scf.if %2 {
      %c0_197 = arith.constant 0 : index
      %c0_198 = arith.constant 0 : index
      %c0_199 = arith.constant 0 : index
      %502 = vector.load %arg2[%c0_197, %c0_198, %c0_199] : memref<2x8x32xf32, #tpu.memory_space<vmem>>, vector<2x8x32xf32>
      %c0_200 = arith.constant 0 : index
      %c0_201 = arith.constant 0 : index
      %c0_202 = arith.constant 0 : index
      %503 = vector.load %arg17[%c0_200, %c0_201, %c0_202] : memref<2x8x32xf32, #tpu.memory_space<vmem>>, vector<2x8x32xf32>
      tpu.vector_store %arg17[%c0_200, %c0_201, %c0_202], %502 {strides = array<i32>} : memref<2x8x32xf32, #tpu.memory_space<vmem>>, vector<2x8x32xf32>,
      %cst_203 = arith.constant 0.000000e+00 : f32
      %504 = vector.broadcast %cst_203 : f32 to vector<2x8x16xf32>
      %c0_204 = arith.constant 0 : index
      %c0_205 = arith.constant 0 : index
      %c0_206 = arith.constant 0 : index
      %505 = vector.load %arg19[%c0_204, %c0_205, %c0_206] : memref<2x8x16xf32, #tpu.memory_space<vmem>>, vector<2x8x16xf32>
      tpu.vector_store %arg19[%c0_204, %c0_205, %c0_206], %504 {strides = array<i32>} : memref<2x8x16xf32, #tpu.memory_space<vmem>>, vector<2x8x16xf32>,
      %cst_207 = arith.constant 0.000000e+00 : f32
      %506 = vector.broadcast %cst_207 : f32 to vector<2x8x1xf32>
      %c0_208 = arith.constant 0 : index
      %c0_209 = arith.constant 0 : index
      %c0_210 = arith.constant 0 : index
      %507 = vector.load %arg20[%c0_208, %c0_209, %c0_210] : memref<2x8x1xf32, #tpu.memory_space<vmem>>, vector<2x8x1xf32>
      tpu.vector_store %arg20[%c0_208, %c0_209, %c0_210], %506 {strides = array<i32>} : memref<2x8x1xf32, #tpu.memory_space<vmem>>, vector<2x8x1xf32>,
    } else {
    }
    %c0 = arith.constant 0 : index
    %c0_1 = arith.constant 0 : index
    %c0_2 = arith.constant 0 : index
    %3 = vector.load %arg17[%c0, %c0_1, %c0_2] : memref<2x8x32xf32, #tpu.memory_space<vmem>>, vector<2x8x32xf32>
    %c0_3 = arith.constant 0 : index
    %c0_4 = arith.constant 0 : index
    %c0_5 = arith.constant 0 : index
    %4 = vector.load %arg4[%c0_3, %c0_4, %c0_5] : memref<2x8x8xbf16, #tpu.memory_space<vmem>>, vector<2x8x8xbf16>
    %5 = arith.extf %4 : vector<2x8x8xbf16> to vector<2x8x8xf32>
    %c0_6 = arith.constant 0 : index
    %c4 = arith.constant 4 : index
    %c0_7 = arith.constant 0 : index
    %6 = vector.load %arg15[%c0_6, %c4, %c0_7] : memref<1x23x32xf32, #tpu.memory_space<vmem>>, vector<1x1x32xf32>
    %7 = vector.shape_cast %6 : vector<1x1x32xf32> to vector<1x32xf32>
    %c0_8 = arith.constant 0 : index
    %c5 = arith.constant 5 : index
    %c0_9 = arith.constant 0 : index
    %8 = vector.load %arg15[%c0_8, %c5, %c0_9] : memref<1x23x32xf32, #tpu.memory_space<vmem>>, vector<1x1x32xf32>
    %9 = vector.shape_cast %8 : vector<1x1x32xf32> to vector<1x32xf32>
    %cst = arith.constant dense<0.000000e+00> : vector<2x8xf32>
    %10 = vector.multi_reduction <add>, %3, %cst [2] : vector<2x8x32xf32> to vector<2x8xf32>
    %11 = vector.shape_cast %10 : vector<2x8xf32> to vector<2x8x1xf32>
    %cst_10 = arith.constant 3.200000e+01 : f32
    %12 = vector.broadcast %cst_10 : f32 to vector<2x8x1xf32>
    %13 = arith.divf %11, %12 : vector<2x8x1xf32>
    %14 = vector.broadcast %13 : vector<2x8x1xf32> to vector<2x8x32xf32>
    %15 = arith.subf %3, %14 : vector<2x8x32xf32>
    %16 = arith.mulf %15, %15 : vector<2x8x32xf32>
    %cst_11 = arith.constant dense<0.000000e+00> : vector<2x8xf32>
    %17 = vector.multi_reduction <add>, %16, %cst_11 [2] : vector<2x8x32xf32> to vector<2x8xf32>
    %18 = vector.shape_cast %17 : vector<2x8xf32> to vector<2x8x1xf32>
    %cst_12 = arith.constant 3.200000e+01 : f32
    %19 = vector.broadcast %cst_12 : f32 to vector<2x8x1xf32>
    %20 = arith.divf %18, %19 : vector<2x8x1xf32>
    %21 = vector.broadcast %13 : vector<2x8x1xf32> to vector<2x8x32xf32>
    %22 = arith.subf %3, %21 : vector<2x8x32xf32>
    %cst_13 = arith.constant 9.99999974E-6 : f32
    %23 = vector.broadcast %cst_13 : f32 to vector<2x8x1xf32>
    %24 = arith.addf %20, %23 : vector<2x8x1xf32>
    %25 = math.rsqrt %24 : vector<2x8x1xf32>
    %26 = vector.broadcast %25 : vector<2x8x1xf32> to vector<2x8x32xf32>
    %27 = arith.mulf %22, %26 : vector<2x8x32xf32>
    %28 = vector.shape_cast %7 : vector<1x32xf32> to vector<1x1x32xf32>
    %29 = vector.broadcast %28 : vector<1x1x32xf32> to vector<2x8x32xf32>
    %30 = arith.mulf %27, %29 : vector<2x8x32xf32>
    %31 = vector.shape_cast %9 : vector<1x32xf32> to vector<1x1x32xf32>
    %32 = vector.broadcast %31 : vector<1x1x32xf32> to vector<2x8x32xf32>
    %33 = arith.addf %30, %32 : vector<2x8x32xf32>
    %34 = arith.truncf %33 : vector<2x8x32xf32> to vector<2x8x32xbf16>
    %c0_14 = arith.constant 0 : index
    %c0_15 = arith.constant 0 : index
    %c0_16 = arith.constant 0 : index
    %35 = vector.load %arg8[%c0_14, %c0_15, %c0_16] : memref<1x32x96xbf16, #tpu.memory_space<vmem>>, vector<1x32x96xbf16>
    %36 = vector.shape_cast %35 : vector<1x32x96xbf16> to vector<32x96xbf16>
    %37 = vector.shape_cast %34 : vector<2x8x32xbf16> to vector<16x32xbf16>
    %cst_17 = arith.constant dense<0.000000e+00> : vector<16x96xf32>
    %38 = tpu.matmul %37, %36, %cst_17 {dimension_numbers = #tpu.dot_dimension_numbers<[1], [0], [0], [1], [0, 0, 1, 1], [], []>} : vector<16x32xbf16>, vector<32x96xbf16>, vector<16x96xf32> -> vector<16x96xf32>
    %39 = vector.shape_cast %38 : vector<16x96xf32> to vector<2x8x96xf32>
    %40 = vector.extract_strided_slice %39 {offsets = [0, 0, 0], sizes = [2, 8, 32], strides = [1, 1, 1]} : vector<2x8x96xf32> to vector<2x8x32xf32>
    %c0_18 = arith.constant 0 : index
    %c0_19 = arith.constant 0 : index
    %c0_20 = arith.constant 0 : index
    %41 = vector.load %arg15[%c0_18, %c0_19, %c0_20] : memref<1x23x32xf32, #tpu.memory_space<vmem>>, vector<1x1x32xf32>
    %42 = vector.shape_cast %41 : vector<1x1x32xf32> to vector<1x32xf32>
    %43 = vector.shape_cast %42 : vector<1x32xf32> to vector<1x1x32xf32>
    %44 = vector.broadcast %43 : vector<1x1x32xf32> to vector<2x8x32xf32>
    %45 = arith.addf %40, %44 : vector<2x8x32xf32>
    %46 = arith.truncf %45 : vector<2x8x32xf32> to vector<2x8x32xbf16>
    %47 = vector.extract_strided_slice %39 {offsets = [0, 0, 32], sizes = [2, 8, 32], strides = [1, 1, 1]} : vector<2x8x96xf32> to vector<2x8x32xf32>
    %c0_21 = arith.constant 0 : index
    %c1 = arith.constant 1 : index
    %c0_22 = arith.constant 0 : index
    %48 = vector.load %arg15[%c0_21, %c1, %c0_22] : memref<1x23x32xf32, #tpu.memory_space<vmem>>, vector<1x1x32xf32>
    %49 = vector.shape_cast %48 : vector<1x1x32xf32> to vector<1x32xf32>
    %50 = vector.shape_cast %49 : vector<1x32xf32> to vector<1x1x32xf32>
    %51 = vector.broadcast %50 : vector<1x1x32xf32> to vector<2x8x32xf32>
    %52 = arith.addf %47, %51 : vector<2x8x32xf32>
    %53 = arith.truncf %52 : vector<2x8x32xf32> to vector<2x8x32xbf16>
    %54 = vector.extract_strided_slice %39 {offsets = [0, 0, 64], sizes = [2, 8, 32], strides = [1, 1, 1]} : vector<2x8x96xf32> to vector<2x8x32xf32>
    %c0_23 = arith.constant 0 : index
    %c2 = arith.constant 2 : index
    %c0_24 = arith.constant 0 : index
    %55 = vector.load %arg15[%c0_23, %c2, %c0_24] : memref<1x23x32xf32, #tpu.memory_space<vmem>>, vector<1x1x32xf32>
    %56 = vector.shape_cast %55 : vector<1x1x32xf32> to vector<1x32xf32>
    %57 = vector.shape_cast %56 : vector<1x32xf32> to vector<1x1x32xf32>
    %58 = vector.broadcast %57 : vector<1x1x32xf32> to vector<2x8x32xf32>
    %59 = arith.addf %54, %58 : vector<2x8x32xf32>
    %60 = arith.truncf %59 : vector<2x8x32xf32> to vector<2x8x32xbf16>
    %c0_25 = arith.constant 0 : index
    %c0_26 = arith.constant 0 : index
    %c0_27 = arith.constant 0 : index
    %61 = vector.load %arg9[%c0_25, %c0_26, %c0_27] : memref<1x32x32xbf16, #tpu.memory_space<vmem>>, vector<1x32x32xbf16>
    %62 = vector.shape_cast %61 : vector<1x32x32xbf16> to vector<32x32xbf16>
    %cst_28 = arith.constant 0.000000e+00 : f32
    %63 = vector.broadcast %cst_28 : f32 to vector<2x8x32xf32>
    %64 = vector.extract_strided_slice %46 {offsets = [0, 0, 0], sizes = [2, 8, 8], strides = [1, 1, 1]} : vector<2x8x32xbf16> to vector<2x8x8xbf16>
    %65 = vector.extract_strided_slice %53 {offsets = [0, 0, 0], sizes = [2, 8, 8], strides = [1, 1, 1]} : vector<2x8x32xbf16> to vector<2x8x8xbf16>
    "tpu.trace_start"() <{level = 10 : i32, message = "bqd,bkd->bqk"}> : () -> ()
    %cst_29 = arith.constant dense<0.000000e+00> : vector<2x8x8xf32>
    %66 = tpu.matmul %64, %65, %cst_29 {dimension_numbers = #tpu.dot_dimension_numbers<[2], [2], [1], [1], [0, 0, 0, 1, 1, 1], [0], [0]>} : vector<2x8x8xbf16>, vector<2x8x8xbf16>, vector<2x8x8xf32> -> vector<2x8x8xf32>
    "tpu.trace_stop"() : () -> ()
    %cst_30 = arith.constant 0.353553385 : f32
    %67 = vector.broadcast %cst_30 : f32 to vector<2x8x8xf32>
    %68 = arith.mulf %66, %67 : vector<2x8x8xf32>
    %69 = arith.addf %68, %5 : vector<2x8x8xf32>
    %cst_31 = arith.constant dense<0xFF800000> : vector<2x8xf32>
    %70 = vector.multi_reduction <maximumf>, %69, %cst_31 [2] : vector<2x8x8xf32> to vector<2x8xf32>
    %71 = vector.shape_cast %70 : vector<2x8xf32> to vector<2x8x1xf32>
    %72 = vector.broadcast %71 : vector<2x8x1xf32> to vector<2x8x8xf32>
    %73 = arith.subf %69, %72 : vector<2x8x8xf32>
    %74 = math.exp %73 : vector<2x8x8xf32>
    %cst_32 = arith.constant dense<0.000000e+00> : vector<2x8xf32>
    %75 = vector.multi_reduction <add>, %74, %cst_32 [2] : vector<2x8x8xf32> to vector<2x8xf32>
    %76 = vector.shape_cast %75 : vector<2x8xf32> to vector<2x8x1xf32>
    %77 = tpu.reciprocal %76 {approx = true} : vector<2x8x1xf32> -> vector<2x8x1xf32>
    %78 = vector.broadcast %77 : vector<2x8x1xf32> to vector<2x8x8xf32>
    %79 = arith.mulf %74, %78 : vector<2x8x8xf32>
    %80 = arith.truncf %79 : vector<2x8x8xf32> to vector<2x8x8xbf16>
    %81 = vector.extract_strided_slice %60 {offsets = [0, 0, 0], sizes = [2, 8, 8], strides = [1, 1, 1]} : vector<2x8x32xbf16> to vector<2x8x8xbf16>
    "tpu.trace_start"() <{level = 10 : i32, message = "bqk,bkd->bqd"}> : () -> ()
    %cst_33 = arith.constant dense<0.000000e+00> : vector<2x8x8xf32>
    %82 = tpu.matmul %80, %81, %cst_33 {dimension_numbers = #tpu.dot_dimension_numbers<[2], [1], [1], [2], [0, 0, 0, 1, 1, 2], [0], [0]>} : vector<2x8x8xbf16>, vector<2x8x8xbf16>, vector<2x8x8xf32> -> vector<2x8x8xf32>
    "tpu.trace_stop"() : () -> ()
    %83 = arith.truncf %82 : vector<2x8x8xf32> to vector<2x8x8xbf16>
    %84 = vector.extract_strided_slice %62 {offsets = [0, 0], sizes = [8, 32], strides = [1, 1]} : vector<32x32xbf16> to vector<8x32xbf16>
    %85 = vector.shape_cast %83 : vector<2x8x8xbf16> to vector<16x8xbf16>
    %cst_34 = arith.constant dense<0.000000e+00> : vector<16x32xf32>
    %86 = tpu.matmul %85, %84, %cst_34 {dimension_numbers = #tpu.dot_dimension_numbers<[1], [0], [0], [1], [0, 0, 1, 1], [], []>} : vector<16x8xbf16>, vector<8x32xbf16>, vector<16x32xf32> -> vector<16x32xf32>
    %87 = vector.shape_cast %86 : vector<16x32xf32> to vector<2x8x32xf32>
    %88 = arith.addf %63, %87 : vector<2x8x32xf32>
    %89 = vector.extract_strided_slice %46 {offsets = [0, 0, 8], sizes = [2, 8, 8], strides = [1, 1, 1]} : vector<2x8x32xbf16> to vector<2x8x8xbf16>
    %90 = vector.extract_strided_slice %53 {offsets = [0, 0, 8], sizes = [2, 8, 8], strides = [1, 1, 1]} : vector<2x8x32xbf16> to vector<2x8x8xbf16>
    "tpu.trace_start"() <{level = 10 : i32, message = "bqd,bkd->bqk"}> : () -> ()
    %cst_35 = arith.constant dense<0.000000e+00> : vector<2x8x8xf32>
    %91 = tpu.matmul %89, %90, %cst_35 {dimension_numbers = #tpu.dot_dimension_numbers<[2], [2], [1], [1], [0, 0, 0, 1, 1, 1], [0], [0]>} : vector<2x8x8xbf16>, vector<2x8x8xbf16>, vector<2x8x8xf32> -> vector<2x8x8xf32>
    "tpu.trace_stop"() : () -> ()
    %cst_36 = arith.constant 0.353553385 : f32
    %92 = vector.broadcast %cst_36 : f32 to vector<2x8x8xf32>
    %93 = arith.mulf %91, %92 : vector<2x8x8xf32>
    %94 = arith.addf %93, %5 : vector<2x8x8xf32>
    %cst_37 = arith.constant dense<0xFF800000> : vector<2x8xf32>
    %95 = vector.multi_reduction <maximumf>, %94, %cst_37 [2] : vector<2x8x8xf32> to vector<2x8xf32>
    %96 = vector.shape_cast %95 : vector<2x8xf32> to vector<2x8x1xf32>
    %97 = vector.broadcast %96 : vector<2x8x1xf32> to vector<2x8x8xf32>
    %98 = arith.subf %94, %97 : vector<2x8x8xf32>
    %99 = math.exp %98 : vector<2x8x8xf32>
    %cst_38 = arith.constant dense<0.000000e+00> : vector<2x8xf32>
    %100 = vector.multi_reduction <add>, %99, %cst_38 [2] : vector<2x8x8xf32> to vector<2x8xf32>
    %101 = vector.shape_cast %100 : vector<2x8xf32> to vector<2x8x1xf32>
    %102 = tpu.reciprocal %101 {approx = true} : vector<2x8x1xf32> -> vector<2x8x1xf32>
    %103 = vector.broadcast %102 : vector<2x8x1xf32> to vector<2x8x8xf32>
    %104 = arith.mulf %99, %103 : vector<2x8x8xf32>
    %105 = arith.truncf %104 : vector<2x8x8xf32> to vector<2x8x8xbf16>
    %106 = vector.extract_strided_slice %60 {offsets = [0, 0, 8], sizes = [2, 8, 8], strides = [1, 1, 1]} : vector<2x8x32xbf16> to vector<2x8x8xbf16>
    "tpu.trace_start"() <{level = 10 : i32, message = "bqk,bkd->bqd"}> : () -> ()
    %cst_39 = arith.constant dense<0.000000e+00> : vector<2x8x8xf32>
    %107 = tpu.matmul %105, %106, %cst_39 {dimension_numbers = #tpu.dot_dimension_numbers<[2], [1], [1], [2], [0, 0, 0, 1, 1, 2], [0], [0]>} : vector<2x8x8xbf16>, vector<2x8x8xbf16>, vector<2x8x8xf32> -> vector<2x8x8xf32>
    "tpu.trace_stop"() : () -> ()
    %108 = arith.truncf %107 : vector<2x8x8xf32> to vector<2x8x8xbf16>
    %109 = vector.extract_strided_slice %62 {offsets = [8, 0], sizes = [8, 32], strides = [1, 1]} : vector<32x32xbf16> to vector<8x32xbf16>
    %110 = vector.shape_cast %108 : vector<2x8x8xbf16> to vector<16x8xbf16>
    %cst_40 = arith.constant dense<0.000000e+00> : vector<16x32xf32>
    %111 = tpu.matmul %110, %109, %cst_40 {dimension_numbers = #tpu.dot_dimension_numbers<[1], [0], [0], [1], [0, 0, 1, 1], [], []>} : vector<16x8xbf16>, vector<8x32xbf16>, vector<16x32xf32> -> vector<16x32xf32>
    %112 = vector.shape_cast %111 : vector<16x32xf32> to vector<2x8x32xf32>
    %113 = arith.addf %88, %112 : vector<2x8x32xf32>
    %114 = vector.extract_strided_slice %46 {offsets = [0, 0, 16], sizes = [2, 8, 8], strides = [1, 1, 1]} : vector<2x8x32xbf16> to vector<2x8x8xbf16>
    %115 = vector.extract_strided_slice %53 {offsets = [0, 0, 16], sizes = [2, 8, 8], strides = [1, 1, 1]} : vector<2x8x32xbf16> to vector<2x8x8xbf16>
    "tpu.trace_start"() <{level = 10 : i32, message = "bqd,bkd->bqk"}> : () -> ()
    %cst_41 = arith.constant dense<0.000000e+00> : vector<2x8x8xf32>
    %116 = tpu.matmul %114, %115, %cst_41 {dimension_numbers = #tpu.dot_dimension_numbers<[2], [2], [1], [1], [0, 0, 0, 1, 1, 1], [0], [0]>} : vector<2x8x8xbf16>, vector<2x8x8xbf16>, vector<2x8x8xf32> -> vector<2x8x8xf32>
    "tpu.trace_stop"() : () -> ()
    %cst_42 = arith.constant 0.353553385 : f32
    %117 = vector.broadcast %cst_42 : f32 to vector<2x8x8xf32>
    %118 = arith.mulf %116, %117 : vector<2x8x8xf32>
    %119 = arith.addf %118, %5 : vector<2x8x8xf32>
    %cst_43 = arith.constant dense<0xFF800000> : vector<2x8xf32>
    %120 = vector.multi_reduction <maximumf>, %119, %cst_43 [2] : vector<2x8x8xf32> to vector<2x8xf32>
    %121 = vector.shape_cast %120 : vector<2x8xf32> to vector<2x8x1xf32>
    %122 = vector.broadcast %121 : vector<2x8x1xf32> to vector<2x8x8xf32>
    %123 = arith.subf %119, %122 : vector<2x8x8xf32>
    %124 = math.exp %123 : vector<2x8x8xf32>
    %cst_44 = arith.constant dense<0.000000e+00> : vector<2x8xf32>
    %125 = vector.multi_reduction <add>, %124, %cst_44 [2] : vector<2x8x8xf32> to vector<2x8xf32>
    %126 = vector.shape_cast %125 : vector<2x8xf32> to vector<2x8x1xf32>
    %127 = tpu.reciprocal %126 {approx = true} : vector<2x8x1xf32> -> vector<2x8x1xf32>
    %128 = vector.broadcast %127 : vector<2x8x1xf32> to vector<2x8x8xf32>
    %129 = arith.mulf %124, %128 : vector<2x8x8xf32>
    %130 = arith.truncf %129 : vector<2x8x8xf32> to vector<2x8x8xbf16>
    %131 = vector.extract_strided_slice %60 {offsets = [0, 0, 16], sizes = [2, 8, 8], strides = [1, 1, 1]} : vector<2x8x32xbf16> to vector<2x8x8xbf16>
    "tpu.trace_start"() <{level = 10 : i32, message = "bqk,bkd->bqd"}> : () -> ()
    %cst_45 = arith.constant dense<0.000000e+00> : vector<2x8x8xf32>
    %132 = tpu.matmul %130, %131, %cst_45 {dimension_numbers = #tpu.dot_dimension_numbers<[2], [1], [1], [2], [0, 0, 0, 1, 1, 2], [0], [0]>} : vector<2x8x8xbf16>, vector<2x8x8xbf16>, vector<2x8x8xf32> -> vector<2x8x8xf32>
    "tpu.trace_stop"() : () -> ()
    %133 = arith.truncf %132 : vector<2x8x8xf32> to vector<2x8x8xbf16>
    %134 = vector.extract_strided_slice %62 {offsets = [16, 0], sizes = [8, 32], strides = [1, 1]} : vector<32x32xbf16> to vector<8x32xbf16>
    %135 = vector.shape_cast %133 : vector<2x8x8xbf16> to vector<16x8xbf16>
    %cst_46 = arith.constant dense<0.000000e+00> : vector<16x32xf32>
    %136 = tpu.matmul %135, %134, %cst_46 {dimension_numbers = #tpu.dot_dimension_numbers<[1], [0], [0], [1], [0, 0, 1, 1], [], []>} : vector<16x8xbf16>, vector<8x32xbf16>, vector<16x32xf32> -> vector<16x32xf32>
    %137 = vector.shape_cast %136 : vector<16x32xf32> to vector<2x8x32xf32>
    %138 = arith.addf %113, %137 : vector<2x8x32xf32>
    %139 = vector.extract_strided_slice %46 {offsets = [0, 0, 24], sizes = [2, 8, 8], strides = [1, 1, 1]} : vector<2x8x32xbf16> to vector<2x8x8xbf16>
    %140 = vector.extract_strided_slice %53 {offsets = [0, 0, 24], sizes = [2, 8, 8], strides = [1, 1, 1]} : vector<2x8x32xbf16> to vector<2x8x8xbf16>
    "tpu.trace_start"() <{level = 10 : i32, message = "bqd,bkd->bqk"}> : () -> ()
    %cst_47 = arith.constant dense<0.000000e+00> : vector<2x8x8xf32>
    %141 = tpu.matmul %139, %140, %cst_47 {dimension_numbers = #tpu.dot_dimension_numbers<[2], [2], [1], [1], [0, 0, 0, 1, 1, 1], [0], [0]>} : vector<2x8x8xbf16>, vector<2x8x8xbf16>, vector<2x8x8xf32> -> vector<2x8x8xf32>
    "tpu.trace_stop"() : () -> ()
    %cst_48 = arith.constant 0.353553385 : f32
    %142 = vector.broadcast %cst_48 : f32 to vector<2x8x8xf32>
    %143 = arith.mulf %141, %142 : vector<2x8x8xf32>
    %144 = arith.addf %143, %5 : vector<2x8x8xf32>
    %cst_49 = arith.constant dense<0xFF800000> : vector<2x8xf32>
    %145 = vector.multi_reduction <maximumf>, %144, %cst_49 [2] : vector<2x8x8xf32> to vector<2x8xf32>
    %146 = vector.shape_cast %145 : vector<2x8xf32> to vector<2x8x1xf32>
    %147 = vector.broadcast %146 : vector<2x8x1xf32> to vector<2x8x8xf32>
    %148 = arith.subf %144, %147 : vector<2x8x8xf32>
    %149 = math.exp %148 : vector<2x8x8xf32>
    %cst_50 = arith.constant dense<0.000000e+00> : vector<2x8xf32>
    %150 = vector.multi_reduction <add>, %149, %cst_50 [2] : vector<2x8x8xf32> to vector<2x8xf32>
    %151 = vector.shape_cast %150 : vector<2x8xf32> to vector<2x8x1xf32>
    %152 = tpu.reciprocal %151 {approx = true} : vector<2x8x1xf32> -> vector<2x8x1xf32>
    %153 = vector.broadcast %152 : vector<2x8x1xf32> to vector<2x8x8xf32>
    %154 = arith.mulf %149, %153 : vector<2x8x8xf32>
    %155 = arith.truncf %154 : vector<2x8x8xf32> to vector<2x8x8xbf16>
    %156 = vector.extract_strided_slice %60 {offsets = [0, 0, 24], sizes = [2, 8, 8], strides = [1, 1, 1]} : vector<2x8x32xbf16> to vector<2x8x8xbf16>
    "tpu.trace_start"() <{level = 10 : i32, message = "bqk,bkd->bqd"}> : () -> ()
    %cst_51 = arith.constant dense<0.000000e+00> : vector<2x8x8xf32>
    %157 = tpu.matmul %155, %156, %cst_51 {dimension_numbers = #tpu.dot_dimension_numbers<[2], [1], [1], [2], [0, 0, 0, 1, 1, 2], [0], [0]>} : vector<2x8x8xbf16>, vector<2x8x8xbf16>, vector<2x8x8xf32> -> vector<2x8x8xf32>
    "tpu.trace_stop"() : () -> ()
    %158 = arith.truncf %157 : vector<2x8x8xf32> to vector<2x8x8xbf16>
    %159 = vector.extract_strided_slice %62 {offsets = [24, 0], sizes = [8, 32], strides = [1, 1]} : vector<32x32xbf16> to vector<8x32xbf16>
    %160 = vector.shape_cast %158 : vector<2x8x8xbf16> to vector<16x8xbf16>
    %cst_52 = arith.constant dense<0.000000e+00> : vector<16x32xf32>
    %161 = tpu.matmul %160, %159, %cst_52 {dimension_numbers = #tpu.dot_dimension_numbers<[1], [0], [0], [1], [0, 0, 1, 1], [], []>} : vector<16x8xbf16>, vector<8x32xbf16>, vector<16x32xf32> -> vector<16x32xf32>
    %162 = vector.shape_cast %161 : vector<16x32xf32> to vector<2x8x32xf32>
    %163 = arith.addf %138, %162 : vector<2x8x32xf32>
    %164 = arith.addf %3, %163 : vector<2x8x32xf32>
    %c0_53 = arith.constant 0 : index
    %c3 = arith.constant 3 : index
    %c0_54 = arith.constant 0 : index
    %165 = vector.load %arg15[%c0_53, %c3, %c0_54] : memref<1x23x32xf32, #tpu.memory_space<vmem>>, vector<1x1x32xf32>
    %166 = vector.shape_cast %165 : vector<1x1x32xf32> to vector<1x32xf32>
    %167 = vector.shape_cast %166 : vector<1x32xf32> to vector<1x1x32xf32>
    %168 = vector.broadcast %167 : vector<1x1x32xf32> to vector<2x8x32xf32>
    %169 = arith.addf %164, %168 : vector<2x8x32xf32>
    %c0_55 = arith.constant 0 : index
    %c6 = arith.constant 6 : index
    %c0_56 = arith.constant 0 : index
    %170 = vector.load %arg15[%c0_55, %c6, %c0_56] : memref<1x23x32xf32, #tpu.memory_space<vmem>>, vector<1x1x32xf32>
    %171 = vector.shape_cast %170 : vector<1x1x32xf32> to vector<1x32xf32>
    %c0_57 = arith.constant 0 : index
    %c7 = arith.constant 7 : index
    %c0_58 = arith.constant 0 : index
    %172 = vector.load %arg15[%c0_57, %c7, %c0_58] : memref<1x23x32xf32, #tpu.memory_space<vmem>>, vector<1x1x32xf32>
    %173 = vector.shape_cast %172 : vector<1x1x32xf32> to vector<1x32xf32>
    %cst_59 = arith.constant dense<0.000000e+00> : vector<2x8xf32>
    %174 = vector.multi_reduction <add>, %169, %cst_59 [2] : vector<2x8x32xf32> to vector<2x8xf32>
    %175 = vector.shape_cast %174 : vector<2x8xf32> to vector<2x8x1xf32>
    %cst_60 = arith.constant 3.200000e+01 : f32
    %176 = vector.broadcast %cst_60 : f32 to vector<2x8x1xf32>
    %177 = arith.divf %175, %176 : vector<2x8x1xf32>
    %178 = vector.broadcast %177 : vector<2x8x1xf32> to vector<2x8x32xf32>
    %179 = arith.subf %169, %178 : vector<2x8x32xf32>
    %180 = arith.mulf %179, %179 : vector<2x8x32xf32>
    %cst_61 = arith.constant dense<0.000000e+00> : vector<2x8xf32>
    %181 = vector.multi_reduction <add>, %180, %cst_61 [2] : vector<2x8x32xf32> to vector<2x8xf32>
    %182 = vector.shape_cast %181 : vector<2x8xf32> to vector<2x8x1xf32>
    %cst_62 = arith.constant 3.200000e+01 : f32
    %183 = vector.broadcast %cst_62 : f32 to vector<2x8x1xf32>
    %184 = arith.divf %182, %183 : vector<2x8x1xf32>
    %185 = vector.broadcast %177 : vector<2x8x1xf32> to vector<2x8x32xf32>
    %186 = arith.subf %169, %185 : vector<2x8x32xf32>
    %cst_63 = arith.constant 9.99999974E-6 : f32
    %187 = vector.broadcast %cst_63 : f32 to vector<2x8x1xf32>
    %188 = arith.addf %184, %187 : vector<2x8x1xf32>
    %189 = math.rsqrt %188 : vector<2x8x1xf32>
    %190 = vector.broadcast %189 : vector<2x8x1xf32> to vector<2x8x32xf32>
    %191 = arith.mulf %186, %190 : vector<2x8x32xf32>
    %192 = vector.shape_cast %171 : vector<1x32xf32> to vector<1x1x32xf32>
    %193 = vector.broadcast %192 : vector<1x1x32xf32> to vector<2x8x32xf32>
    %194 = arith.mulf %191, %193 : vector<2x8x32xf32>
    %195 = vector.shape_cast %173 : vector<1x32xf32> to vector<1x1x32xf32>
    %196 = vector.broadcast %195 : vector<1x1x32xf32> to vector<2x8x32xf32>
    %197 = arith.addf %194, %196 : vector<2x8x32xf32>
    %198 = arith.truncf %197 : vector<2x8x32xf32> to vector<2x8x32xbf16>
    %c0_64 = arith.constant 0 : index
    %c0_65 = arith.constant 0 : index
    %c0_66 = arith.constant 0 : index
    %199 = vector.load %arg3[%c0_64, %c0_65, %c0_66] : memref<2x16x32xbf16, #tpu.memory_space<vmem>>, vector<2x16x32xbf16>
    %200 = arith.extf %199 : vector<2x16x32xbf16> to vector<2x16x32xf32>
    %c0_67 = arith.constant 0 : index
    %c8 = arith.constant 8 : index
    %c0_68 = arith.constant 0 : index
    %201 = vector.load %arg15[%c0_67, %c8, %c0_68] : memref<1x23x32xf32, #tpu.memory_space<vmem>>, vector<1x1x32xf32>
    %202 = vector.shape_cast %201 : vector<1x1x32xf32> to vector<1x32xf32>
    %c0_69 = arith.constant 0 : index
    %c9 = arith.constant 9 : index
    %c0_70 = arith.constant 0 : index
    %203 = vector.load %arg15[%c0_69, %c9, %c0_70] : memref<1x23x32xf32, #tpu.memory_space<vmem>>, vector<1x1x32xf32>
    %204 = vector.shape_cast %203 : vector<1x1x32xf32> to vector<1x32xf32>
    %cst_71 = arith.constant dense<0.000000e+00> : vector<2x16xf32>
    %205 = vector.multi_reduction <add>, %200, %cst_71 [2] : vector<2x16x32xf32> to vector<2x16xf32>
    %206 = vector.shape_cast %205 : vector<2x16xf32> to vector<2x16x1xf32>
    %cst_72 = arith.constant 3.200000e+01 : f32
    %207 = vector.broadcast %cst_72 : f32 to vector<2x16x1xf32>
    %208 = arith.divf %206, %207 : vector<2x16x1xf32>
    %209 = vector.broadcast %208 : vector<2x16x1xf32> to vector<2x16x32xf32>
    %210 = arith.subf %200, %209 : vector<2x16x32xf32>
    %211 = arith.mulf %210, %210 : vector<2x16x32xf32>
    %cst_73 = arith.constant dense<0.000000e+00> : vector<2x16xf32>
    %212 = vector.multi_reduction <add>, %211, %cst_73 [2] : vector<2x16x32xf32> to vector<2x16xf32>
    %213 = vector.shape_cast %212 : vector<2x16xf32> to vector<2x16x1xf32>
    %cst_74 = arith.constant 3.200000e+01 : f32
    %214 = vector.broadcast %cst_74 : f32 to vector<2x16x1xf32>
    %215 = arith.divf %213, %214 : vector<2x16x1xf32>
    %216 = vector.broadcast %208 : vector<2x16x1xf32> to vector<2x16x32xf32>
    %217 = arith.subf %200, %216 : vector<2x16x32xf32>
    %cst_75 = arith.constant 9.99999974E-6 : f32
    %218 = vector.broadcast %cst_75 : f32 to vector<2x16x1xf32>
    %219 = arith.addf %215, %218 : vector<2x16x1xf32>
    %220 = math.rsqrt %219 : vector<2x16x1xf32>
    %221 = vector.broadcast %220 : vector<2x16x1xf32> to vector<2x16x32xf32>
    %222 = arith.mulf %217, %221 : vector<2x16x32xf32>
    %223 = vector.shape_cast %202 : vector<1x32xf32> to vector<1x1x32xf32>
    %224 = vector.broadcast %223 : vector<1x1x32xf32> to vector<2x16x32xf32>
    %225 = arith.mulf %222, %224 : vector<2x16x32xf32>
    %226 = vector.shape_cast %204 : vector<1x32xf32> to vector<1x1x32xf32>
    %227 = vector.broadcast %226 : vector<1x1x32xf32> to vector<2x16x32xf32>
    %228 = arith.addf %225, %227 : vector<2x16x32xf32>
    %229 = arith.truncf %228 : vector<2x16x32xf32> to vector<2x16x32xbf16>
    %c0_76 = arith.constant 0 : index
    %c0_77 = arith.constant 0 : index
    %c0_78 = arith.constant 0 : index
    %230 = vector.load %arg10[%c0_76, %c0_77, %c0_78] : memref<1x32x32xbf16, #tpu.memory_space<vmem>>, vector<1x32x32xbf16>
    %231 = vector.shape_cast %230 : vector<1x32x32xbf16> to vector<32x32xbf16>
    %232 = vector.shape_cast %198 : vector<2x8x32xbf16> to vector<16x32xbf16>
    %cst_79 = arith.constant dense<0.000000e+00> : vector<16x32xf32>
    %233 = tpu.matmul %232, %231, %cst_79 {dimension_numbers = #tpu.dot_dimension_numbers<[1], [0], [0], [1], [0, 0, 1, 1], [], []>} : vector<16x32xbf16>, vector<32x32xbf16>, vector<16x32xf32> -> vector<16x32xf32>
    %234 = vector.shape_cast %233 : vector<16x32xf32> to vector<2x8x32xf32>
    %c0_80 = arith.constant 0 : index
    %c0_81 = arith.constant 0 : index
    %c0_82 = arith.constant 0 : index
    %235 = vector.load %arg11[%c0_80, %c0_81, %c0_82] : memref<1x32x64xbf16, #tpu.memory_space<vmem>>, vector<1x32x64xbf16>
    %236 = vector.shape_cast %235 : vector<1x32x64xbf16> to vector<32x64xbf16>
    %237 = vector.shape_cast %229 : vector<2x16x32xbf16> to vector<32x32xbf16>
    %cst_83 = arith.constant dense<0.000000e+00> : vector<32x64xf32>
    %238 = tpu.matmul %237, %236, %cst_83 {dimension_numbers = #tpu.dot_dimension_numbers<[1], [0], [0], [1], [0, 0, 1, 1], [], []>} : vector<32x32xbf16>, vector<32x64xbf16>, vector<32x64xf32> -> vector<32x64xf32>
    %239 = vector.shape_cast %238 : vector<32x64xf32> to vector<2x16x64xf32>
    %c0_84 = arith.constant 0 : index
    %c10 = arith.constant 10 : index
    %c0_85 = arith.constant 0 : index
    %240 = vector.load %arg15[%c0_84, %c10, %c0_85] : memref<1x23x32xf32, #tpu.memory_space<vmem>>, vector<1x1x32xf32>
    %241 = vector.shape_cast %240 : vector<1x1x32xf32> to vector<1x32xf32>
    %242 = vector.shape_cast %241 : vector<1x32xf32> to vector<1x1x32xf32>
    %243 = vector.broadcast %242 : vector<1x1x32xf32> to vector<2x8x32xf32>
    %244 = arith.addf %234, %243 : vector<2x8x32xf32>
    %245 = arith.truncf %244 : vector<2x8x32xf32> to vector<2x8x32xbf16>
    %246 = vector.extract_strided_slice %239 {offsets = [0, 0, 0], sizes = [2, 16, 32], strides = [1, 1, 1]} : vector<2x16x64xf32> to vector<2x16x32xf32>
    %c0_86 = arith.constant 0 : index
    %c11 = arith.constant 11 : index
    %c0_87 = arith.constant 0 : index
    %247 = vector.load %arg15[%c0_86, %c11, %c0_87] : memref<1x23x32xf32, #tpu.memory_space<vmem>>, vector<1x1x32xf32>
    %248 = vector.shape_cast %247 : vector<1x1x32xf32> to vector<1x32xf32>
    %249 = vector.shape_cast %248 : vector<1x32xf32> to vector<1x1x32xf32>
    %250 = vector.broadcast %249 : vector<1x1x32xf32> to vector<2x16x32xf32>
    %251 = arith.addf %246, %250 : vector<2x16x32xf32>
    %252 = arith.truncf %251 : vector<2x16x32xf32> to vector<2x16x32xbf16>
    %253 = vector.extract_strided_slice %239 {offsets = [0, 0, 32], sizes = [2, 16, 32], strides = [1, 1, 1]} : vector<2x16x64xf32> to vector<2x16x32xf32>
    %c0_88 = arith.constant 0 : index
    %c12 = arith.constant 12 : index
    %c0_89 = arith.constant 0 : index
    %254 = vector.load %arg15[%c0_88, %c12, %c0_89] : memref<1x23x32xf32, #tpu.memory_space<vmem>>, vector<1x1x32xf32>
    %255 = vector.shape_cast %254 : vector<1x1x32xf32> to vector<1x32xf32>
    %256 = vector.shape_cast %255 : vector<1x32xf32> to vector<1x1x32xf32>
    %257 = vector.broadcast %256 : vector<1x1x32xf32> to vector<2x16x32xf32>
    %258 = arith.addf %253, %257 : vector<2x16x32xf32>
    %259 = arith.truncf %258 : vector<2x16x32xf32> to vector<2x16x32xbf16>
    %c0_90 = arith.constant 0 : index
    %c0_91 = arith.constant 0 : index
    %c0_92 = arith.constant 0 : index
    %260 = vector.load %arg5[%c0_90, %c0_91, %c0_92] : memref<2x8x1xi32, #tpu.memory_space<vmem>>, vector<2x8x1xi32>
    %261 = tpu.iota {dimensions = array<i32: 2>} : vector<2x8x16xi32>
    %c8_i32 = arith.constant 8 : i32
    %262 = vector.broadcast %c8_i32 : i32 to vector<2x8x1xi32>
    %263 = arith.muli %260, %262 : vector<2x8x1xi32>
    %264 = vector.broadcast %263 : vector<2x8x1xi32> to vector<2x8x16xi32>
    %265 = arith.cmpi sge, %261, %264 : vector<2x8x16xi32>
    %c8_i32_93 = arith.constant 8 : i32
    %266 = vector.broadcast %c8_i32_93 : i32 to vector<2x8x1xi32>
    %267 = arith.addi %263, %266 : vector<2x8x1xi32>
    %268 = vector.broadcast %267 : vector<2x8x1xi32> to vector<2x8x16xi32>
    %269 = arith.cmpi slt, %261, %268 : vector<2x8x16xi32>
    %270 = arith.andi %265, %269 : vector<2x8x16xi1>
    %271 = arith.extui %270 : vector<2x8x16xi1> to vector<2x8x16xi32>
    %272 = arith.sitofp %271 : vector<2x8x16xi32> to vector<2x8x16xf32>
    %cst_94 = arith.constant 0.000000e+00 : f32
    %273 = vector.broadcast %cst_94 : f32 to vector<2x8x16xf32>
    %274 = vector.extract_strided_slice %245 {offsets = [0, 0, 0], sizes = [2, 8, 8], strides = [1, 1, 1]} : vector<2x8x32xbf16> to vector<2x8x8xbf16>
    %275 = vector.extract_strided_slice %252 {offsets = [0, 0, 0], sizes = [2, 16, 8], strides = [1, 1, 1]} : vector<2x16x32xbf16> to vector<2x16x8xbf16>
    "tpu.trace_start"() <{level = 10 : i32, message = "bqd,bkd->bqk"}> : () -> ()
    %cst_95 = arith.constant dense<0.000000e+00> : vector<2x8x16xf32>
    %276 = tpu.matmul %274, %275, %cst_95 {dimension_numbers = #tpu.dot_dimension_numbers<[2], [2], [1], [1], [0, 0, 0, 1, 1, 1], [0], [0]>} : vector<2x8x8xbf16>, vector<2x16x8xbf16>, vector<2x8x16xf32> -> vector<2x8x16xf32>
    "tpu.trace_stop"() : () -> ()
    %cst_96 = arith.constant 0.353553385 : f32
    %277 = vector.broadcast %cst_96 : f32 to vector<2x8x16xf32>
    %278 = arith.mulf %276, %277 : vector<2x8x16xf32>
    %279 = arith.negf %278 : vector<2x8x16xf32>
    %280 = math.exp %279 : vector<2x8x16xf32>
    %cst_97 = arith.constant 1.000000e+00 : f32
    %281 = vector.broadcast %cst_97 : f32 to vector<2x8x16xf32>
    %282 = arith.addf %281, %280 : vector<2x8x16xf32>
    %283 = arith.divf %281, %282 : vector<2x8x16xf32>
    %284 = arith.mulf %283, %272 : vector<2x8x16xf32>
    %285 = arith.addf %273, %284 : vector<2x8x16xf32>
    %286 = arith.truncf %284 : vector<2x8x16xf32> to vector<2x8x16xbf16>
    %287 = vector.extract_strided_slice %259 {offsets = [0, 0, 0], sizes = [2, 16, 8], strides = [1, 1, 1]} : vector<2x16x32xbf16> to vector<2x16x8xbf16>
    "tpu.trace_start"() <{level = 10 : i32, message = "bqk,bkd->bqd"}> : () -> ()
    %cst_98 = arith.constant dense<0.000000e+00> : vector<2x8x8xf32>
    %288 = tpu.matmul %286, %287, %cst_98 {dimension_numbers = #tpu.dot_dimension_numbers<[2], [1], [1], [2], [0, 0, 0, 1, 1, 2], [0], [0]>} : vector<2x8x16xbf16>, vector<2x16x8xbf16>, vector<2x8x8xf32> -> vector<2x8x8xf32>
    "tpu.trace_stop"() : () -> ()
    %c0_99 = arith.constant 0 : index
    %c0_100 = arith.constant 0 : index
    %c0_101 = arith.constant 0 : index
    %289 = vector.load %arg21[%c0_99, %c0_100, %c0_101] : memref<2x8x32xf32, #tpu.memory_space<vmem>>, vector<2x8x8xf32>
    tpu.vector_store %arg21[%c0_99, %c0_100, %c0_101], %288 {strides = array<i32>} : memref<2x8x32xf32, #tpu.memory_space<vmem>>, vector<2x8x8xf32>,
    %290 = vector.extract_strided_slice %245 {offsets = [0, 0, 8], sizes = [2, 8, 8], strides = [1, 1, 1]} : vector<2x8x32xbf16> to vector<2x8x8xbf16>
    %291 = vector.extract_strided_slice %252 {offsets = [0, 0, 8], sizes = [2, 16, 8], strides = [1, 1, 1]} : vector<2x16x32xbf16> to vector<2x16x8xbf16>
    "tpu.trace_start"() <{level = 10 : i32, message = "bqd,bkd->bqk"}> : () -> ()
    %cst_102 = arith.constant dense<0.000000e+00> : vector<2x8x16xf32>
    %292 = tpu.matmul %290, %291, %cst_102 {dimension_numbers = #tpu.dot_dimension_numbers<[2], [2], [1], [1], [0, 0, 0, 1, 1, 1], [0], [0]>} : vector<2x8x8xbf16>, vector<2x16x8xbf16>, vector<2x8x16xf32> -> vector<2x8x16xf32>
    "tpu.trace_stop"() : () -> ()
    %cst_103 = arith.constant 0.353553385 : f32
    %293 = vector.broadcast %cst_103 : f32 to vector<2x8x16xf32>
    %294 = arith.mulf %292, %293 : vector<2x8x16xf32>
    %295 = arith.negf %294 : vector<2x8x16xf32>
    %296 = math.exp %295 : vector<2x8x16xf32>
    %cst_104 = arith.constant 1.000000e+00 : f32
    %297 = vector.broadcast %cst_104 : f32 to vector<2x8x16xf32>
    %298 = arith.addf %297, %296 : vector<2x8x16xf32>
    %299 = arith.divf %297, %298 : vector<2x8x16xf32>
    %300 = arith.mulf %299, %272 : vector<2x8x16xf32>
    %301 = arith.addf %285, %300 : vector<2x8x16xf32>
    %302 = arith.truncf %300 : vector<2x8x16xf32> to vector<2x8x16xbf16>
    %303 = vector.extract_strided_slice %259 {offsets = [0, 0, 8], sizes = [2, 16, 8], strides = [1, 1, 1]} : vector<2x16x32xbf16> to vector<2x16x8xbf16>
    "tpu.trace_start"() <{level = 10 : i32, message = "bqk,bkd->bqd"}> : () -> ()
    %cst_105 = arith.constant dense<0.000000e+00> : vector<2x8x8xf32>
    %304 = tpu.matmul %302, %303, %cst_105 {dimension_numbers = #tpu.dot_dimension_numbers<[2], [1], [1], [2], [0, 0, 0, 1, 1, 2], [0], [0]>} : vector<2x8x16xbf16>, vector<2x16x8xbf16>, vector<2x8x8xf32> -> vector<2x8x8xf32>
    "tpu.trace_stop"() : () -> ()
    %c0_106 = arith.constant 0 : index
    %c0_107 = arith.constant 0 : index
    %c8_108 = arith.constant 8 : index
    %305 = vector.load %arg21[%c0_106, %c0_107, %c8_108] : memref<2x8x32xf32, #tpu.memory_space<vmem>>, vector<2x8x8xf32>
    tpu.vector_store %arg21[%c0_106, %c0_107, %c8_108], %304 {strides = array<i32>} : memref<2x8x32xf32, #tpu.memory_space<vmem>>, vector<2x8x8xf32>,
    %306 = vector.extract_strided_slice %245 {offsets = [0, 0, 16], sizes = [2, 8, 8], strides = [1, 1, 1]} : vector<2x8x32xbf16> to vector<2x8x8xbf16>
    %307 = vector.extract_strided_slice %252 {offsets = [0, 0, 16], sizes = [2, 16, 8], strides = [1, 1, 1]} : vector<2x16x32xbf16> to vector<2x16x8xbf16>
    "tpu.trace_start"() <{level = 10 : i32, message = "bqd,bkd->bqk"}> : () -> ()
    %cst_109 = arith.constant dense<0.000000e+00> : vector<2x8x16xf32>
    %308 = tpu.matmul %306, %307, %cst_109 {dimension_numbers = #tpu.dot_dimension_numbers<[2], [2], [1], [1], [0, 0, 0, 1, 1, 1], [0], [0]>} : vector<2x8x8xbf16>, vector<2x16x8xbf16>, vector<2x8x16xf32> -> vector<2x8x16xf32>
    "tpu.trace_stop"() : () -> ()
    %cst_110 = arith.constant 0.353553385 : f32
    %309 = vector.broadcast %cst_110 : f32 to vector<2x8x16xf32>
    %310 = arith.mulf %308, %309 : vector<2x8x16xf32>
    %311 = arith.negf %310 : vector<2x8x16xf32>
    %312 = math.exp %311 : vector<2x8x16xf32>
    %cst_111 = arith.constant 1.000000e+00 : f32
    %313 = vector.broadcast %cst_111 : f32 to vector<2x8x16xf32>
    %314 = arith.addf %313, %312 : vector<2x8x16xf32>
    %315 = arith.divf %313, %314 : vector<2x8x16xf32>
    %316 = arith.mulf %315, %272 : vector<2x8x16xf32>
    %317 = arith.addf %301, %316 : vector<2x8x16xf32>
    %318 = arith.truncf %316 : vector<2x8x16xf32> to vector<2x8x16xbf16>
    %319 = vector.extract_strided_slice %259 {offsets = [0, 0, 16], sizes = [2, 16, 8], strides = [1, 1, 1]} : vector<2x16x32xbf16> to vector<2x16x8xbf16>
    "tpu.trace_start"() <{level = 10 : i32, message = "bqk,bkd->bqd"}> : () -> ()
    %cst_112 = arith.constant dense<0.000000e+00> : vector<2x8x8xf32>
    %320 = tpu.matmul %318, %319, %cst_112 {dimension_numbers = #tpu.dot_dimension_numbers<[2], [1], [1], [2], [0, 0, 0, 1, 1, 2], [0], [0]>} : vector<2x8x16xbf16>, vector<2x16x8xbf16>, vector<2x8x8xf32> -> vector<2x8x8xf32>
    "tpu.trace_stop"() : () -> ()
    %c0_113 = arith.constant 0 : index
    %c0_114 = arith.constant 0 : index
    %c16 = arith.constant 16 : index
    %321 = vector.load %arg21[%c0_113, %c0_114, %c16] : memref<2x8x32xf32, #tpu.memory_space<vmem>>, vector<2x8x8xf32>
    tpu.vector_store %arg21[%c0_113, %c0_114, %c16], %320 {strides = array<i32>} : memref<2x8x32xf32, #tpu.memory_space<vmem>>, vector<2x8x8xf32>,
    %322 = vector.extract_strided_slice %245 {offsets = [0, 0, 24], sizes = [2, 8, 8], strides = [1, 1, 1]} : vector<2x8x32xbf16> to vector<2x8x8xbf16>
    %323 = vector.extract_strided_slice %252 {offsets = [0, 0, 24], sizes = [2, 16, 8], strides = [1, 1, 1]} : vector<2x16x32xbf16> to vector<2x16x8xbf16>
    "tpu.trace_start"() <{level = 10 : i32, message = "bqd,bkd->bqk"}> : () -> ()
    %cst_115 = arith.constant dense<0.000000e+00> : vector<2x8x16xf32>
    %324 = tpu.matmul %322, %323, %cst_115 {dimension_numbers = #tpu.dot_dimension_numbers<[2], [2], [1], [1], [0, 0, 0, 1, 1, 1], [0], [0]>} : vector<2x8x8xbf16>, vector<2x16x8xbf16>, vector<2x8x16xf32> -> vector<2x8x16xf32>
    "tpu.trace_stop"() : () -> ()
    %cst_116 = arith.constant 0.353553385 : f32
    %325 = vector.broadcast %cst_116 : f32 to vector<2x8x16xf32>
    %326 = arith.mulf %324, %325 : vector<2x8x16xf32>
    %327 = arith.negf %326 : vector<2x8x16xf32>
    %328 = math.exp %327 : vector<2x8x16xf32>
    %cst_117 = arith.constant 1.000000e+00 : f32
    %329 = vector.broadcast %cst_117 : f32 to vector<2x8x16xf32>
    %330 = arith.addf %329, %328 : vector<2x8x16xf32>
    %331 = arith.divf %329, %330 : vector<2x8x16xf32>
    %332 = arith.mulf %331, %272 : vector<2x8x16xf32>
    %333 = arith.addf %317, %332 : vector<2x8x16xf32>
    %334 = arith.truncf %332 : vector<2x8x16xf32> to vector<2x8x16xbf16>
    %335 = vector.extract_strided_slice %259 {offsets = [0, 0, 24], sizes = [2, 16, 8], strides = [1, 1, 1]} : vector<2x16x32xbf16> to vector<2x16x8xbf16>
    "tpu.trace_start"() <{level = 10 : i32, message = "bqk,bkd->bqd"}> : () -> ()
    %cst_118 = arith.constant dense<0.000000e+00> : vector<2x8x8xf32>
    %336 = tpu.matmul %334, %335, %cst_118 {dimension_numbers = #tpu.dot_dimension_numbers<[2], [1], [1], [2], [0, 0, 0, 1, 1, 2], [0], [0]>} : vector<2x8x16xbf16>, vector<2x16x8xbf16>, vector<2x8x8xf32> -> vector<2x8x8xf32>
    "tpu.trace_stop"() : () -> ()
    %c0_119 = arith.constant 0 : index
    %c0_120 = arith.constant 0 : index
    %c24 = arith.constant 24 : index
    %337 = vector.load %arg21[%c0_119, %c0_120, %c24] : memref<2x8x32xf32, #tpu.memory_space<vmem>>, vector<2x8x8xf32>
    tpu.vector_store %arg21[%c0_119, %c0_120, %c24], %336 {strides = array<i32>} : memref<2x8x32xf32, #tpu.memory_space<vmem>>, vector<2x8x8xf32>,
    %c0_121 = arith.constant 0 : index
    %c0_122 = arith.constant 0 : index
    %c0_123 = arith.constant 0 : index
    %338 = vector.load %arg19[%c0_121, %c0_122, %c0_123] : memref<2x8x16xf32, #tpu.memory_space<vmem>>, vector<2x8x16xf32>
    %339 = arith.addf %338, %333 : vector<2x8x16xf32>
    %c0_124 = arith.constant 0 : index
    %c0_125 = arith.constant 0 : index
    %c0_126 = arith.constant 0 : index
    %340 = vector.load %arg19[%c0_124, %c0_125, %c0_126] : memref<2x8x16xf32, #tpu.memory_space<vmem>>, vector<2x8x16xf32>
    tpu.vector_store %arg19[%c0_124, %c0_125, %c0_126], %339 {strides = array<i32>} : memref<2x8x16xf32, #tpu.memory_space<vmem>>, vector<2x8x16xf32>,
    %c0_127 = arith.constant 0 : index
    %c0_128 = arith.constant 0 : index
    %c0_129 = arith.constant 0 : index
    %341 = vector.load %arg21[%c0_127, %c0_128, %c0_129] : memref<2x8x32xf32, #tpu.memory_space<vmem>>, vector<2x8x32xf32>
    %c0_130 = arith.constant 0 : index
    %c13 = arith.constant 13 : index
    %c0_131 = arith.constant 0 : index
    %342 = vector.load %arg15[%c0_130, %c13, %c0_131] : memref<1x23x32xf32, #tpu.memory_space<vmem>>, vector<1x1x32xf32>
    %343 = vector.shape_cast %342 : vector<1x1x32xf32> to vector<1x32xf32>
    %c0_132 = arith.constant 0 : index
    %c14 = arith.constant 14 : index
    %c0_133 = arith.constant 0 : index
    %344 = vector.load %arg15[%c0_132, %c14, %c0_133] : memref<1x23x32xf32, #tpu.memory_space<vmem>>, vector<1x1x32xf32>
    %345 = vector.shape_cast %344 : vector<1x1x32xf32> to vector<1x32xf32>
    %cst_134 = arith.constant dense<0.000000e+00> : vector<2x8xf32>
    %346 = vector.multi_reduction <add>, %341, %cst_134 [2] : vector<2x8x32xf32> to vector<2x8xf32>
    %347 = vector.shape_cast %346 : vector<2x8xf32> to vector<2x8x1xf32>
    %cst_135 = arith.constant 3.200000e+01 : f32
    %348 = vector.broadcast %cst_135 : f32 to vector<2x8x1xf32>
    %349 = arith.divf %347, %348 : vector<2x8x1xf32>
    %350 = vector.broadcast %349 : vector<2x8x1xf32> to vector<2x8x32xf32>
    %351 = arith.subf %341, %350 : vector<2x8x32xf32>
    %352 = arith.mulf %351, %351 : vector<2x8x32xf32>
    %cst_136 = arith.constant dense<0.000000e+00> : vector<2x8xf32>
    %353 = vector.multi_reduction <add>, %352, %cst_136 [2] : vector<2x8x32xf32> to vector<2x8xf32>
    %354 = vector.shape_cast %353 : vector<2x8xf32> to vector<2x8x1xf32>
    %cst_137 = arith.constant 3.200000e+01 : f32
    %355 = vector.broadcast %cst_137 : f32 to vector<2x8x1xf32>
    %356 = arith.divf %354, %355 : vector<2x8x1xf32>
    %357 = vector.broadcast %349 : vector<2x8x1xf32> to vector<2x8x32xf32>
    %358 = arith.subf %341, %357 : vector<2x8x32xf32>
    %cst_138 = arith.constant 9.99999974E-6 : f32
    %359 = vector.broadcast %cst_138 : f32 to vector<2x8x1xf32>
    %360 = arith.addf %356, %359 : vector<2x8x1xf32>
    %361 = math.rsqrt %360 : vector<2x8x1xf32>
    %362 = vector.broadcast %361 : vector<2x8x1xf32> to vector<2x8x32xf32>
    %363 = arith.mulf %358, %362 : vector<2x8x32xf32>
    %364 = vector.shape_cast %343 : vector<1x32xf32> to vector<1x1x32xf32>
    %365 = vector.broadcast %364 : vector<1x1x32xf32> to vector<2x8x32xf32>
    %366 = arith.mulf %363, %365 : vector<2x8x32xf32>
    %367 = vector.shape_cast %345 : vector<1x32xf32> to vector<1x1x32xf32>
    %368 = vector.broadcast %367 : vector<1x1x32xf32> to vector<2x8x32xf32>
    %369 = arith.addf %366, %368 : vector<2x8x32xf32>
    %c0_139 = arith.constant 0 : index
    %c0_140 = arith.constant 0 : index
    %c0_141 = arith.constant 0 : index
    %370 = vector.load %arg12[%c0_139, %c0_140, %c0_141] : memref<1x64x32xbf16, #tpu.memory_space<vmem>>, vector<1x64x32xbf16>
    %371 = vector.shape_cast %370 : vector<1x64x32xbf16> to vector<64x32xbf16>
    %372 = arith.truncf %169 : vector<2x8x32xf32> to vector<2x8x32xbf16>
    %373 = vector.extract_strided_slice %371 {offsets = [0, 0], sizes = [32, 32], strides = [1, 1]} : vector<64x32xbf16> to vector<32x32xbf16>
    %374 = vector.shape_cast %372 : vector<2x8x32xbf16> to vector<16x32xbf16>
    %cst_142 = arith.constant dense<0.000000e+00> : vector<16x32xf32>
    %375 = tpu.matmul %374, %373, %cst_142 {dimension_numbers = #tpu.dot_dimension_numbers<[1], [0], [0], [1], [0, 0, 1, 1], [], []>} : vector<16x32xbf16>, vector<32x32xbf16>, vector<16x32xf32> -> vector<16x32xf32>
    %376 = vector.shape_cast %375 : vector<16x32xf32> to vector<2x8x32xf32>
    %377 = arith.truncf %369 : vector<2x8x32xf32> to vector<2x8x32xbf16>
    %378 = vector.extract_strided_slice %371 {offsets = [32, 0], sizes = [32, 32], strides = [1, 1]} : vector<64x32xbf16> to vector<32x32xbf16>
    %379 = vector.shape_cast %377 : vector<2x8x32xbf16> to vector<16x32xbf16>
    %cst_143 = arith.constant dense<0.000000e+00> : vector<16x32xf32>
    %380 = tpu.matmul %379, %378, %cst_143 {dimension_numbers = #tpu.dot_dimension_numbers<[1], [0], [0], [1], [0, 0, 1, 1], [], []>} : vector<16x32xbf16>, vector<32x32xbf16>, vector<16x32xf32> -> vector<16x32xf32>
    %381 = vector.shape_cast %380 : vector<16x32xf32> to vector<2x8x32xf32>
    %382 = arith.addf %376, %381 : vector<2x8x32xf32>
    %c0_144 = arith.constant 0 : index
    %c15 = arith.constant 15 : index
    %c0_145 = arith.constant 0 : index
    %383 = vector.load %arg15[%c0_144, %c15, %c0_145] : memref<1x23x32xf32, #tpu.memory_space<vmem>>, vector<1x1x32xf32>
    %384 = vector.shape_cast %383 : vector<1x1x32xf32> to vector<1x32xf32>
    %385 = vector.shape_cast %384 : vector<1x32xf32> to vector<1x1x32xf32>
    %386 = vector.broadcast %385 : vector<1x1x32xf32> to vector<2x8x32xf32>
    %387 = arith.addf %382, %386 : vector<2x8x32xf32>
    %cst_146 = arith.constant 0.000000e+00 : f32
    %388 = vector.broadcast %cst_146 : f32 to vector<2x8x32xf32>
    %389 = arith.maximumf %387, %388 : vector<2x8x32xf32>
    %c0_147 = arith.constant 0 : index
    %c22 = arith.constant 22 : index
    %c0_148 = arith.constant 0 : index
    %390 = vector.load %arg15[%c0_147, %c22, %c0_148] : memref<1x23x32xf32, #tpu.memory_space<vmem>>, vector<1x1x1xf32>
    %391 = vector.shape_cast %390 : vector<1x1x1xf32> to vector<1x1xf32>
    %c0_149 = arith.constant 0 : index
    %c16_150 = arith.constant 16 : index
    %c0_151 = arith.constant 0 : index
    %392 = vector.load %arg15[%c0_149, %c16_150, %c0_151] : memref<1x23x32xf32, #tpu.memory_space<vmem>>, vector<1x1x32xf32>
    %393 = vector.shape_cast %392 : vector<1x1x32xf32> to vector<1x32xf32>
    %394 = vector.shape_cast %393 : vector<1x32xf32> to vector<1x1x32xf32>
    %395 = vector.broadcast %394 : vector<1x1x32xf32> to vector<2x8x32xf32>
    %396 = arith.mulf %389, %395 : vector<2x8x32xf32>
    %cst_152 = arith.constant dense<0.000000e+00> : vector<2x8xf32>
    %397 = vector.multi_reduction <add>, %396, %cst_152 [2] : vector<2x8x32xf32> to vector<2x8xf32>
    %398 = vector.shape_cast %397 : vector<2x8xf32> to vector<2x8x1xf32>
    %399 = vector.shape_cast %391 : vector<1x1xf32> to vector<1x1x1xf32>
    %400 = vector.broadcast %399 : vector<1x1x1xf32> to vector<2x8x1xf32>
    %401 = arith.addf %398, %400 : vector<2x8x1xf32>
    %402 = arith.negf %401 : vector<2x8x1xf32>
    %403 = math.exp %402 : vector<2x8x1xf32>
    %cst_153 = arith.constant 1.000000e+00 : f32
    %404 = vector.broadcast %cst_153 : f32 to vector<2x8x1xf32>
    %405 = arith.addf %404, %403 : vector<2x8x1xf32>
    %406 = arith.divf %404, %405 : vector<2x8x1xf32>
    %c0_154 = arith.constant 0 : index
    %c0_155 = arith.constant 0 : index
    %c0_156 = arith.constant 0 : index
    %407 = vector.load %arg20[%c0_154, %c0_155, %c0_156] : memref<2x8x1xf32, #tpu.memory_space<vmem>>, vector<2x8x1xf32>
    %408 = arith.addf %407, %406 : vector<2x8x1xf32>
    %c0_157 = arith.constant 0 : index
    %c0_158 = arith.constant 0 : index
    %c0_159 = arith.constant 0 : index
    %409 = vector.load %arg20[%c0_157, %c0_158, %c0_159] : memref<2x8x1xf32, #tpu.memory_space<vmem>>, vector<2x8x1xf32>
    tpu.vector_store %arg20[%c0_157, %c0_158, %c0_159], %408 {strides = array<i32>} : memref<2x8x1xf32, #tpu.memory_space<vmem>>, vector<2x8x1xf32>,
    %cst_160 = arith.constant 1.000000e+00 : f32
    %410 = vector.broadcast %cst_160 : f32 to vector<2x8x1xf32>
    %411 = arith.subf %410, %406 : vector<2x8x1xf32>
    %412 = vector.broadcast %411 : vector<2x8x1xf32> to vector<2x8x32xf32>
    %413 = arith.mulf %412, %169 : vector<2x8x32xf32>
    %414 = vector.broadcast %406 : vector<2x8x1xf32> to vector<2x8x32xf32>
    %415 = arith.mulf %414, %369 : vector<2x8x32xf32>
    %416 = arith.addf %413, %415 : vector<2x8x32xf32>
    %c0_161 = arith.constant 0 : index
    %c17 = arith.constant 17 : index
    %c0_162 = arith.constant 0 : index
    %417 = vector.load %arg15[%c0_161, %c17, %c0_162] : memref<1x23x32xf32, #tpu.memory_space<vmem>>, vector<1x1x32xf32>
    %418 = vector.shape_cast %417 : vector<1x1x32xf32> to vector<1x32xf32>
    %c0_163 = arith.constant 0 : index
    %c18 = arith.constant 18 : index
    %c0_164 = arith.constant 0 : index
    %419 = vector.load %arg15[%c0_163, %c18, %c0_164] : memref<1x23x32xf32, #tpu.memory_space<vmem>>, vector<1x1x32xf32>
    %420 = vector.shape_cast %419 : vector<1x1x32xf32> to vector<1x32xf32>
    %cst_165 = arith.constant dense<0.000000e+00> : vector<2x8xf32>
    %421 = vector.multi_reduction <add>, %416, %cst_165 [2] : vector<2x8x32xf32> to vector<2x8xf32>
    %422 = vector.shape_cast %421 : vector<2x8xf32> to vector<2x8x1xf32>
    %cst_166 = arith.constant 3.200000e+01 : f32
    %423 = vector.broadcast %cst_166 : f32 to vector<2x8x1xf32>
    %424 = arith.divf %422, %423 : vector<2x8x1xf32>
    %425 = vector.broadcast %424 : vector<2x8x1xf32> to vector<2x8x32xf32>
    %426 = arith.subf %416, %425 : vector<2x8x32xf32>
    %427 = arith.mulf %426, %426 : vector<2x8x32xf32>
    %cst_167 = arith.constant dense<0.000000e+00> : vector<2x8xf32>
    %428 = vector.multi_reduction <add>, %427, %cst_167 [2] : vector<2x8x32xf32> to vector<2x8xf32>
    %429 = vector.shape_cast %428 : vector<2x8xf32> to vector<2x8x1xf32>
    %cst_168 = arith.constant 3.200000e+01 : f32
    %430 = vector.broadcast %cst_168 : f32 to vector<2x8x1xf32>
    %431 = arith.divf %429, %430 : vector<2x8x1xf32>
    %432 = vector.broadcast %424 : vector<2x8x1xf32> to vector<2x8x32xf32>
    %433 = arith.subf %416, %432 : vector<2x8x32xf32>
    %cst_169 = arith.constant 9.99999974E-6 : f32
    %434 = vector.broadcast %cst_169 : f32 to vector<2x8x1xf32>
    %435 = arith.addf %431, %434 : vector<2x8x1xf32>
    %436 = math.rsqrt %435 : vector<2x8x1xf32>
    %437 = vector.broadcast %436 : vector<2x8x1xf32> to vector<2x8x32xf32>
    %438 = arith.mulf %433, %437 : vector<2x8x32xf32>
    %439 = vector.shape_cast %418 : vector<1x32xf32> to vector<1x1x32xf32>
    %440 = vector.broadcast %439 : vector<1x1x32xf32> to vector<2x8x32xf32>
    %441 = arith.mulf %438, %440 : vector<2x8x32xf32>
    %442 = vector.shape_cast %420 : vector<1x32xf32> to vector<1x1x32xf32>
    %443 = vector.broadcast %442 : vector<1x1x32xf32> to vector<2x8x32xf32>
    %444 = arith.addf %441, %443 : vector<2x8x32xf32>
    %c0_170 = arith.constant 0 : index
    %c19 = arith.constant 19 : index
    %c0_171 = arith.constant 0 : index
    %445 = vector.load %arg15[%c0_170, %c19, %c0_171] : memref<1x23x32xf32, #tpu.memory_space<vmem>>, vector<1x1x32xf32>
    %446 = vector.shape_cast %445 : vector<1x1x32xf32> to vector<1x32xf32>
    %c0_172 = arith.constant 0 : index
    %c20 = arith.constant 20 : index
    %c0_173 = arith.constant 0 : index
    %447 = vector.load %arg15[%c0_172, %c20, %c0_173] : memref<1x23x32xf32, #tpu.memory_space<vmem>>, vector<1x1x32xf32>
    %448 = vector.shape_cast %447 : vector<1x1x32xf32> to vector<1x32xf32>
    %cst_174 = arith.constant dense<0.000000e+00> : vector<2x8xf32>
    %449 = vector.multi_reduction <add>, %444, %cst_174 [2] : vector<2x8x32xf32> to vector<2x8xf32>
    %450 = vector.shape_cast %449 : vector<2x8xf32> to vector<2x8x1xf32>
    %cst_175 = arith.constant 3.200000e+01 : f32
    %451 = vector.broadcast %cst_175 : f32 to vector<2x8x1xf32>
    %452 = arith.divf %450, %451 : vector<2x8x1xf32>
    %453 = vector.broadcast %452 : vector<2x8x1xf32> to vector<2x8x32xf32>
    %454 = arith.subf %444, %453 : vector<2x8x32xf32>
    %455 = arith.mulf %454, %454 : vector<2x8x32xf32>
    %cst_176 = arith.constant dense<0.000000e+00> : vector<2x8xf32>
    %456 = vector.multi_reduction <add>, %455, %cst_176 [2] : vector<2x8x32xf32> to vector<2x8xf32>
    %457 = vector.shape_cast %456 : vector<2x8xf32> to vector<2x8x1xf32>
    %cst_177 = arith.constant 3.200000e+01 : f32
    %458 = vector.broadcast %cst_177 : f32 to vector<2x8x1xf32>
    %459 = arith.divf %457, %458 : vector<2x8x1xf32>
    %460 = vector.broadcast %452 : vector<2x8x1xf32> to vector<2x8x32xf32>
    %461 = arith.subf %444, %460 : vector<2x8x32xf32>
    %cst_178 = arith.constant 9.99999974E-6 : f32
    %462 = vector.broadcast %cst_178 : f32 to vector<2x8x1xf32>
    %463 = arith.addf %459, %462 : vector<2x8x1xf32>
    %464 = math.rsqrt %463 : vector<2x8x1xf32>
    %465 = vector.broadcast %464 : vector<2x8x1xf32> to vector<2x8x32xf32>
    %466 = arith.mulf %461, %465 : vector<2x8x32xf32>
    %467 = vector.shape_cast %446 : vector<1x32xf32> to vector<1x1x32xf32>
    %468 = vector.broadcast %467 : vector<1x1x32xf32> to vector<2x8x32xf32>
    %469 = arith.mulf %466, %468 : vector<2x8x32xf32>
    %470 = vector.shape_cast %448 : vector<1x32xf32> to vector<1x1x32xf32>
    %471 = vector.broadcast %470 : vector<1x1x32xf32> to vector<2x8x32xf32>
    %472 = arith.addf %469, %471 : vector<2x8x32xf32>
    %473 = arith.truncf %472 : vector<2x8x32xf32> to vector<2x8x32xbf16>
    %c0_179 = arith.constant 0 : index
    %c0_180 = arith.constant 0 : index
    %c0_181 = arith.constant 0 : index
    %474 = vector.load %arg13[%c0_179, %c0_180, %c0_181] : memref<1x32x64xbf16, #tpu.memory_space<vmem>>, vector<1x32x64xbf16>
    %475 = vector.shape_cast %474 : vector<1x32x64xbf16> to vector<32x64xbf16>
    %476 = vector.shape_cast %473 : vector<2x8x32xbf16> to vector<16x32xbf16>
    %cst_182 = arith.constant dense<0.000000e+00> : vector<16x64xf32>
    %477 = tpu.matmul %476, %475, %cst_182 {dimension_numbers = #tpu.dot_dimension_numbers<[1], [0], [0], [1], [0, 0, 1, 1], [], []>} : vector<16x32xbf16>, vector<32x64xbf16>, vector<16x64xf32> -> vector<16x64xf32>
    %478 = vector.shape_cast %477 : vector<16x64xf32> to vector<2x8x64xf32>
    %c0_183 = arith.constant 0 : index
    %c0_184 = arith.constant 0 : index
    %c0_185 = arith.constant 0 : index
    %479 = vector.load %arg16[%c0_183, %c0_184, %c0_185] : memref<1x1x64xf32, #tpu.memory_space<vmem>>, vector<1x1x64xf32>
    %480 = vector.shape_cast %479 : vector<1x1x64xf32> to vector<1x64xf32>
    %481 = vector.shape_cast %480 : vector<1x64xf32> to vector<1x1x64xf32>
    %482 = vector.broadcast %481 : vector<1x1x64xf32> to vector<2x8x64xf32>
    %483 = arith.addf %478, %482 : vector<2x8x64xf32>
    %cst_186 = arith.constant 0.000000e+00 : f32
    %484 = vector.broadcast %cst_186 : f32 to vector<2x8x64xf32>
    %485 = arith.maximumf %483, %484 : vector<2x8x64xf32>
    %486 = arith.truncf %485 : vector<2x8x64xf32> to vector<2x8x64xbf16>
    %c0_187 = arith.constant 0 : index
    %c0_188 = arith.constant 0 : index
    %c0_189 = arith.constant 0 : index
    %487 = vector.load %arg14[%c0_187, %c0_188, %c0_189] : memref<1x64x32xbf16, #tpu.memory_space<vmem>>, vector<1x64x32xbf16>
    %488 = vector.shape_cast %487 : vector<1x64x32xbf16> to vector<64x32xbf16>
    %489 = vector.shape_cast %486 : vector<2x8x64xbf16> to vector<16x64xbf16>
    %cst_190 = arith.constant dense<0.000000e+00> : vector<16x32xf32>
    %490 = tpu.matmul %489, %488, %cst_190 {dimension_numbers = #tpu.dot_dimension_numbers<[1], [0], [0], [1], [0, 0, 1, 1], [], []>} : vector<16x64xbf16>, vector<64x32xbf16>, vector<16x32xf32> -> vector<16x32xf32>
    %491 = vector.shape_cast %490 : vector<16x32xf32> to vector<2x8x32xf32>
    %c0_191 = arith.constant 0 : index
    %c21 = arith.constant 21 : index
    %c0_192 = arith.constant 0 : index
    %492 = vector.load %arg15[%c0_191, %c21, %c0_192] : memref<1x23x32xf32, #tpu.memory_space<vmem>>, vector<1x1x32xf32>
    %493 = vector.shape_cast %492 : vector<1x1x32xf32> to vector<1x32xf32>
    %494 = vector.shape_cast %493 : vector<1x32xf32> to vector<1x1x32xf32>
    %495 = vector.broadcast %494 : vector<1x1x32xf32> to vector<2x8x32xf32>
    %496 = arith.addf %491, %495 : vector<2x8x32xf32>
    %497 = arith.addf %444, %496 : vector<2x8x32xf32>
    %c0_193 = arith.constant 0 : index
    %c0_194 = arith.constant 0 : index
    %c0_195 = arith.constant 0 : index
    %498 = vector.load %arg17[%c0_193, %c0_194, %c0_195] : memref<2x8x32xf32, #tpu.memory_space<vmem>>, vector<2x8x32xf32>
    tpu.vector_store %arg17[%c0_193, %c0_194, %c0_195], %497 {strides = array<i32>} : memref<2x8x32xf32, #tpu.memory_space<vmem>>, vector<2x8x32xf32>,
    %c1_i32 = arith.constant 1 : i32
    %499 = arith.cmpi eq, %arg1, %c1_i32 : i32
    %500 = arith.extui %499 : i1 to i32
    %c0_i32_196 = arith.constant 0 : i32
    %501 = arith.cmpi ne, %500, %c0_i32_196 : i32
    scf.if %501 {
      %c0_197 = arith.constant 0 : index
      %c0_198 = arith.constant 0 : index
      %c0_199 = arith.constant 0 : index
      %502 = vector.load %arg19[%c0_197, %c0_198, %c0_199] : memref<2x8x16xf32, #tpu.memory_space<vmem>>, vector<2x8x16xf32>
      %c0_200 = arith.constant 0 : index
      %c0_201 = arith.constant 0 : index
      %503 = vector.load %arg7[%c0_200, %c0_201] : memref<16x8xf32, #tpu.memory_space<vmem>>, vector<16x8xf32>
      %504 = vector.shape_cast %502 : vector<2x8x16xf32> to vector<16x16xf32>
      %cst_202 = arith.constant dense<0.000000e+00> : vector<16x8xf32>
      %505 = tpu.matmul %504, %503, %cst_202 {dimension_numbers = #tpu.dot_dimension_numbers<[1], [0], [0], [1], [0, 0, 1, 1], [], []>} : vector<16x16xf32>, vector<16x8xf32>, vector<16x8xf32> -> vector<16x8xf32>
      %506 = vector.shape_cast %505 : vector<16x8xf32> to vector<2x8x8xf32>
      %cst_203 = arith.constant 1.250000e-01 : f32
      %507 = vector.broadcast %cst_203 : f32 to vector<2x8x8xf32>
      %508 = arith.mulf %506, %507 : vector<2x8x8xf32>
      %c0_204 = arith.constant 0 : index
      %c0_205 = arith.constant 0 : index
      %c0_206 = arith.constant 0 : index
      %509 = vector.load %arg20[%c0_204, %c0_205, %c0_206] : memref<2x8x1xf32, #tpu.memory_space<vmem>>, vector<2x8x1xf32>
      %cst_207 = arith.constant 5.000000e-01 : f32
      %510 = vector.broadcast %cst_207 : f32 to vector<2x8x1xf32>
      %511 = arith.mulf %509, %510 : vector<2x8x1xf32>
      %512 = tpu.iota {dimensions = array<i32: 2>} : vector<2x8x2xi32>
      %513 = vector.broadcast %260 : vector<2x8x1xi32> to vector<2x8x2xi32>
      %514 = arith.cmpi eq, %512, %513 : vector<2x8x2xi32>
      %515 = arith.extui %514 : vector<2x8x2xi1> to vector<2x8x2xi32>
      %516 = arith.sitofp %515 : vector<2x8x2xi32> to vector<2x8x2xf32>
      %c0_208 = arith.constant 0 : index
      %c0_209 = arith.constant 0 : index
      %c0_210 = arith.constant 0 : index
      %517 = vector.load %arg6[%c0_208, %c0_209, %c0_210] : memref<2x8x1xf32, #tpu.memory_space<vmem>>, vector<2x8x1xf32>
      %518 = arith.mulf %517, %511 : vector<2x8x1xf32>
      %519 = vector.broadcast %518 : vector<2x8x1xf32> to vector<2x8x2xf32>
      %520 = arith.mulf %516, %519 : vector<2x8x2xf32>
      %521 = tpu.transpose %520, [0, 2, 1] : vector<2x8x2xf32> -> vector<2x2x8xf32>
      "tpu.trace_start"() <{level = 10 : i32, message = "bsw,bwn->bsn"}> : () -> ()
      %cst_211 = arith.constant dense<0.000000e+00> : vector<2x2x8xf32>
      %522 = tpu.matmul %521, %508, %cst_211 {dimension_numbers = #tpu.dot_dimension_numbers<[2], [1], [1], [2], [0, 0, 0, 1, 1, 2], [0], [0]>} : vector<2x2x8xf32>, vector<2x8x8xf32>, vector<2x2x8xf32> -> vector<2x2x8xf32>
      "tpu.trace_stop"() : () -> ()
      %cst_212 = arith.constant dense<0.000000e+00> : vector<2x2xf32>
      %523 = vector.multi_reduction <add>, %521, %cst_212 [2] : vector<2x2x8xf32> to vector<2x2xf32>
      %524 = vector.shape_cast %523 : vector<2x2xf32> to vector<2x2x1xf32>
      %cst_213 = arith.constant 9.99999971E-10 : f32
      %525 = vector.broadcast %cst_213 : f32 to vector<2x2x1xf32>
      %526 = arith.maximumf %524, %525 : vector<2x2x1xf32>
      %527 = tpu.reciprocal %526 {approx = true} : vector<2x2x1xf32> -> vector<2x2x1xf32>
      %528 = vector.broadcast %527 : vector<2x2x1xf32> to vector<2x2x8xf32>
      %529 = arith.mulf %522, %528 : vector<2x2x8xf32>
      %c0_214 = arith.constant 0 : index
      %c0_215 = arith.constant 0 : index
      %c0_216 = arith.constant 0 : index
      %530 = vector.load %arg18[%c0_214, %c0_215, %c0_216] : memref<2x2x8xf32, #tpu.memory_space<vmem>>, vector<2x2x8xf32>
      tpu.vector_store %arg18[%c0_214, %c0_215, %c0_216], %529 {strides = array<i32>} : memref<2x2x8xf32, #tpu.memory_space<vmem>>, vector<2x2x8xf32>,
    } else {
    }
    return
  }
  func.func @transform_0(%arg0: i32, %arg1: i32) -> (i32, i32, i32) {
    %c0_i32 = arith.constant 0 : i32
    %c0_i32_0 = arith.constant 0 : i32
    %c0_i32_1 = arith.constant 0 : i32
    return %arg0, %c0_i32, %c0_i32_0 : i32, i32, i32
  }
  func.func @transform_1(%arg0: i32, %arg1: i32) -> (i32, i32, i32) {
    %c0_i32 = arith.constant 0 : i32
    %c0_i32_0 = arith.constant 0 : i32
    %c0_i32_1 = arith.constant 0 : i32
    return %arg0, %c0_i32, %c0_i32_0 : i32, i32, i32
  }
  func.func @transform_2(%arg0: i32, %arg1: i32) -> (i32, i32, i32) {
    %c0_i32 = arith.constant 0 : i32
    %c0_i32_0 = arith.constant 0 : i32
    %c0_i32_1 = arith.constant 0 : i32
    return %arg0, %c0_i32, %c0_i32_0 : i32, i32, i32
  }
  func.func @transform_3(%arg0: i32, %arg1: i32) -> (i32, i32, i32) {
    %c0_i32 = arith.constant 0 : i32
    %c0_i32_0 = arith.constant 0 : i32
    %c0_i32_1 = arith.constant 0 : i32
    return %arg0, %c0_i32, %c0_i32_0 : i32, i32, i32
  }
  func.func @transform_4(%arg0: i32, %arg1: i32) -> (i32, i32, i32) {
    %c0_i32 = arith.constant 0 : i32
    %c0_i32_0 = arith.constant 0 : i32
    %c0_i32_1 = arith.constant 0 : i32
    return %arg0, %c0_i32, %c0_i32_0 : i32, i32, i32
  }
  func.func @transform_5(%arg0: i32, %arg1: i32) -> (i32, i32) {
    %c0_i32 = arith.constant 0 : i32
    %c0_i32_0 = arith.constant 0 : i32
    %c0_i32_1 = arith.constant 0 : i32
    return %c0_i32, %c0_i32_0 : i32, i32
  }
  func.func @transform_6(%arg0: i32, %arg1: i32) -> (i32, i32, i32) {
    %c0_i32 = arith.constant 0 : i32
    %c0_i32_0 = arith.constant 0 : i32
    %c0_i32_1 = arith.constant 0 : i32
    return %arg1, %c0_i32, %c0_i32_0 : i32, i32, i32
  }
  func.func @transform_7(%arg0: i32, %arg1: i32) -> (i32, i32, i32) {
    %c0_i32 = arith.constant 0 : i32
    %c0_i32_0 = arith.constant 0 : i32
    %c0_i32_1 = arith.constant 0 : i32
    return %arg1, %c0_i32, %c0_i32_0 : i32, i32, i32
  }
  func.func @transform_8(%arg0: i32, %arg1: i32) -> (i32, i32, i32) {
    %c0_i32 = arith.constant 0 : i32
    %c0_i32_0 = arith.constant 0 : i32
    %c0_i32_1 = arith.constant 0 : i32
    return %arg1, %c0_i32, %c0_i32_0 : i32, i32, i32
  }
  func.func @transform_9(%arg0: i32, %arg1: i32) -> (i32, i32, i32) {
    %c0_i32 = arith.constant 0 : i32
    %c0_i32_0 = arith.constant 0 : i32
    %c0_i32_1 = arith.constant 0 : i32
    return %arg1, %c0_i32, %c0_i32_0 : i32, i32, i32
  }
  func.func @transform_10(%arg0: i32, %arg1: i32) -> (i32, i32, i32) {
    %c0_i32 = arith.constant 0 : i32
    %c0_i32_0 = arith.constant 0 : i32
    %c0_i32_1 = arith.constant 0 : i32
    return %arg1, %c0_i32, %c0_i32_0 : i32, i32, i32
  }
  func.func @transform_11(%arg0: i32, %arg1: i32) -> (i32, i32, i32) {
    %c0_i32 = arith.constant 0 : i32
    %c0_i32_0 = arith.constant 0 : i32
    %c0_i32_1 = arith.constant 0 : i32
    return %arg1, %c0_i32, %c0_i32_0 : i32, i32, i32
  }
  func.func @transform_12(%arg0: i32, %arg1: i32) -> (i32, i32, i32) {
    %c0_i32 = arith.constant 0 : i32
    %c0_i32_0 = arith.constant 0 : i32
    %c0_i32_1 = arith.constant 0 : i32
    return %arg1, %c0_i32, %c0_i32_0 : i32, i32, i32
  }
  func.func @transform_13(%arg0: i32, %arg1: i32) -> (i32, i32, i32) {
    %c0_i32 = arith.constant 0 : i32
    %c0_i32_0 = arith.constant 0 : i32
    %c0_i32_1 = arith.constant 0 : i32
    return %arg1, %c0_i32, %c0_i32_0 : i32, i32, i32
  }
  func.func @transform_14(%arg0: i32, %arg1: i32) -> (i32, i32, i32) {
    %c0_i32 = arith.constant 0 : i32
    %c0_i32_0 = arith.constant 0 : i32
    %c0_i32_1 = arith.constant 0 : i32
    return %arg1, %c0_i32, %c0_i32_0 : i32, i32, i32
  }
  func.func @transform_15(%arg0: i32, %arg1: i32) -> (i32, i32, i32) {
    %c0_i32 = arith.constant 0 : i32
    %c0_i32_0 = arith.constant 0 : i32
    %c0_i32_1 = arith.constant 0 : i32
    return %arg0, %c0_i32, %c0_i32_0 : i32, i32, i32
  }
  func.func @transform_16(%arg0: i32, %arg1: i32) -> (i32, i32, i32) {
    %c0_i32 = arith.constant 0 : i32
    %c0_i32_0 = arith.constant 0 : i32
    %c0_i32_1 = arith.constant 0 : i32
    return %arg0, %c0_i32, %c0_i32_0 : i32, i32, i32
  }
}

</mosaic_0001>

<llo_original>
// kernel: tpu_custom_call.1
$region0: #{tpu_custom_call.1}
  #allocation0 [shape = 'u32[]', space=smem, size = 0x4, offset = 0x4, fixed_abs, tag = 'smem constant byte address 0x4 - core index']
  #allocation1 [shape = 'u32[72,128]{1,0:T(1,128)}', space=vmem, size = 0x9000, scoped, tag = 'internal scratch']
  #allocation2 [shape = 'f32[2,8,16]{2,1,0:T(8,128)}', space=vmem, size = 0x2000, scoped, tag = 'scratch operand']
  #allocation3 [shape = 'f32[2,8,1]{2,1,0:T(8,128)}', space=vmem, size = 0x2000, scoped, tag = 'scratch operand']
  #allocation4 [shape = 'f32[2,8,32]{2,1,0:T(8,128)}', space=vmem, size = 0x2000, scoped, tag = 'scratch operand']
  %s0 = inlined_call_operand.vmem [shape: f32[2,8,32], index: 0, kind: input, shape index: {}]
  %s1 = inlined_call_operand.vmem [shape: bf16[2,16,32], index: 1, kind: input, shape index: {}]
  %s2 = inlined_call_operand.vmem [shape: bf16[2,8,8], index: 2, kind: input, shape index: {}]
  %s3 = inlined_call_operand.vmem [shape: s32[2,8,1], index: 3, kind: input, shape index: {}]
  %s4 = inlined_call_operand.vmem [shape: f32[2,8,1], index: 4, kind: input, shape index: {}]
  %s5 = inlined_call_operand.vmem [shape: f32[16,8], index: 5, kind: input, shape index: {}]
  %s6 = inlined_call_operand.vmem [shape: bf16[2,32,96], index: 6, kind: input, shape index: {}]
  %s7 = inlined_call_operand.vmem [shape: bf16[2,32,32], index: 7, kind: input, shape index: {}]
  %s8 = inlined_call_operand.vmem [shape: bf16[2,32,32], index: 8, kind: input, shape index: {}]
  %s9 = inlined_call_operand.vmem [shape: bf16[2,32,64], index: 9, kind: input, shape index: {}]
  %s10 = inlined_call_operand.vmem [shape: bf16[2,64,32], index: 10, kind: input, shape index: {}]
  %s11 = inlined_call_operand.vmem [shape: bf16[2,32,64], index: 11, kind: input, shape index: {}]
  %s12 = inlined_call_operand.vmem [shape: bf16[2,64,32], index: 12, kind: input, shape index: {}]
  %s13 = inlined_call_operand.vmem [shape: f32[2,23,32], index: 13, kind: input, shape index: {}]
  %s14 = inlined_call_operand.vmem [shape: f32[2,1,64], index: 14, kind: input, shape index: {}]
  %s15 = inlined_call_operand.hbm [shape: f32[2,8,32], index: 15, kind: output, shape index: {0}]
  %s16 = inlined_call_operand.hbm [shape: f32[2,2,8], index: 16, kind: output, shape index: {1}]
  %17 = xla_tuple %s15, %s16
  %s18 = sld [smem:[#allocation0]]
  $region109: #{tpu_custom_call.1} parent=0
    _
  %s20 = ssub.s32 1, %s18
  %s21 = scalar_select 0, %s20, %s18
  $region1: #{tpu_custom_call.1} parent=0
    #allocation5 [shape = 'u8[8192]{0}', space=vmem, size = 0x2000, scoped, tag = 'output window, operand 0, single buffered']
    #allocation6 [shape = 's32[2]{0}', space=sflag, size = 0x8, scoped, tag = 'scoped memory for tpu_custom_call.1']
    #allocation7 [shape = 'u8[2048]{0}', space=vmem, size = 0x800, scoped, tag = 'output window, operand 1, single buffered']
    #allocation8 [shape = 's32[1]{0}', space=sflag, size = 0x4, scoped, tag = 'scoped memory for tpu_custom_call.1']
    %22 = vsyncpa [#allocation6], 0
    %23 = vsyncpa [#allocation8], 0
    loop: start=0, step=1, limit=4
    $region2: #{tpu_custom_call.1} parent=1 // loop_pre_header
      _
    $region3: #{tpu_custom_call.1} parent=1 // loop_header
      %s25 = sphi 0, %s29
      %p26 = scmp.ge.s32.totalorder %s25, 4
      %s32 = sphi 0, %s44
      %s33 = sphi 0, %s40
      %s34 = sphi 0, %s32
      %s35 = sphi 0, %s33
      %s36 = sphi 0, %s34
      %s37 = sphi 0, %s35
      %s47 = sphi 0, %s49
      %s50 = sphi 0, %s47
      %s51 = sphi 0, %s50
      %s67 = sphi 0, %s51
      %s73 = sphi 0, %s75
      %s76 = sphi 0, %s73
      %s77 = sphi 0, %s76
      %s93 = sphi 0, %s77
      %s99 = sphi 0, %s101
      %s102 = sphi 0, %s99
      %s103 = sphi 0, %s102
      %s119 = sphi 0, %s103
      %s125 = sphi 0, %s127
      %s128 = sphi 0, %s125
      %s129 = sphi 0, %s128
      %s145 = sphi 0, %s129
      %s151 = sphi 0, %s153
      %s154 = sphi 0, %s151
      %s155 = sphi 0, %s154
      %s171 = sphi 0, %s155
      %s175 = sphi 0, %s175
      %s177 = sphi 0, %s175
      %s178 = sphi 0, %s177
      %s192 = sphi 0, %s178
      %s198 = sphi 0, %s200
      %s201 = sphi 0, %s198
      %s202 = sphi 0, %s201
      %s218 = sphi 0, %s202
      %s224 = sphi 0, %s226
      %s227 = sphi 0, %s224
      %s228 = sphi 0, %s227
      %s244 = sphi 0, %s228
      %s250 = sphi 0, %s252
      %s253 = sphi 0, %s250
      %s254 = sphi 0, %s253
      %s270 = sphi 0, %s254
      %s276 = sphi 0, %s278
      %s279 = sphi 0, %s276
      %s280 = sphi 0, %s279
      %s296 = sphi 0, %s280
      %s302 = sphi 0, %s304
      %s305 = sphi 0, %s302
      %s306 = sphi 0, %s305
      %s322 = sphi 0, %s306
      %s328 = sphi 0, %s330
      %s331 = sphi 0, %s328
      %s332 = sphi 0, %s331
      %s348 = sphi 0, %s332
      %s354 = sphi 0, %s356
      %s357 = sphi 0, %s354
      %s358 = sphi 0, %s357
      %s374 = sphi 0, %s358
      %s380 = sphi 0, %s382
      %s383 = sphi 0, %s380
      %s384 = sphi 0, %s383
      %s400 = sphi 0, %s384
      %s406 = sphi 0, %s408
      %s409 = sphi 0, %s406
      %s410 = sphi 0, %s409
      %s426 = sphi 0, %s410
      %s432 = sphi 0, %s434
      %s435 = sphi 0, %s432
      %s436 = sphi 0, %s435
      %s452 = sphi 0, %s436
      %s458 = sphi 0, %s460
      %s461 = sphi 0, %s458
      %s462 = sphi 0, %s461
      %s478 = sphi 0, %s462
    $region4: #{tpu_custom_call.1} parent=1 // loop_header_branch
      %28 = sbr.rel (%p26) target = $region8
    $region5: #{tpu_custom_call.1} parent=1 // loop_body
      %s30 = ssub.s32 %s25, 1
      %s31 = ssub.s32 %s25, 2
      %s38 = sadd.s32 1, %s33
      %p39 = scmp.ge.s32.totalorder %s38, 2
      %s40 = scalar_select %p39, 0, %s38
      %s41 = sadd.s32 1, %s32
      %s42 = scalar_select %p39, %s41, %s32
      %p43 = scmp.ge.s32.totalorder %s42, 1
      %s44 = scalar_select %p43, 0, %s42
      %s45 = ssub.s32 %s32, %s44
      %p46 = scmp.eq.s32.totalorder %s45, 0
      %s48 = sadd.s32 %s47, 1
      %s49 = scalar_select %p46, %s47, %s48
      %p52 = pneg %p46
      %p53 = scmp.eq.s32.totalorder %s25, 1
      %p54 = por %p52, %p53
      %p55 = scmp.ne.s32.totalorder %s47, %s50
      %p56 = scmp.eq.s32.totalorder %s25, 0
      %p57 = por %p55, %p56
      %p58 = scmp.ne.s32.totalorder %s47, %s50
      %p59 = scmp.eq.s32.totalorder %s30, 1
      %p60 = por %p58, %p59
      %p61 = scmp.ne.s32.totalorder %s50, %s51
      %p62 = scmp.eq.s32.totalorder %s30, 0
      %p63 = por %p61, %p62
      %p64 = scmp.ne.s32.totalorder %s50, %s51
      %p65 = scmp.eq.s32.totalorder %s31, 1
      %p66 = por %p64, %p65
      %p68 = scmp.ne.s32.totalorder %s51, %s67
      %p69 = scmp.eq.s32.totalorder %s31, 0
      %p70 = por %p68, %p69
      %s71 = ssub.s32 %s32, %s44
      %p72 = scmp.eq.s32.totalorder %s71, 0
      %s74 = sadd.s32 %s73, 1
      %s75 = scalar_select %p72, %s73, %s74
      %p78 = pneg %p72
      %p79 = scmp.eq.s32.totalorder %s25, 1
      %p80 = por %p78, %p79
      %p81 = scmp.ne.s32.totalorder %s73, %s76
      %p82 = scmp.eq.s32.totalorder %s25, 0
      %p83 = por %p81, %p82
      %p84 = scmp.ne.s32.totalorder %s73, %s76
      %p85 = scmp.eq.s32.totalorder %s30, 1
      %p86 = por %p84, %p85
      %p87 = scmp.ne.s32.totalorder %s76, %s77
      %p88 = scmp.eq.s32.totalorder %s30, 0
      %p89 = por %p87, %p88
      %p90 = scmp.ne.s32.totalorder %s76, %s77
      %p91 = scmp.eq.s32.totalorder %s31, 1
      %p92 = por %p90, %p91
      %p94 = scmp.ne.s32.totalorder %s77, %s93
      %p95 = scmp.eq.s32.totalorder %s31, 0
      %p96 = por %p94, %p95
      %s97 = ssub.s32 %s32, %s44
      %p98 = scmp.eq.s32.totalorder %s97, 0
      %s100 = sadd.s32 %s99, 1
      %s101 = scalar_select %p98, %s99, %s100
      %p104 = pneg %p98
      %p105 = scmp.eq.s32.totalorder %s25, 1
      %p106 = por %p104, %p105
      %p107 = scmp.ne.s32.totalorder %s99, %s102
      %p108 = scmp.eq.s32.totalorder %s25, 0
      %p109 = por %p107, %p108
      %p110 = scmp.ne.s32.totalorder %s99, %s102
      %p111 = scmp.eq.s32.totalorder %s30, 1
      %p112 = por %p110, %p111
      %p113 = scmp.ne.s32.totalorder %s102, %s103
      %p114 = scmp.eq.s32.totalorder %s30, 0
      %p115 = por %p113, %p114
      %p116 = scmp.ne.s32.totalorder %s102, %s103
      %p117 = scmp.eq.s32.totalorder %s31, 1
      %p118 = por %p116, %p117
      %p120 = scmp.ne.s32.totalorder %s103, %s119
      %p121 = scmp.eq.s32.totalorder %s31, 0
      %p122 = por %p120, %p121
      %s123 = ssub.s32 %s32, %s44
      %p124 = scmp.eq.s32.totalorder %s123, 0
      %s126 = sadd.s32 %s125, 1
      %s127 = scalar_select %p124, %s125, %s126
      %p130 = pneg %p124
      %p131 = scmp.eq.s32.totalorder %s25, 1
      %p132 = por %p130, %p131
      %p133 = scmp.ne.s32.totalorder %s125, %s128
      %p134 = scmp.eq.s32.totalorder %s25, 0
      %p135 = por %p133, %p134
      %p136 = scmp.ne.s32.totalorder %s125, %s128
      %p137 = scmp.eq.s32.totalorder %s30, 1
      %p138 = por %p136, %p137
      %p139 = scmp.ne.s32.totalorder %s128, %s129
      %p140 = scmp.eq.s32.totalorder %s30, 0
      %p141 = por %p139, %p140
      %p142 = scmp.ne.s32.totalorder %s128, %s129
      %p143 = scmp.eq.s32.totalorder %s31, 1
      %p144 = por %p142, %p143
      %p146 = scmp.ne.s32.totalorder %s129, %s145
      %p147 = scmp.eq.s32.totalorder %s31, 0
      %p148 = por %p146, %p147
      %s149 = ssub.s32 %s32, %s44
      %p150 = scmp.eq.s32.totalorder %s149, 0
      %s152 = sadd.s32 %s151, 1
      %s153 = scalar_select %p150, %s151, %s152
      %p156 = pneg %p150
      %p157 = scmp.eq.s32.totalorder %s25, 1
      %p158 = por %p156, %p157
      %p159 = scmp.ne.s32.totalorder %s151, %s154
      %p160 = scmp.eq.s32.totalorder %s25, 0
      %p161 = por %p159, %p160
      %p162 = scmp.ne.s32.totalorder %s151, %s154
      %p163 = scmp.eq.s32.totalorder %s30, 1
      %p164 = por %p162, %p163
      %p165 = scmp.ne.s32.totalorder %s154, %s155
      %p166 = scmp.eq.s32.totalorder %s30, 0
      %p167 = por %p165, %p166
      %p168 = scmp.ne.s32.totalorder %s154, %s155
      %p169 = scmp.eq.s32.totalorder %s31, 1
      %p170 = por %p168, %p169
      %p172 = scmp.ne.s32.totalorder %s155, %s171
      %p173 = scmp.eq.s32.totalorder %s31, 0
      %p174 = por %p172, %p173
      %s176 = sadd.s32 %s175, 1
      %p179 = scmp.eq.s32.totalorder %s25, 1
      %p180 = scmp.ne.s32.totalorder %s175, %s177
      %p181 = scmp.eq.s32.totalorder %s25, 0
      %p182 = por %p180, %p181
      %p183 = scmp.ne.s32.totalorder %s175, %s177
      %p184 = scmp.eq.s32.totalorder %s30, 1
      %p185 = por %p183, %p184
      %p186 = scmp.ne.s32.totalorder %s177, %s178
      %p187 = scmp.eq.s32.totalorder %s30, 0
      %p188 = por %p186, %p187
      %p189 = scmp.ne.s32.totalorder %s177, %s178
      %p190 = scmp.eq.s32.totalorder %s31, 1
      %p191 = por %p189, %p190
      %p193 = scmp.ne.s32.totalorder %s178, %s192
      %p194 = scmp.eq.s32.totalorder %s31, 0
      %p195 = por %p193, %p194
      %s196 = ssub.s32 %s33, %s40
      %p197 = scmp.eq.s32.totalorder %s196, 0
      %s199 = sadd.s32 %s198, 1
      %s200 = scalar_select %p197, %s198, %s199
      %p203 = pneg %p197
      %p204 = scmp.eq.s32.totalorder %s25, 1
      %p205 = por %p203, %p204
      %p206 = scmp.ne.s32.totalorder %s198, %s201
      %p207 = scmp.eq.s32.totalorder %s25, 0
      %p208 = por %p206, %p207
      %p209 = scmp.ne.s32.totalorder %s198, %s201
      %p210 = scmp.eq.s32.totalorder %s30, 1
      %p211 = por %p209, %p210
      %p212 = scmp.ne.s32.totalorder %s201, %s202
      %p213 = scmp.eq.s32.totalorder %s30, 0
      %p214 = por %p212, %p213
      %p215 = scmp.ne.s32.totalorder %s201, %s202
      %p216 = scmp.eq.s32.totalorder %s31, 1
      %p217 = por %p215, %p216
      %p219 = scmp.ne.s32.totalorder %s202, %s218
      %p220 = scmp.eq.s32.totalorder %s31, 0
      %p221 = por %p219, %p220
      %s222 = ssub.s32 %s33, %s40
      %p223 = scmp.eq.s32.totalorder %s222, 0
      %s225 = sadd.s32 %s224, 1
      %s226 = scalar_select %p223, %s224, %s225
      %p229 = pneg %p223
      %p230 = scmp.eq.s32.totalorder %s25, 1
      %p231 = por %p229, %p230
      %p232 = scmp.ne.s32.totalorder %s224, %s227
      %p233 = scmp.eq.s32.totalorder %s25, 0
      %p234 = por %p232, %p233
      %p235 = scmp.ne.s32.totalorder %s224, %s227
      %p236 = scmp.eq.s32.totalorder %s30, 1
      %p237 = por %p235, %p236
      %p238 = scmp.ne.s32.totalorder %s227, %s228
      %p239 = scmp.eq.s32.totalorder %s30, 0
      %p240 = por %p238, %p239
      %p241 = scmp.ne.s32.totalorder %s227, %s228
      %p242 = scmp.eq.s32.totalorder %s31, 1
      %p243 = por %p241, %p242
      %p245 = scmp.ne.s32.totalorder %s228, %s244
      %p246 = scmp.eq.s32.totalorder %s31, 0
      %p247 = por %p245, %p246
      %s248 = ssub.s32 %s33, %s40
      %p249 = scmp.eq.s32.totalorder %s248, 0
      %s251 = sadd.s32 %s250, 1
      %s252 = scalar_select %p249, %s250, %s251
      %p255 = pneg %p249
      %p256 = scmp.eq.s32.totalorder %s25, 1
      %p257 = por %p255, %p256
      %p258 = scmp.ne.s32.totalorder %s250, %s253
      %p259 = scmp.eq.s32.totalorder %s25, 0
      %p260 = por %p258, %p259
      %p261 = scmp.ne.s32.totalorder %s250, %s253
      %p262 = scmp.eq.s32.totalorder %s30, 1
      %p263 = por %p261, %p262
      %p264 = scmp.ne.s32.totalorder %s253, %s254
      %p265 = scmp.eq.s32.totalorder %s30, 0
      %p266 = por %p264, %p265
      %p267 = scmp.ne.s32.totalorder %s253, %s254
      %p268 = scmp.eq.s32.totalorder %s31, 1
      %p269 = por %p267, %p268
      %p271 = scmp.ne.s32.totalorder %s254, %s270
      %p272 = scmp.eq.s32.totalorder %s31, 0
      %p273 = por %p271, %p272
      %s274 = ssub.s32 %s33, %s40
      %p275 = scmp.eq.s32.totalorder %s274, 0
      %s277 = sadd.s32 %s276, 1
      %s278 = scalar_select %p275, %s276, %s277
      %p281 = pneg %p275
      %p282 = scmp.eq.s32.totalorder %s25, 1
      %p283 = por %p281, %p282
      %p284 = scmp.ne.s32.totalorder %s276, %s279
      %p285 = scmp.eq.s32.totalorder %s25, 0
      %p286 = por %p284, %p285
      %p287 = scmp.ne.s32.totalorder %s276, %s279
      %p288 = scmp.eq.s32.totalorder %s30, 1
      %p289 = por %p287, %p288
      %p290 = scmp.ne.s32.totalorder %s279, %s280
      %p291 = scmp.eq.s32.totalorder %s30, 0
      %p292 = por %p290, %p291
      %p293 = scmp.ne.s32.totalorder %s279, %s280
      %p294 = scmp.eq.s32.totalorder %s31, 1
      %p295 = por %p293, %p294
      %p297 = scmp.ne.s32.totalorder %s280, %s296
      %p298 = scmp.eq.s32.totalorder %s31, 0
      %p299 = por %p297, %p298
      %s300 = ssub.s32 %s33, %s40
      %p301 = scmp.eq.s32.totalorder %s300, 0
      %s303 = sadd.s32 %s302, 1
      %s304 = scalar_select %p301, %s302, %s303
      %p307 = pneg %p301
      %p308 = scmp.eq.s32.totalorder %s25, 1
      %p309 = por %p307, %p308
      %p310 = scmp.ne.s32.totalorder %s302, %s305
      %p311 = scmp.eq.s32.totalorder %s25, 0
      %p312 = por %p310, %p311
      %p313 = scmp.ne.s32.totalorder %s302, %s305
      %p314 = scmp.eq.s32.totalorder %s30, 1
      %p315 = por %p313, %p314
      %p316 = scmp.ne.s32.totalorder %s305, %s306
      %p317 = scmp.eq.s32.totalorder %s30, 0
      %p318 = por %p316, %p317
      %p319 = scmp.ne.s32.totalorder %s305, %s306
      %p320 = scmp.eq.s32.totalorder %s31, 1
      %p321 = por %p319, %p320
      %p323 = scmp.ne.s32.totalorder %s306, %s322
      %p324 = scmp.eq.s32.totalorder %s31, 0
      %p325 = por %p323, %p324
      %s326 = ssub.s32 %s33, %s40
      %p327 = scmp.eq.s32.totalorder %s326, 0
      %s329 = sadd.s32 %s328, 1
      %s330 = scalar_select %p327, %s328, %s329
      %p333 = pneg %p327
      %p334 = scmp.eq.s32.totalorder %s25, 1
      %p335 = por %p333, %p334
      %p336 = scmp.ne.s32.totalorder %s328, %s331
      %p337 = scmp.eq.s32.totalorder %s25, 0
      %p338 = por %p336, %p337
      %p339 = scmp.ne.s32.totalorder %s328, %s331
      %p340 = scmp.eq.s32.totalorder %s30, 1
      %p341 = por %p339, %p340
      %p342 = scmp.ne.s32.totalorder %s331, %s332
      %p343 = scmp.eq.s32.totalorder %s30, 0
      %p344 = por %p342, %p343
      %p345 = scmp.ne.s32.totalorder %s331, %s332
      %p346 = scmp.eq.s32.totalorder %s31, 1
      %p347 = por %p345, %p346
      %p349 = scmp.ne.s32.totalorder %s332, %s348
      %p350 = scmp.eq.s32.totalorder %s31, 0
      %p351 = por %p349, %p350
      %s352 = ssub.s32 %s33, %s40
      %p353 = scmp.eq.s32.totalorder %s352, 0
      %s355 = sadd.s32 %s354, 1
      %s356 = scalar_select %p353, %s354, %s355
      %p359 = pneg %p353
      %p360 = scmp.eq.s32.totalorder %s25, 1
      %p361 = por %p359, %p360
      %p362 = scmp.ne.s32.totalorder %s354, %s357
      %p363 = scmp.eq.s32.totalorder %s25, 0
      %p364 = por %p362, %p363
      %p365 = scmp.ne.s32.totalorder %s354, %s357
      %p366 = scmp.eq.s32.totalorder %s30, 1
      %p367 = por %p365, %p366
      %p368 = scmp.ne.s32.totalorder %s357, %s358
      %p369 = scmp.eq.s32.totalorder %s30, 0
      %p370 = por %p368, %p369
      %p371 = scmp.ne.s32.totalorder %s357, %s358
      %p372 = scmp.eq.s32.totalorder %s31, 1
      %p373 = por %p371, %p372
      %p375 = scmp.ne.s32.totalorder %s358, %s374
      %p376 = scmp.eq.s32.totalorder %s31, 0
      %p377 = por %p375, %p376
      %s378 = ssub.s32 %s33, %s40
      %p379 = scmp.eq.s32.totalorder %s378, 0
      %s381 = sadd.s32 %s380, 1
      %s382 = scalar_select %p379, %s380, %s381
      %p385 = pneg %p379
      %p386 = scmp.eq.s32.totalorder %s25, 1
      %p387 = por %p385, %p386
      %p388 = scmp.ne.s32.totalorder %s380, %s383
      %p389 = scmp.eq.s32.totalorder %s25, 0
      %p390 = por %p388, %p389
      %p391 = scmp.ne.s32.totalorder %s380, %s383
      %p392 = scmp.eq.s32.totalorder %s30, 1
      %p393 = por %p391, %p392
      %p394 = scmp.ne.s32.totalorder %s383, %s384
      %p395 = scmp.eq.s32.totalorder %s30, 0
      %p396 = por %p394, %p395
      %p397 = scmp.ne.s32.totalorder %s383, %s384
      %p398 = scmp.eq.s32.totalorder %s31, 1
      %p399 = por %p397, %p398
      %p401 = scmp.ne.s32.totalorder %s384, %s400
      %p402 = scmp.eq.s32.totalorder %s31, 0
      %p403 = por %p401, %p402
      %s404 = ssub.s32 %s33, %s40
      %p405 = scmp.eq.s32.totalorder %s404, 0
      %s407 = sadd.s32 %s406, 1
      %s408 = scalar_select %p405, %s406, %s407
      %p411 = pneg %p405
      %p412 = scmp.eq.s32.totalorder %s25, 1
      %p413 = por %p411, %p412
      %p414 = scmp.ne.s32.totalorder %s406, %s409
      %p415 = scmp.eq.s32.totalorder %s25, 0
      %p416 = por %p414, %p415
      %p417 = scmp.ne.s32.totalorder %s406, %s409
      %p418 = scmp.eq.s32.totalorder %s30, 1
      %p419 = por %p417, %p418
      %p420 = scmp.ne.s32.totalorder %s409, %s410
      %p421 = scmp.eq.s32.totalorder %s30, 0
      %p422 = por %p420, %p421
      %p423 = scmp.ne.s32.totalorder %s409, %s410
      %p424 = scmp.eq.s32.totalorder %s31, 1
      %p425 = por %p423, %p424
      %p427 = scmp.ne.s32.totalorder %s410, %s426
      %p428 = scmp.eq.s32.totalorder %s31, 0
      %p429 = por %p427, %p428
      %s430 = ssub.s32 %s32, %s44
      %p431 = scmp.eq.s32.totalorder %s430, 0
      %s433 = sadd.s32 %s432, 1
      %s434 = scalar_select %p431, %s432, %s433
      %p437 = pneg %p431
      %p438 = scmp.eq.s32.totalorder %s25, 1
      %p439 = por %p437, %p438
      %p440 = scmp.ne.s32.totalorder %s432, %s435
      %p441 = scmp.eq.s32.totalorder %s25, 0
      %p442 = por %p440, %p441
      %p443 = scmp.ne.s32.totalorder %s432, %s435
      %p444 = scmp.eq.s32.totalorder %s30, 1
      %p445 = por %p443, %p444
      %p446 = scmp.ne.s32.totalorder %s435, %s436
      %p447 = scmp.eq.s32.totalorder %s30, 0
      %p448 = por %p446, %p447
      %p449 = scmp.ne.s32.totalorder %s435, %s436
      %p450 = scmp.eq.s32.totalorder %s31, 1
      %p451 = por %p449, %p450
      %p453 = scmp.ne.s32.totalorder %s436, %s452
      %p454 = scmp.eq.s32.totalorder %s31, 0
      %p455 = por %p453, %p454
      %s456 = ssub.s32 %s32, %s44
      %p457 = scmp.eq.s32.totalorder %s456, 0
      %s459 = sadd.s32 %s458, 1
      %s460 = scalar_select %p457, %s458, %s459
      %p463 = pneg %p457
      %p464 = scmp.eq.s32.totalorder %s25, 1
      %p465 = por %p463, %p464
      %p466 = scmp.ne.s32.totalorder %s458, %s461
      %p467 = scmp.eq.s32.totalorder %s25, 0
      %p468 = por %p466, %p467
      %p469 = scmp.ne.s32.totalorder %s458, %s461
      %p470 = scmp.eq.s32.totalorder %s30, 1
      %p471 = por %p469, %p470
      %p472 = scmp.ne.s32.totalorder %s461, %s462
      %p473 = scmp.eq.s32.totalorder %s30, 0
      %p474 = por %p472, %p473
      %p475 = scmp.ne.s32.totalorder %s461, %s462
      %p476 = scmp.eq.s32.totalorder %s31, 1
      %p477 = por %p475, %p476
      %p479 = scmp.ne.s32.totalorder %s462, %s478
      %p480 = scmp.eq.s32.totalorder %s31, 0
      %p481 = por %p479, %p480
      %p482 = scmp.le.s32.totalorder 1, %s25
      %p483 = scmp.lt.s32.totalorder %s25, 3
      %p484 = pnand %p482, %p483
      %p485 = pneg %p484
      // Predicated region
      $region9: #{tpu_custom_call.1} parent=5 // pred_check
        _
      $region10: #{tpu_custom_call.1} parent=5 // pred_check_branch
        %487 = sbr.rel (%p484) target = $region12
      $region11: #{tpu_custom_call.1} parent=5 // pred_region
        %s488 = ssub.s32 %s25, 1
        // Predicated region
        $region13: #{tpu_custom_call.1} parent=11 // pred_check
          %p489 = pneg %p63
        $region14: #{tpu_custom_call.1} parent=11 // pred_check_branch
          %491 = sbr.rel (%p489) target = $region16
        $region15: #{tpu_custom_call.1} parent=11 // pred_region
          %s492 = smul.u32 2, %s34
          %p493 = scmp.lt.s32.totalorder %s492, 1
          %s494 = scalar_select %p493, %s492, 1
          %s495 = smul.addr %s494, 8
          %s496 = scalar_lea.vmem %s0, %s495
          %s497 = smul.u32 2, %s34
        $region16: #{tpu_custom_call.1} parent=11 // pred_fallthru
          _
        // Predicated region
        $region17: #{tpu_custom_call.1} parent=11 // pred_check
          %p498 = pneg %p89
        $region18: #{tpu_custom_call.1} parent=11 // pred_check_branch
          %500 = sbr.rel (%p498) target = $region20
        $region19: #{tpu_custom_call.1} parent=11 // pred_region
          %s501 = smul.u32 2, %s34
          %p502 = scmp.lt.s32.totalorder %s501, 1
          %s503 = scalar_select %p502, %s501, 1
          %s504 = smul.addr %s503, 2
          %s505 = smul.addr %s504, 4
          %s506 = scalar_lea.vmem %s1, %s505
          %s507 = smul.u32 2, %s34
        $region20: #{tpu_custom_call.1} parent=11 // pred_fallthru
          _
        // Predicated region
        $region21: #{tpu_custom_call.1} parent=11 // pred_check
          %p508 = pneg %p115
        $region22: #{tpu_custom_call.1} parent=11 // pred_check_branch
          %510 = sbr.rel (%p508) target = $region24
        $region23: #{tpu_custom_call.1} parent=11 // pred_region
          %s511 = smul.u32 2, %s34
          %p512 = scmp.lt.s32.totalorder %s511, 1
          %s513 = scalar_select %p512, %s511, 1
          %s514 = smul.addr %s513, 4
          %s515 = scalar_lea.vmem %s2, %s514
          %s516 = smul.u32 2, %s34
        $region24: #{tpu_custom_call.1} parent=11 // pred_fallthru
          _
        // Predicated region
        $region25: #{tpu_custom_call.1} parent=11 // pred_check
          %p517 = pneg %p141
        $region26: #{tpu_custom_call.1} parent=11 // pred_check_branch
          %519 = sbr.rel (%p517) target = $region28
        $region27: #{tpu_custom_call.1} parent=11 // pred_region
          %s520 = smul.u32 2, %s34
          %p521 = scmp.lt.s32.totalorder %s520, 1
          %s522 = scalar_select %p521, %s520, 1
          %s523 = smul.addr %s522, 8
          %s524 = scalar_lea.vmem %s3, %s523
          %s525 = smul.u32 2, %s34
        $region28: #{tpu_custom_call.1} parent=11 // pred_fallthru
          _
        // Predicated region
        $region29: #{tpu_custom_call.1} parent=11 // pred_check
          %p526 = pneg %p167
        $region30: #{tpu_custom_call.1} parent=11 // pred_check_branch
          %528 = sbr.rel (%p526) target = $region32
        $region31: #{tpu_custom_call.1} parent=11 // pred_region
          %s529 = smul.u32 2, %s34
          %p530 = scmp.lt.s32.totalorder %s529, 1
          %s531 = scalar_select %p530, %s529, 1
          %s532 = smul.addr %s531, 8
          %s533 = scalar_lea.vmem %s4, %s532
          %s534 = smul.u32 2, %s34
        $region32: #{tpu_custom_call.1} parent=11 // pred_fallthru
          _
        // Predicated region
        $region33: #{tpu_custom_call.1} parent=11 // pred_check
          %p535 = pneg %p188
        $region34: #{tpu_custom_call.1} parent=11 // pred_check_branch
          %537 = sbr.rel (%p535) target = $region36
        $region35: #{tpu_custom_call.1} parent=11 // pred_region
          _
        $region36: #{tpu_custom_call.1} parent=11 // pred_fallthru
          _
      $region12: #{tpu_custom_call.1} parent=5 // pred_fallthru
        _
      %p538 = scmp.lt.s32.totalorder %s25, 2
      // Predicated region
      $region37: #{tpu_custom_call.1} parent=5 // pred_check
        %p539 = pneg %p538
      $region38: #{tpu_custom_call.1} parent=5 // pred_check_branch
        %541 = sbr.rel (%p539) target = $region40
      $region39: #{tpu_custom_call.1} parent=5 // pred_region
        // Predicated region
        $region41: #{tpu_custom_call.1} parent=39 // pred_check
          %p542 = pneg %p208
        $region42: #{tpu_custom_call.1} parent=39 // pred_check_branch
          %544 = sbr.rel (%p542) target = $region44
        $region43: #{tpu_custom_call.1} parent=39 // pred_region
          %p545 = scmp.lt.s32.totalorder %s33, 1
          %s546 = scalar_select %p545, %s33, 1
          %s547 = smul.addr %s546, 4
          %s548 = smul.addr %s547, 4
          %s549 = scalar_lea.vmem %s6, %s548
        $region44: #{tpu_custom_call.1} parent=39 // pred_fallthru
          _
        // Predicated region
        $region45: #{tpu_custom_call.1} parent=39 // pred_check
          %p550 = pneg %p234
        $region46: #{tpu_custom_call.1} parent=39 // pred_check_branch
          %552 = sbr.rel (%p550) target = $region48
        $region47: #{tpu_custom_call.1} parent=39 // pred_region
          %p553 = scmp.lt.s32.totalorder %s33, 1
          %s554 = scalar_select %p553, %s33, 1
          %s555 = smul.addr %s554, 4
          %s556 = smul.addr %s555, 4
          %s557 = scalar_lea.vmem %s7, %s556
        $region48: #{tpu_custom_call.1} parent=39 // pred_fallthru
          _
        // Predicated region
        $region49: #{tpu_custom_call.1} parent=39 // pred_check
          %p558 = pneg %p260
        $region50: #{tpu_custom_call.1} parent=39 // pred_check_branch
          %560 = sbr.rel (%p558) target = $region52
        $region51: #{tpu_custom_call.1} parent=39 // pred_region
          %p561 = scmp.lt.s32.totalorder %s33, 1
          %s562 = scalar_select %p561, %s33, 1
          %s563 = smul.addr %s562, 4
          %s564 = smul.addr %s563, 4
          %s565 = scalar_lea.vmem %s8, %s564
        $region52: #{tpu_custom_call.1} parent=39 // pred_fallthru
          _
        // Predicated region
        $region53: #{tpu_custom_call.1} parent=39 // pred_check
          %p566 = pneg %p286
        $region54: #{tpu_custom_call.1} parent=39 // pred_check_branch
          %568 = sbr.rel (%p566) target = $region56
        $region55: #{tpu_custom_call.1} parent=39 // pred_region
          %p569 = scmp.lt.s32.totalorder %s33, 1
          %s570 = scalar_select %p569, %s33, 1
          %s571 = smul.addr %s570, 4
          %s572 = smul.addr %s571, 4
          %s573 = scalar_lea.vmem %s9, %s572
        $region56: #{tpu_custom_call.1} parent=39 // pred_fallthru
          _
        // Predicated region
        $region57: #{tpu_custom_call.1} parent=39 // pred_check
          %p574 = pneg %p312
        $region58: #{tpu_custom_call.1} parent=39 // pred_check_branch
          %576 = sbr.rel (%p574) target = $region60
        $region59: #{tpu_custom_call.1} parent=39 // pred_region
          %p577 = scmp.lt.s32.totalorder %s33, 1
          %s578 = scalar_select %p577, %s33, 1
          %s579 = smul.addr %s578, 8
          %s580 = smul.addr %s579, 4
          %s581 = scalar_lea.vmem %s10, %s580
        $region60: #{tpu_custom_call.1} parent=39 // pred_fallthru
          _
        // Predicated region
        $region61: #{tpu_custom_call.1} parent=39 // pred_check
          %p582 = pneg %p338
        $region62: #{tpu_custom_call.1} parent=39 // pred_check_branch
          %584 = sbr.rel (%p582) target = $region64
        $region63: #{tpu_custom_call.1} parent=39 // pred_region
          %p585 = scmp.lt.s32.totalorder %s33, 1
          %s586 = scalar_select %p585, %s33, 1
          %s587 = smul.addr %s586, 4
          %s588 = smul.addr %s587, 4
          %s589 = scalar_lea.vmem %s11, %s588
        $region64: #{tpu_custom_call.1} parent=39 // pred_fallthru
          _
        // Predicated region
        $region65: #{tpu_custom_call.1} parent=39 // pred_check
          %p590 = pneg %p364
        $region66: #{tpu_custom_call.1} parent=39 // pred_check_branch
          %592 = sbr.rel (%p590) target = $region68
        $region67: #{tpu_custom_call.1} parent=39 // pred_region
          %p593 = scmp.lt.s32.totalorder %s33, 1
          %s594 = scalar_select %p593, %s33, 1
          %s595 = smul.addr %s594, 8
          %s596 = smul.addr %s595, 4
          %s597 = scalar_lea.vmem %s12, %s596
        $region68: #{tpu_custom_call.1} parent=39 // pred_fallthru
          _
        // Predicated region
        $region69: #{tpu_custom_call.1} parent=39 // pred_check
          %p598 = pneg %p390
        $region70: #{tpu_custom_call.1} parent=39 // pred_check_branch
          %600 = sbr.rel (%p598) target = $region72
        $region71: #{tpu_custom_call.1} parent=39 // pred_region
          %p601 = scmp.lt.s32.totalorder %s33, 1
          %s602 = scalar_select %p601, %s33, 1
          %s603 = smul.addr %s602, 3
          %s604 = smul.addr %s603, 8
          %s605 = scalar_lea.vmem %s13, %s604
        $region72: #{tpu_custom_call.1} parent=39 // pred_fallthru
          _
        // Predicated region
        $region73: #{tpu_custom_call.1} parent=39 // pred_check
          %p606 = pneg %p416
        $region74: #{tpu_custom_call.1} parent=39 // pred_check_branch
          %608 = sbr.rel (%p606) target = $region76
        $region75: #{tpu_custom_call.1} parent=39 // pred_region
          %p609 = scmp.lt.s32.totalorder %s33, 1
          %s610 = scalar_select %p609, %s33, 1
          %s611 = scalar_lea.vmem %s14, %s610
        $region76: #{tpu_custom_call.1} parent=39 // pred_fallthru
          _
      $region40: #{tpu_custom_call.1} parent=5 // pred_fallthru
        _
      %p612 = scmp.le.s32.totalorder 1, %s25
      %p613 = scmp.lt.s32.totalorder %s25, 3
      %p614 = pnand %p612, %p613
      %p615 = pneg %p614
      // Predicated region
      $region77: #{tpu_custom_call.1} parent=5 // pred_check
        _
      $region78: #{tpu_custom_call.1} parent=5 // pred_check_branch
        %617 = sbr.rel (%p614) target = $region80
      $region79: #{tpu_custom_call.1} parent=5 // pred_region
        %s618 = ssub.s32 %s25, 1
        %s619 = smul.u32 2, %s34
        %p620 = scmp.lt.s32.totalorder %s619, 1
        %s621 = scalar_select %p620, %s619, 1
        %s622 = smul.addr %s621, 8
        %s623 = scalar_lea.vmem %s0, %s622
        %p624 = pneg %p63
        %p625 = pneg %p60
        %s626 = smul.u32 2, %s34
        %p627 = scmp.lt.s32.totalorder %s626, 1
        %s628 = scalar_select %p627, %s626, 1
        %s629 = smul.addr %s628, 2
        %s630 = smul.addr %s629, 4
        %s631 = scalar_lea.vmem %s1, %s630
        %p632 = pneg %p89
        %p633 = pneg %p86
        %s634 = smul.u32 2, %s34
        %p635 = scmp.lt.s32.totalorder %s634, 1
        %s636 = scalar_select %p635, %s634, 1
        %s637 = smul.addr %s636, 4
        %s638 = scalar_lea.vmem %s2, %s637
        %p639 = pneg %p115
        %p640 = pneg %p112
        %s641 = smul.u32 2, %s34
        %p642 = scmp.lt.s32.totalorder %s641, 1
        %s643 = scalar_select %p642, %s641, 1
        %s644 = smul.addr %s643, 8
        %s645 = scalar_lea.vmem %s3, %s644
        %p646 = pneg %p141
        %p647 = pneg %p138
        %s648 = smul.u32 2, %s34
        %p649 = scmp.lt.s32.totalorder %s648, 1
        %s650 = scalar_select %p649, %s648, 1
        %s651 = smul.addr %s650, 8
        %s652 = scalar_lea.vmem %s4, %s651
        %p653 = pneg %p167
        %p654 = pneg %p164
        %p655 = pneg %p188
        %p656 = pneg %p185
        %p657 = scmp.lt.s32.totalorder %s35, 1
        %s658 = scalar_select %p657, %s35, 1
        %s659 = smul.addr %s658, 4
        %s660 = smul.addr %s659, 4
        %s661 = scalar_lea.vmem %s6, %s660
        %p662 = pneg %p214
        %p663 = pneg %p211
        %p664 = scmp.lt.s32.totalorder %s35, 1
        %s665 = scalar_select %p664, %s35, 1
        %s666 = smul.addr %s665, 4
        %s667 = smul.addr %s666, 4
        %s668 = scalar_lea.vmem %s7, %s667
        %p669 = pneg %p240
        %p670 = pneg %p237
        %p671 = scmp.lt.s32.totalorder %s35, 1
        %s672 = scalar_select %p671, %s35, 1
        %s673 = smul.addr %s672, 4
        %s674 = smul.addr %s673, 4
        %s675 = scalar_lea.vmem %s8, %s674
        %p676 = pneg %p266
        %p677 = pneg %p263
        %p678 = scmp.lt.s32.totalorder %s35, 1
        %s679 = scalar_select %p678, %s35, 1
        %s680 = smul.addr %s679, 4
        %s681 = smul.addr %s680, 4
        %s682 = scalar_lea.vmem %s9, %s681
        %p683 = pneg %p292
        %p684 = pneg %p289
        %p685 = scmp.lt.s32.totalorder %s35, 1
        %s686 = scalar_select %p685, %s35, 1
        %s687 = smul.addr %s686, 8
        %s688 = smul.addr %s687, 4
        %s689 = scalar_lea.vmem %s10, %s688
        %p690 = pneg %p318
        %p691 = pneg %p315
        %p692 = scmp.lt.s32.totalorder %s35, 1
        %s693 = scalar_select %p692, %s35, 1
        %s694 = smul.addr %s693, 4
        %s695 = smul.addr %s694, 4
        %s696 = scalar_lea.vmem %s11, %s695
        %p697 = pneg %p344
        %p698 = pneg %p341
        %p699 = scmp.lt.s32.totalorder %s35, 1
        %s700 = scalar_select %p699, %s35, 1
        %s701 = smul.addr %s700, 8
        %s702 = smul.addr %s701, 4
        %s703 = scalar_lea.vmem %s12, %s702
        %p704 = pneg %p370
        %p705 = pneg %p367
        %p706 = scmp.lt.s32.totalorder %s35, 1
        %s707 = scalar_select %p706, %s35, 1
        %s708 = smul.addr %s707, 3
        %s709 = smul.addr %s708, 8
        %s710 = scalar_lea.vmem %s13, %s709
        %p711 = pneg %p396
        %p712 = pneg %p393
        %p713 = scmp.lt.s32.totalorder %s35, 1
        %s714 = scalar_select %p713, %s35, 1
        %s715 = scalar_lea.vmem %s14, %s714
        %p716 = pneg %p422
        %p717 = pneg %p419
        %p718 = pneg %p448
        %p719 = pneg %p445
        %p720 = pneg %p474
        %p721 = pneg %p471
        %s722 = smul.u32 2, %s34
        %p723 = scmp.lt.s32.totalorder %s722, 1
        %s724 = scalar_select %p723, %s722, 1
        %s725 = smul.addr %s724, 8
        %s726 = scalar_lea.vmem %s0, %s725
        %s727 = smul.u32 2, %s34
        %s728 = smul.u32 2, %s34
        %p729 = scmp.lt.s32.totalorder %s728, 1
        %s730 = scalar_select %p729, %s728, 1
        %s731 = smul.addr %s730, 2
        %s732 = smul.addr %s731, 4
        %s733 = scalar_lea.vmem %s1, %s732
        %s734 = smul.u32 2, %s34
        %s735 = smul.u32 2, %s34
        %p736 = scmp.lt.s32.totalorder %s735, 1
        %s737 = scalar_select %p736, %s735, 1
        %s738 = smul.addr %s737, 4
        %s739 = scalar_lea.vmem %s2, %s738
        %s740 = smul.u32 2, %s34
        %s741 = smul.u32 2, %s34
        %p742 = scmp.lt.s32.totalorder %s741, 1
        %s743 = scalar_select %p742, %s741, 1
        %s744 = smul.addr %s743, 8
        %s745 = scalar_lea.vmem %s3, %s744
        %s746 = smul.u32 2, %s34
        %s747 = smul.u32 2, %s34
        %p748 = scmp.lt.s32.totalorder %s747, 1
        %s749 = scalar_select %p748, %s747, 1
        %s750 = smul.addr %s749, 8
        %s751 = scalar_lea.vmem %s4, %s750
        %s752 = smul.u32 2, %s34
        %p753 = scmp.lt.s32.totalorder %s35, 1
        %s754 = scalar_select %p753, %s35, 1
        %s755 = smul.addr %s754, 4
        %s756 = smul.addr %s755, 4
        %s757 = scalar_lea.vmem %s6, %s756
        %p758 = scmp.lt.s32.totalorder %s35, 1
        %s759 = scalar_select %p758, %s35, 1
        %s760 = smul.addr %s759, 4
        %s761 = smul.addr %s760, 4
        %s762 = scalar_lea.vmem %s7, %s761
        %p763 = scmp.lt.s32.totalorder %s35, 1
        %s764 = scalar_select %p763, %s35, 1
        %s765 = smul.addr %s764, 4
        %s766 = smul.addr %s765, 4
        %s767 = scalar_lea.vmem %s8, %s766
        %p768 = scmp.lt.s32.totalorder %s35, 1
        %s769 = scalar_select %p768, %s35, 1
        %s770 = smul.addr %s769, 4
        %s771 = smul.addr %s770, 4
        %s772 = scalar_lea.vmem %s9, %s771
        %p773 = scmp.lt.s32.totalorder %s35, 1
        %s774 = scalar_select %p773, %s35, 1
        %s775 = smul.addr %s774, 8
        %s776 = smul.addr %s775, 4
        %s777 = scalar_lea.vmem %s10, %s776
        %p778 = scmp.lt.s32.totalorder %s35, 1
        %s779 = scalar_select %p778, %s35, 1
        %s780 = smul.addr %s779, 4
        %s781 = smul.addr %s780, 4
        %s782 = scalar_lea.vmem %s11, %s781
        %p783 = scmp.lt.s32.totalorder %s35, 1
        %s784 = scalar_select %p783, %s35, 1
        %s785 = smul.addr %s784, 8
        %s786 = smul.addr %s785, 4
        %s787 = scalar_lea.vmem %s12, %s786
        %p788 = scmp.lt.s32.totalorder %s35, 1
        %s789 = scalar_select %p788, %s35, 1
        %s790 = smul.addr %s789, 3
        %s791 = smul.addr %s790, 8
        %s792 = scalar_lea.vmem %s13, %s791
        %p793 = scmp.lt.s32.totalorder %s35, 1
        %s794 = scalar_select %p793, %s35, 1
        %s795 = scalar_lea.vmem %s14, %s794
        %s796 = smul.u32 2, %s34
        %s797 = smul.u32 2, %s34
        %p799 = scmp.eq.s32.totalorder %s35, 0
        // Predicated region
        $region81: #{tpu_custom_call.1} parent=79 // pred_check
          %p800 = pneg %p799
        $region82: #{tpu_custom_call.1} parent=79 // pred_check_branch
          %802 = sbr.rel (%p800) target = $region84
        $region83: #{tpu_custom_call.1} parent=79 // pred_region
          %v803 = vld [vmem:[%s726] sm:$0xff]
          %v804 = vld [vmem:[%s726 + $0x8] sm:$0xff]
          %vm805 = vcmask 261120
          %806 = vst.msk [vmem:[#allocation5] sm:$0xff] %vm805, %v803
          %807 = vst.msk [vmem:[#allocation5 + $0x8] sm:$0xff] %vm805, %v804
          %vm808 = vcmask 130048
          %809 = vst.msk [vmem:[#allocation2] sm:$0xff] %vm808, 0.0
          %810 = vst.msk [vmem:[#allocation2 + $0x8] sm:$0xff] %vm808, 0.0
          %vm811 = vcmask 7168
          %812 = vst.msk [vmem:[#allocation3] sm:$0xff] %vm811, 0.0
          %813 = vst.msk [vmem:[#allocation3 + $0x8] sm:$0xff] %vm811, 0.0
        $region84: #{tpu_custom_call.1} parent=79 // pred_fallthru
          _
        %v814 = vld [vmem:[#allocation5] sm:$0xff]
        %v815 = vld [vmem:[#allocation5 + $0x8] sm:$0xff]
        %v816 = vld [vmem:[%s739] sm:$0xf]
        %v817 = vld [vmem:[%s739 + $0x4] sm:$0xf]
        %v818 = vunpack.c.l.bf16 %v816
        %v819 = vunpack.c.l.bf16 %v817
        %v820 = vld [vmem:[%s792 + $0x4] sm:$0x1]
        %v821 = vld [vmem:[%s792 + $0x5] sm:$0x1]
        %vm822 = vcmask 261120
        %v823 = vsel %vm822, %v814, 0.0
        %824 = vadd.xlane.f32.xlu0 %v823
        %v825 = vpop.xlane.xlu0 %824
        %v826 = vsel %vm822, %v815, 0.0
        %827 = vadd.xlane.f32.xlu0 %v826
        %v828 = vpop.xlane.xlu0 %827
        %v829 = vrcp.pop 32.0
        %v830 = vmul.f32 32.0, %v829
        %v831 = vsub.f32 1.0, %v830
        %v832 = vmul.f32 %v829, %v831
        %v833 = vadd.f32 %v829, %v832
        %vm834 = vweird.f32 %v829
        %v835 = vsel %vm834, %v829, %v833
        %v836 = vmul.f32 %v825, %v835
        %v837 = vmul.f32 %v828, %v835
        %v838 = vsub.f32 %v814, %v836
        %v839 = vsub.f32 %v815, %v837
        %v840 = vmul.f32 %v838, %v838
        %v841 = vmul.f32 %v839, %v839
        %v842 = vsel %vm822, %v840, 0.0
        %843 = vadd.xlane.f32.xlu0 %v842
        %v844 = vpop.xlane.xlu0 %843
        %v845 = vsel %vm822, %v841, 0.0
        %846 = vadd.xlane.f32.xlu0 %v845
        %v847 = vpop.xlane.xlu0 %846
        %v848 = vmul.f32 %v844, %v835
        %v849 = vmul.f32 %v847, %v835
        %v850 = vadd.f32 %v848, 1e-05
        %v851 = vadd.f32 %v849, 1e-05
        %v852 = vrsqrt.pop %v850
        %v853 = vmul.f32 %v852, %v850
        %v854 = vmul.f32 %v853, %v852
        %v855 = vmul.f32 0.5, %v854
        %v856 = vsub.f32 1.5, %v855
        %v857 = vmul.f32 %v852, %v856
        %vm858 = vweird.f32 %v850
        %vm859 = vweird.f32 %v852
        %vm860 = vmor %vm858, %vm859
        %v861 = vsel %vm860, %v852, %v857
        %v862 = vrsqrt.pop %v851
        %v863 = vmul.f32 %v862, %v851
        %v864 = vmul.f32 %v863, %v862
        %v865 = vmul.f32 0.5, %v864
        %v866 = vsub.f32 1.5, %v865
        %v867 = vmul.f32 %v862, %v866
        %vm868 = vweird.f32 %v851
        %vm869 = vweird.f32 %v862
        %vm870 = vmor %vm868, %vm869
        %v871 = vsel %vm870, %v862, %v867
        %v872 = vmul.f32 %v838, %v861
        %v873 = vmul.f32 %v839, %v871
        %v874 = vperm.slane %v820, 0
        %v875 = vmul.f32 %v872, %v874
        %v876 = vmul.f32 %v873, %v874
        %v877 = vperm.slane %v821, 0
        %v878 = vadd.f32 %v875, %v877
        %v879 = vadd.f32 %v876, %v877
        %v880 = vpack.c.bf16 %v878, %v878
        %v881 = vpack.c.bf16 %v879, %v879
        %v882 = vld [vmem:[%s757] sm:$0xf]
        %v883 = vld [vmem:[%s757 + $0x4] sm:$0xf]
        %v884 = vld [vmem:[%s757 + $0x8] sm:$0xf]
        %v885 = vld [vmem:[%s757 + $0xc] sm:$0xf]
        %v888 = vunpack.c.l.b16 %v880
        %v889 = vunpack.c.l.b16 %v881
        %v890 = vpack.c.b16 %v889, %v888
        %v895 = vunpack.c.l.b16 %v882
        %v896 = vunpack.c.l.b16 %v883
        %v897 = vunpack.c.l.b16 %v884
        %v898 = vunpack.c.l.b16 %v885
        %v899 = vpack.c.b16 %v896, %v895
        %v900 = vpack.c.b16 %v898, %v897
        %v904 = vsel %vm822, %v890, 0
        %906 = vmatpush.bf16.msra.mxu0 0
        %907 = vmatpush.bf16.msra.mxu0 0
        %908 = vmatpush.bf16.msra.mxu0 0
        %909 = vmatpush.bf16.msra.mxu0 0
        %910 = vmatpush.bf16.msra.mxu0 0
        %911 = vmatpush.bf16.msra.mxu0 0
        %912 = vmatpush.bf16.msra.mxu0 %v900
        %913 = vmatpush.bf16.msra.mxu0 %v899
        %914 = vmatmul.bf16.gmra.mxu0 %v904
        %v915 = vpop.f32.mrf.mxu0
        %v916 = vadd.f32 0.0, %v915
        %v917 = vpop.f32.mrf.mxu0
        %v918 = vadd.f32 0.0, %v917
        %919 = vdwg.mxu0
        %v920 = vld [vmem:[%s792] sm:$0x1]
        %v921 = vperm.slane %v920, 0
        %v922 = vadd.f32 %v916, %v921
        %v923 = vadd.f32 %v918, %v921
        %v924 = vpack.c.bf16 %v922, %v922
        %v925 = vpack.c.bf16 %v923, %v923
        %v926 = vld [vmem:[%s792 + $0x1] sm:$0x1]
        %v927 = vperm.slane %v926, 0
        %929 = vrot.lane.b32.xlu0 %v927, 32
        %v930 = vpop.permute.xlu0 %929
        %v932 = vadd.f32 %v916, %v930
        %v933 = vadd.f32 %v918, %v930
        %v934 = vpack.c.bf16 %v932, %v932
        %v935 = vpack.c.bf16 %v933, %v933
        %v936 = vld [vmem:[%s792 + $0x2] sm:$0x1]
        %v937 = vperm.slane %v936, 0
        %939 = vrot.lane.b32.xlu0 %v937, 64
        %v940 = vpop.permute.xlu0 %939
        %v942 = vadd.f32 %v916, %v940
        %v943 = vadd.f32 %v918, %v940
        %v944 = vpack.c.bf16 %v942, %v942
        %v945 = vpack.c.bf16 %v943, %v943
        %v946 = vld [vmem:[%s762] sm:$0xf]
        %v947 = vld [vmem:[%s762 + $0x4] sm:$0xf]
        %v948 = vld [vmem:[%s762 + $0x8] sm:$0xf]
        %v949 = vld [vmem:[%s762 + $0xc] sm:$0xf]
        %v951 = vunpack.c.l.b16 %v934
        %v952 = vpack.c.b16 %v951, %v951
        %953 = vrot.lane.b32.xlu0 %v952, 96
        %v954 = vpop.permute.xlu0 %953
        %vm955 = vcmask 64512
        %v957 = vsel %vm955, %v924, 0
        %v960 = vsel %vm955, %v954, 0
        %962 = vmatpush.bf16.xpose.msra.mxu0 0
        %963 = vmatpush.bf16.xpose.msra.mxu0 0
        %964 = vmatpush.bf16.xpose.msra.mxu0 0
        %965 = vmatpush.bf16.xpose.msra.mxu0 0
        %966 = vmatpush.bf16.xpose.msra.mxu0 0
        %967 = vmatpush.bf16.xpose.msra.mxu0 0
        %968 = vmatpush.bf16.xpose.msra.mxu0 0
        %969 = vmatpush.bf16.xpose.msra.mxu0 %v960
        %970 = vmatmul.bf16.gmra.mxu0 %v957
        %v971 = vpop.f32.mrf.mxu0
        %v972 = vadd.f32 0.0, %v971
        %v973 = vpop.f32.mrf.mxu0
        %974 = vdwg.mxu0
        %v976 = vunpack.c.l.b16 %v935
        %v977 = vpack.c.b16 %v976, %v976
        %978 = vrot.lane.b32.xlu0 %v977, 96
        %v979 = vpop.permute.xlu0 %978
        %v981 = vsel %vm955, %v925, 0
        %v984 = vsel %vm955, %v979, 0
        %986 = vmatpush.bf16.xpose.msra.mxu0 0
        %987 = vmatpush.bf16.xpose.msra.mxu0 0
        %988 = vmatpush.bf16.xpose.msra.mxu0 0
        %989 = vmatpush.bf16.xpose.msra.mxu0 0
        %990 = vmatpush.bf16.xpose.msra.mxu0 0
        %991 = vmatpush.bf16.xpose.msra.mxu0 0
        %992 = vmatpush.bf16.xpose.msra.mxu0 0
        %993 = vmatpush.bf16.xpose.msra.mxu0 %v984
        %994 = vmatmul.bf16.gmra.mxu0 %v981
        %v995 = vpop.f32.mrf.mxu0
        %v996 = vadd.f32 0.0, %v995
        %v997 = vpop.f32.mrf.mxu0
        %998 = vdwg.mxu0
        %v999 = vmul.f32 %v972, 0.35355338
        %v1000 = vmul.f32 %v996, 0.35355338
        %v1001 = vadd.f32 %v999, %v818
        %v1002 = vadd.f32 %v1000, %v819
        %v1003 = vsel %vm955, %v1001, -inf
        %1004 = vmax.xlane.f32.xlu0 %v1003
        %v1005 = vpop.xlane.xlu0 %1004
        %v1006 = vsel %vm955, %v1002, -inf
        %1007 = vmax.xlane.f32.xlu0 %v1006
        %v1008 = vpop.xlane.xlu0 %1007
        %v1009 = vsub.f32 %v1001, %v1005
        %v1010 = vsub.f32 %v1002, %v1008
        %v1011 = vmul.f32 %v1009, 1.442695
        %v1012 = vpow.pop %v1011
        %v1013 = vmul.f32 %v1010, 1.442695
        %v1014 = vpow.pop %v1013
        %v1015 = vsel %vm955, %v1012, 0.0
        %1016 = vadd.xlane.f32.xlu0 %v1015
        %v1017 = vpop.xlane.xlu0 %1016
        %v1018 = vsel %vm955, %v1014, 0.0
        %1019 = vadd.xlane.f32.xlu0 %v1018
        %v1020 = vpop.xlane.xlu0 %1019
        %v1021 = vrcp.pop %v1017
        %v1022 = vrcp.pop %v1020
        %v1023 = vmul.f32 %v1012, %v1021
        %v1024 = vmul.f32 %v1014, %v1022
        %v1025 = vpack.c.bf16 %v1023, %v1023
        %v1026 = vpack.c.bf16 %v1024, %v1024
        %v1028 = vunpack.c.l.b16 %v944
        %v1029 = vpack.c.b16 %v1028, %v1028
        %1030 = vrot.lane.b32.xlu0 %v1029, 64
        %v1031 = vpop.permute.xlu0 %1030
        %v1033 = vsel %vm955, %v1025, 0
        %vm1035 = vcmask 1043456
        %v1037 = vsel %vm1035, %v1031, 0
        %1039 = vmatpush.bf16.msra.mxu0 0
        %1040 = vmatpush.bf16.msra.mxu0 0
        %1041 = vmatpush.bf16.msra.mxu0 0
        %1042 = vmatpush.bf16.msra.mxu0 0
        %1043 = vmatpush.bf16.msra.mxu0 0
        %1044 = vmatpush.bf16.msra.mxu0 0
        %1045 = vmatpush.bf16.msra.mxu0 0
        %1046 = vmatpush.bf16.msra.mxu0 %v1037
        %1047 = vmatmul.bf16.gmra.mxu0 %v1033
        %v1048 = vpop.f32.mrf.mxu0
        %v1049 = vadd.f32 0.0, %v1048
        %v1050 = vpop.f32.mrf.mxu0
        %1051 = vdwg.mxu0
        %v1053 = vunpack.c.l.b16 %v945
        %v1054 = vpack.c.b16 %v1053, %v1053
        %1055 = vrot.lane.b32.xlu0 %v1054, 64
        %v1056 = vpop.permute.xlu0 %1055
        %v1058 = vsel %vm955, %v1026, 0
        %v1061 = vsel %vm1035, %v1056, 0
        %1063 = vmatpush.bf16.msra.mxu0 0
        %1064 = vmatpush.bf16.msra.mxu0 0
        %1065 = vmatpush.bf16.msra.mxu0 0
        %1066 = vmatpush.bf16.msra.mxu0 0
        %1067 = vmatpush.bf16.msra.mxu0 0
        %1068 = vmatpush.bf16.msra.mxu0 0
        %1069 = vmatpush.bf16.msra.mxu0 0
        %1070 = vmatpush.bf16.msra.mxu0 %v1061
        %1071 = vmatmul.bf16.gmra.mxu0 %v1058
        %v1072 = vpop.f32.mrf.mxu0
        %v1073 = vadd.f32 0.0, %v1072
        %v1074 = vpop.f32.mrf.mxu0
        %1075 = vdwg.mxu0
        %v1076 = vpack.c.bf16 %v1049, %v1049
        %v1077 = vpack.c.bf16 %v1073, %v1073
        %v1080 = vunpack.c.l.b16 %v1076
        %v1081 = vunpack.c.l.b16 %v1077
        %v1082 = vpack.c.b16 %v1081, %v1080
        %v1084 = vsel %vm955, %v1082, 0
        %v1087 = vsel %vm1035, %v946, 0
        %1089 = vmatpush.bf16.msra.mxu0 0
        %1090 = vmatpush.bf16.msra.mxu0 0
        %1091 = vmatpush.bf16.msra.mxu0 0
        %1092 = vmatpush.bf16.msra.mxu0 0
        %1093 = vmatpush.bf16.msra.mxu0 0
        %1094 = vmatpush.bf16.msra.mxu0 0
        %1095 = vmatpush.bf16.msra.mxu0 0
        %1096 = vmatpush.bf16.msra.mxu0 %v1087
        %1097 = vmatmul.bf16.gmra.mxu0 %v1084
        %v1098 = vpop.f32.mrf.mxu0
        %v1099 = vadd.f32 0.0, %v1098
        %v1100 = vpop.f32.mrf.mxu0
        %v1101 = vadd.f32 0.0, %v1100
        %1102 = vdwg.mxu0
        %v1103 = vadd.f32 %v1099, 0.0
        %v1104 = vadd.f32 %v1101, 0.0
        %v1106 = vunpack.c.l.b16 %v924
        %v1107 = vpack.c.b16 %v1106, %v1106
        %1108 = vrot.lane.b32.xlu0 %v1107, 120
        %v1109 = vpop.permute.xlu0 %1108
        %1110 = vrot.lane.b32.xlu0 %v952, 88
        %v1111 = vpop.permute.xlu0 %1110
        %v1113 = vsel %vm955, %v1109, 0
        %v1116 = vsel %vm955, %v1111, 0
        %1118 = vmatpush.bf16.xpose.msra.mxu0 0
        %1119 = vmatpush.bf16.xpose.msra.mxu0 0
        %1120 = vmatpush.bf16.xpose.msra.mxu0 0
        %1121 = vmatpush.bf16.xpose.msra.mxu0 0
        %1122 = vmatpush.bf16.xpose.msra.mxu0 0
        %1123 = vmatpush.bf16.xpose.msra.mxu0 0
        %1124 = vmatpush.bf16.xpose.msra.mxu0 0
        %1125 = vmatpush.bf16.xpose.msra.mxu0 %v1116
        %1126 = vmatmul.bf16.gmra.mxu0 %v1113
        %v1127 = vpop.f32.mrf.mxu0
        %v1128 = vadd.f32 0.0, %v1127
        %v1129 = vpop.f32.mrf.mxu0
        %1130 = vdwg.mxu0
        %v1132 = vunpack.c.l.b16 %v925
        %v1133 = vpack.c.b16 %v1132, %v1132
        %1134 = vrot.lane.b32.xlu0 %v1133, 120
        %v1135 = vpop.permute.xlu0 %1134
        %1136 = vrot.lane.b32.xlu0 %v977, 88
        %v1137 = vpop.permute.xlu0 %1136
        %v1139 = vsel %vm955, %v1135, 0
        %v1142 = vsel %vm955, %v1137, 0
        %1144 = vmatpush.bf16.xpose.msra.mxu0 0
        %1145 = vmatpush.bf16.xpose.msra.mxu0 0
        %1146 = vmatpush.bf16.xpose.msra.mxu0 0
        %1147 = vmatpush.bf16.xpose.msra.mxu0 0
        %1148 = vmatpush.bf16.xpose.msra.mxu0 0
        %1149 = vmatpush.bf16.xpose.msra.mxu0 0
        %1150 = vmatpush.bf16.xpose.msra.mxu0 0
        %1151 = vmatpush.bf16.xpose.msra.mxu0 %v1142
        %1152 = vmatmul.bf16.gmra.mxu0 %v1139
        %v1153 = vpop.f32.mrf.mxu0
        %v1154 = vadd.f32 0.0, %v1153
        %v1155 = vpop.f32.mrf.mxu0
        %1156 = vdwg.mxu0
        %v1157 = vmul.f32 %v1128, 0.35355338
        %v1158 = vmul.f32 %v1154, 0.35355338
        %v1159 = vadd.f32 %v1157, %v818
        %v1160 = vadd.f32 %v1158, %v819
        %v1161 = vsel %vm955, %v1159, -inf
        %1162 = vmax.xlane.f32.xlu0 %v1161
        %v1163 = vpop.xlane.xlu0 %1162
        %v1164 = vsel %vm955, %v1160, -inf
        %1165 = vmax.xlane.f32.xlu0 %v1164
        %v1166 = vpop.xlane.xlu0 %1165
        %v1167 = vsub.f32 %v1159, %v1163
        %v1168 = vsub.f32 %v1160, %v1166
        %v1169 = vmul.f32 %v1167, 1.442695
        %v1170 = vpow.pop %v1169
        %v1171 = vmul.f32 %v1168, 1.442695
        %v1172 = vpow.pop %v1171
        %v1173 = vsel %vm955, %v1170, 0.0
        %1174 = vadd.xlane.f32.xlu0 %v1173
        %v1175 = vpop.xlane.xlu0 %1174
        %v1176 = vsel %vm955, %v1172, 0.0
        %1177 = vadd.xlane.f32.xlu0 %v1176
        %v1178 = vpop.xlane.xlu0 %1177
        %v1179 = vrcp.pop %v1175
        %v1180 = vrcp.pop %v1178
        %v1181 = vmul.f32 %v1170, %v1179
        %v1182 = vmul.f32 %v1172, %v1180
        %v1183 = vpack.c.bf16 %v1181, %v1181
        %v1184 = vpack.c.bf16 %v1182, %v1182
        %1185 = vrot.lane.b32.xlu0 %v1029, 56
        %v1186 = vpop.permute.xlu0 %1185
        %v1188 = vsel %vm955, %v1183, 0
        %v1191 = vsel %vm1035, %v1186, 0
        %1193 = vmatpush.bf16.msra.mxu0 0
        %1194 = vmatpush.bf16.msra.mxu0 0
        %1195 = vmatpush.bf16.msra.mxu0 0
        %1196 = vmatpush.bf16.msra.mxu0 0
        %1197 = vmatpush.bf16.msra.mxu0 0
        %1198 = vmatpush.bf16.msra.mxu0 0
        %1199 = vmatpush.bf16.msra.mxu0 0
        %1200 = vmatpush.bf16.msra.mxu0 %v1191
        %1201 = vmatmul.bf16.gmra.mxu0 %v1188
        %v1202 = vpop.f32.mrf.mxu0
        %v1203 = vadd.f32 0.0, %v1202
        %v1204 = vpop.f32.mrf.mxu0
        %1205 = vdwg.mxu0
        %1206 = vrot.lane.b32.xlu0 %v1054, 56
        %v1207 = vpop.permute.xlu0 %1206
        %v1209 = vsel %vm955, %v1184, 0
        %v1212 = vsel %vm1035, %v1207, 0
        %1214 = vmatpush.bf16.msra.mxu0 0
        %1215 = vmatpush.bf16.msra.mxu0 0
        %1216 = vmatpush.bf16.msra.mxu0 0
        %1217 = vmatpush.bf16.msra.mxu0 0
        %1218 = vmatpush.bf16.msra.mxu0 0
        %1219 = vmatpush.bf16.msra.mxu0 0
        %1220 = vmatpush.bf16.msra.mxu0 0
        %1221 = vmatpush.bf16.msra.mxu0 %v1212
        %1222 = vmatmul.bf16.gmra.mxu0 %v1209
        %v1223 = vpop.f32.mrf.mxu0
        %v1224 = vadd.f32 0.0, %v1223
        %v1225 = vpop.f32.mrf.mxu0
        %1226 = vdwg.mxu0
        %v1227 = vpack.c.bf16 %v1203, %v1203
        %v1228 = vpack.c.bf16 %v1224, %v1224
        %v1231 = vunpack.c.l.b16 %v1227
        %v1232 = vunpack.c.l.b16 %v1228
        %v1233 = vpack.c.b16 %v1232, %v1231
        %v1235 = vsel %vm955, %v1233, 0
        %v1238 = vsel %vm1035, %v947, 0
        %1240 = vmatpush.bf16.msra.mxu0 0
        %1241 = vmatpush.bf16.msra.mxu0 0
        %1242 = vmatpush.bf16.msra.mxu0 0
        %1243 = vmatpush.bf16.msra.mxu0 0
        %1244 = vmatpush.bf16.msra.mxu0 0
        %1245 = vmatpush.bf16.msra.mxu0 0
        %1246 = vmatpush.bf16.msra.mxu0 0
        %1247 = vmatpush.bf16.msra.mxu0 %v1238
        %1248 = vmatmul.bf16.gmra.mxu0 %v1235
        %v1249 = vpop.f32.mrf.mxu0
        %v1250 = vadd.f32 0.0, %v1249
        %v1251 = vpop.f32.mrf.mxu0
        %v1252 = vadd.f32 0.0, %v1251
        %1253 = vdwg.mxu0
        %v1254 = vadd.f32 %v1103, %v1250
        %v1255 = vadd.f32 %v1104, %v1252
        %1256 = vrot.lane.b32.xlu0 %v1107, 112
        %v1257 = vpop.permute.xlu0 %1256
        %1258 = vrot.lane.b32.xlu0 %v952, 80
        %v1259 = vpop.permute.xlu0 %1258
        %v1261 = vsel %vm955, %v1257, 0
        %v1264 = vsel %vm955, %v1259, 0
        %1266 = vmatpush.bf16.xpose.msra.mxu0 0
        %1267 = vmatpush.bf16.xpose.msra.mxu0 0
        %1268 = vmatpush.bf16.xpose.msra.mxu0 0
        %1269 = vmatpush.bf16.xpose.msra.mxu0 0
        %1270 = vmatpush.bf16.xpose.msra.mxu0 0
        %1271 = vmatpush.bf16.xpose.msra.mxu0 0
        %1272 = vmatpush.bf16.xpose.msra.mxu0 0
        %1273 = vmatpush.bf16.xpose.msra.mxu0 %v1264
        %1274 = vmatmul.bf16.gmra.mxu0 %v1261
        %v1275 = vpop.f32.mrf.mxu0
        %v1276 = vadd.f32 0.0, %v1275
        %v1277 = vpop.f32.mrf.mxu0
        %1278 = vdwg.mxu0
        %1279 = vrot.lane.b32.xlu0 %v1133, 112
        %v1280 = vpop.permute.xlu0 %1279
        %1281 = vrot.lane.b32.xlu0 %v977, 80
        %v1282 = vpop.permute.xlu0 %1281
        %v1284 = vsel %vm955, %v1280, 0
        %v1287 = vsel %vm955, %v1282, 0
        %1289 = vmatpush.bf16.xpose.msra.mxu0 0
        %1290 = vmatpush.bf16.xpose.msra.mxu0 0
        %1291 = vmatpush.bf16.xpose.msra.mxu0 0
        %1292 = vmatpush.bf16.xpose.msra.mxu0 0
        %1293 = vmatpush.bf16.xpose.msra.mxu0 0
        %1294 = vmatpush.bf16.xpose.msra.mxu0 0
        %1295 = vmatpush.bf16.xpose.msra.mxu0 0
        %1296 = vmatpush.bf16.xpose.msra.mxu0 %v1287
        %1297 = vmatmul.bf16.gmra.mxu0 %v1284
        %v1298 = vpop.f32.mrf.mxu0
        %v1299 = vadd.f32 0.0, %v1298
        %v1300 = vpop.f32.mrf.mxu0
        %1301 = vdwg.mxu0
        %v1302 = vmul.f32 %v1276, 0.35355338
        %v1303 = vmul.f32 %v1299, 0.35355338
        %v1304 = vadd.f32 %v1302, %v818
        %v1305 = vadd.f32 %v1303, %v819
        %v1306 = vsel %vm955, %v1304, -inf
        %1307 = vmax.xlane.f32.xlu0 %v1306
        %v1308 = vpop.xlane.xlu0 %1307
        %v1309 = vsel %vm955, %v1305, -inf
        %1310 = vmax.xlane.f32.xlu0 %v1309
        %v1311 = vpop.xlane.xlu0 %1310
        %v1312 = vsub.f32 %v1304, %v1308
        %v1313 = vsub.f32 %v1305, %v1311
        %v1314 = vmul.f32 %v1312, 1.442695
        %v1315 = vpow.pop %v1314
        %v1316 = vmul.f32 %v1313, 1.442695
        %v1317 = vpow.pop %v1316
        %v1318 = vsel %vm955, %v1315, 0.0
        %1319 = vadd.xlane.f32.xlu0 %v1318
        %v1320 = vpop.xlane.xlu0 %1319
        %v1321 = vsel %vm955, %v1317, 0.0
        %1322 = vadd.xlane.f32.xlu0 %v1321
        %v1323 = vpop.xlane.xlu0 %1322
        %v1324 = vrcp.pop %v1320
        %v1325 = vrcp.pop %v1323
        %v1326 = vmul.f32 %v1315, %v1324
        %v1327 = vmul.f32 %v1317, %v1325
        %v1328 = vpack.c.bf16 %v1326, %v1326
        %v1329 = vpack.c.bf16 %v1327, %v1327
        %1330 = vrot.lane.b32.xlu0 %v1029, 48
        %v1331 = vpop.permute.xlu0 %1330
        %v1333 = vsel %vm955, %v1328, 0
        %v1336 = vsel %vm1035, %v1331, 0
        %1338 = vmatpush.bf16.msra.mxu0 0
        %1339 = vmatpush.bf16.msra.mxu0 0
        %1340 = vmatpush.bf16.msra.mxu0 0
        %1341 = vmatpush.bf16.msra.mxu0 0
        %1342 = vmatpush.bf16.msra.mxu0 0
        %1343 = vmatpush.bf16.msra.mxu0 0
        %1344 = vmatpush.bf16.msra.mxu0 0
        %1345 = vmatpush.bf16.msra.mxu0 %v1336
        %1346 = vmatmul.bf16.gmra.mxu0 %v1333
        %v1347 = vpop.f32.mrf.mxu0
        %v1348 = vadd.f32 0.0, %v1347
        %v1349 = vpop.f32.mrf.mxu0
        %1350 = vdwg.mxu0
        %1351 = vrot.lane.b32.xlu0 %v1054, 48
        %v1352 = vpop.permute.xlu0 %1351
        %v1354 = vsel %vm955, %v1329, 0
        %v1357 = vsel %vm1035, %v1352, 0
        %1359 = vmatpush.bf16.msra.mxu0 0
        %1360 = vmatpush.bf16.msra.mxu0 0
        %1361 = vmatpush.bf16.msra.mxu0 0
        %1362 = vmatpush.bf16.msra.mxu0 0
        %1363 = vmatpush.bf16.msra.mxu0 0
        %1364 = vmatpush.bf16.msra.mxu0 0
        %1365 = vmatpush.bf16.msra.mxu0 0
        %1366 = vmatpush.bf16.msra.mxu0 %v1357
        %1367 = vmatmul.bf16.gmra.mxu0 %v1354
        %v1368 = vpop.f32.mrf.mxu0
        %v1369 = vadd.f32 0.0, %v1368
        %v1370 = vpop.f32.mrf.mxu0
        %1371 = vdwg.mxu0
        %v1372 = vpack.c.bf16 %v1348, %v1348
        %v1373 = vpack.c.bf16 %v1369, %v1369
        %v1376 = vunpack.c.l.b16 %v1372
        %v1377 = vunpack.c.l.b16 %v1373
        %v1378 = vpack.c.b16 %v1377, %v1376
        %v1380 = vsel %vm955, %v1378, 0
        %v1383 = vsel %vm1035, %v948, 0
        %1385 = vmatpush.bf16.msra.mxu0 0
        %1386 = vmatpush.bf16.msra.mxu0 0
        %1387 = vmatpush.bf16.msra.mxu0 0
        %1388 = vmatpush.bf16.msra.mxu0 0
        %1389 = vmatpush.bf16.msra.mxu0 0
        %1390 = vmatpush.bf16.msra.mxu0 0
        %1391 = vmatpush.bf16.msra.mxu0 0
        %1392 = vmatpush.bf16.msra.mxu0 %v1383
        %1393 = vmatmul.bf16.gmra.mxu0 %v1380
        %v1394 = vpop.f32.mrf.mxu0
        %v1395 = vadd.f32 0.0, %v1394
        %v1396 = vpop.f32.mrf.mxu0
        %v1397 = vadd.f32 0.0, %v1396
        %1398 = vdwg.mxu0
        %v1399 = vadd.f32 %v1254, %v1395
        %v1400 = vadd.f32 %v1255, %v1397
        %1401 = vrot.lane.b32.xlu0 %v1107, 104
        %v1402 = vpop.permute.xlu0 %1401
        %1403 = vrot.lane.b32.xlu0 %v952, 72
        %v1404 = vpop.permute.xlu0 %1403
        %v1406 = vsel %vm955, %v1402, 0
        %v1409 = vsel %vm955, %v1404, 0
        %1411 = vmatpush.bf16.xpose.msra.mxu0 0
        %1412 = vmatpush.bf16.xpose.msra.mxu0 0
        %1413 = vmatpush.bf16.xpose.msra.mxu0 0
        %1414 = vmatpush.bf16.xpose.msra.mxu0 0
        %1415 = vmatpush.bf16.xpose.msra.mxu0 0
        %1416 = vmatpush.bf16.xpose.msra.mxu0 0
        %1417 = vmatpush.bf16.xpose.msra.mxu0 0
        %1418 = vmatpush.bf16.xpose.msra.mxu0 %v1409
        %1419 = vmatmul.bf16.gmra.mxu0 %v1406
        %v1420 = vpop.f32.mrf.mxu0
        %v1421 = vadd.f32 0.0, %v1420
        %v1422 = vpop.f32.mrf.mxu0
        %1423 = vdwg.mxu0
        %1424 = vrot.lane.b32.xlu0 %v1133, 104
        %v1425 = vpop.permute.xlu0 %1424
        %1426 = vrot.lane.b32.xlu0 %v977, 72
        %v1427 = vpop.permute.xlu0 %1426
        %v1429 = vsel %vm955, %v1425, 0
        %v1432 = vsel %vm955, %v1427, 0
        %1434 = vmatpush.bf16.xpose.msra.mxu0 0
        %1435 = vmatpush.bf16.xpose.msra.mxu0 0
        %1436 = vmatpush.bf16.xpose.msra.mxu0 0
        %1437 = vmatpush.bf16.xpose.msra.mxu0 0
        %1438 = vmatpush.bf16.xpose.msra.mxu0 0
        %1439 = vmatpush.bf16.xpose.msra.mxu0 0
        %1440 = vmatpush.bf16.xpose.msra.mxu0 0
        %1441 = vmatpush.bf16.xpose.msra.mxu0 %v1432
        %1442 = vmatmul.bf16.gmra.mxu0 %v1429
        %v1443 = vpop.f32.mrf.mxu0
        %v1444 = vadd.f32 0.0, %v1443
        %v1445 = vpop.f32.mrf.mxu0
        %1446 = vdwg.mxu0
        %v1447 = vmul.f32 %v1421, 0.35355338
        %v1448 = vmul.f32 %v1444, 0.35355338
        %v1449 = vadd.f32 %v1447, %v818
        %v1450 = vadd.f32 %v1448, %v819
        %v1451 = vsel %vm955, %v1449, -inf
        %1452 = vmax.xlane.f32.xlu0 %v1451
        %v1453 = vpop.xlane.xlu0 %1452
        %v1454 = vsel %vm955, %v1450, -inf
        %1455 = vmax.xlane.f32.xlu0 %v1454
        %v1456 = vpop.xlane.xlu0 %1455
        %v1457 = vsub.f32 %v1449, %v1453
        %v1458 = vsub.f32 %v1450, %v1456
        %v1459 = vmul.f32 %v1457, 1.442695
        %v1460 = vpow.pop %v1459
        %v1461 = vmul.f32 %v1458, 1.442695
        %v1462 = vpow.pop %v1461
        %v1463 = vsel %vm955, %v1460, 0.0
        %1464 = vadd.xlane.f32.xlu0 %v1463
        %v1465 = vpop.xlane.xlu0 %1464
        %v1466 = vsel %vm955, %v1462, 0.0
        %1467 = vadd.xlane.f32.xlu0 %v1466
        %v1468 = vpop.xlane.xlu0 %1467
        %v1469 = vrcp.pop %v1465
        %v1470 = vrcp.pop %v1468
        %v1471 = vmul.f32 %v1460, %v1469
        %v1472 = vmul.f32 %v1462, %v1470
        %v1473 = vpack.c.bf16 %v1471, %v1471
        %v1474 = vpack.c.bf16 %v1472, %v1472
        %1475 = vrot.lane.b32.xlu0 %v1029, 40
        %v1476 = vpop.permute.xlu0 %1475
        %v1478 = vsel %vm955, %v1473, 0
        %v1481 = vsel %vm1035, %v1476, 0
        %1483 = vmatpush.bf16.msra.mxu0 0
        %1484 = vmatpush.bf16.msra.mxu0 0
        %1485 = vmatpush.bf16.msra.mxu0 0
        %1486 = vmatpush.bf16.msra.mxu0 0
        %1487 = vmatpush.bf16.msra.mxu0 0
        %1488 = vmatpush.bf16.msra.mxu0 0
        %1489 = vmatpush.bf16.msra.mxu0 0
        %1490 = vmatpush.bf16.msra.mxu0 %v1481
        %1491 = vmatmul.bf16.gmra.mxu0 %v1478
        %v1492 = vpop.f32.mrf.mxu0
        %v1493 = vadd.f32 0.0, %v1492
        %v1494 = vpop.f32.mrf.mxu0
        %1495 = vdwg.mxu0
        %1496 = vrot.lane.b32.xlu0 %v1054, 40
        %v1497 = vpop.permute.xlu0 %1496
        %v1499 = vsel %vm955, %v1474, 0
        %v1502 = vsel %vm1035, %v1497, 0
        %1504 = vmatpush.bf16.msra.mxu0 0
        %1505 = vmatpush.bf16.msra.mxu0 0
        %1506 = vmatpush.bf16.msra.mxu0 0
        %1507 = vmatpush.bf16.msra.mxu0 0
        %1508 = vmatpush.bf16.msra.mxu0 0
        %1509 = vmatpush.bf16.msra.mxu0 0
        %1510 = vmatpush.bf16.msra.mxu0 0
        %1511 = vmatpush.bf16.msra.mxu0 %v1502
        %1512 = vmatmul.bf16.gmra.mxu0 %v1499
        %v1513 = vpop.f32.mrf.mxu0
        %v1514 = vadd.f32 0.0, %v1513
        %v1515 = vpop.f32.mrf.mxu0
        %1516 = vdwg.mxu0
        %v1517 = vpack.c.bf16 %v1493, %v1493
        %v1518 = vpack.c.bf16 %v1514, %v1514
        %v1521 = vunpack.c.l.b16 %v1517
        %v1522 = vunpack.c.l.b16 %v1518
        %v1523 = vpack.c.b16 %v1522, %v1521
        %v1525 = vsel %vm955, %v1523, 0
        %v1528 = vsel %vm1035, %v949, 0
        %1530 = vmatpush.bf16.msra.mxu0 0
        %1531 = vmatpush.bf16.msra.mxu0 0
        %1532 = vmatpush.bf16.msra.mxu0 0
        %1533 = vmatpush.bf16.msra.mxu0 0
        %1534 = vmatpush.bf16.msra.mxu0 0
        %1535 = vmatpush.bf16.msra.mxu0 0
        %1536 = vmatpush.bf16.msra.mxu0 0
        %1537 = vmatpush.bf16.msra.mxu0 %v1528
        %1538 = vmatmul.bf16.gmra.mxu0 %v1525
        %v1539 = vpop.f32.mrf.mxu0
        %v1540 = vadd.f32 0.0, %v1539
        %v1541 = vpop.f32.mrf.mxu0
        %v1542 = vadd.f32 0.0, %v1541
        %1543 = vdwg.mxu0
        %v1544 = vadd.f32 %v1399, %v1540
        %v1545 = vadd.f32 %v1400, %v1542
        %v1546 = vadd.f32 %v814, %v1544
        %v1547 = vadd.f32 %v815, %v1545
        %v1548 = vld [vmem:[%s792 + $0x3] sm:$0x1]
        %v1549 = vperm.slane %v1548, 0
        %v1550 = vadd.f32 %v1546, %v1549
        %v1551 = vadd.f32 %v1547, %v1549
        %v1552 = vld [vmem:[%s792 + $0x6] sm:$0x1]
        %v1553 = vld [vmem:[%s792 + $0x7] sm:$0x1]
        %v1554 = vsel %vm822, %v1550, 0.0
        %1555 = vadd.xlane.f32.xlu0 %v1554
        %v1556 = vpop.xlane.xlu0 %1555
        %v1557 = vsel %vm822, %v1551, 0.0
        %1558 = vadd.xlane.f32.xlu0 %v1557
        %v1559 = vpop.xlane.xlu0 %1558
        %v1560 = vmul.f32 %v1556, %v835
        %v1561 = vmul.f32 %v1559, %v835
        %v1562 = vsub.f32 %v1550, %v1560
        %v1563 = vsub.f32 %v1551, %v1561
        %v1564 = vmul.f32 %v1562, %v1562
        %v1565 = vmul.f32 %v1563, %v1563
        %v1566 = vsel %vm822, %v1564, 0.0
        %1567 = vadd.xlane.f32.xlu0 %v1566
        %v1568 = vpop.xlane.xlu0 %1567
        %v1569 = vsel %vm822, %v1565, 0.0
        %1570 = vadd.xlane.f32.xlu0 %v1569
        %v1571 = vpop.xlane.xlu0 %1570
        %v1572 = vmul.f32 %v1568, %v835
        %v1573 = vmul.f32 %v1571, %v835
        %v1574 = vadd.f32 %v1572, 1e-05
        %v1575 = vadd.f32 %v1573, 1e-05
        %v1576 = vrsqrt.pop %v1574
        %v1577 = vmul.f32 %v1576, %v1574
        %v1578 = vmul.f32 %v1577, %v1576
        %v1579 = vmul.f32 0.5, %v1578
        %v1580 = vsub.f32 1.5, %v1579
        %v1581 = vmul.f32 %v1576, %v1580
        %vm1582 = vweird.f32 %v1574
        %vm1583 = vweird.f32 %v1576
        %vm1584 = vmor %vm1582, %vm1583
        %v1585 = vsel %vm1584, %v1576, %v1581
        %v1586 = vrsqrt.pop %v1575
        %v1587 = vmul.f32 %v1586, %v1575
        %v1588 = vmul.f32 %v1587, %v1586
        %v1589 = vmul.f32 0.5, %v1588
        %v1590 = vsub.f32 1.5, %v1589
        %v1591 = vmul.f32 %v1586, %v1590
        %vm1592 = vweird.f32 %v1575
        %vm1593 = vweird.f32 %v1586
        %vm1594 = vmor %vm1592, %vm1593
        %v1595 = vsel %vm1594, %v1586, %v1591
        %v1596 = vmul.f32 %v1562, %v1585
        %v1597 = vmul.f32 %v1563, %v1595
        %v1598 = vperm.slane %v1552, 0
        %v1599 = vmul.f32 %v1596, %v1598
        %v1600 = vmul.f32 %v1597, %v1598
        %v1601 = vperm.slane %v1553, 0
        %v1602 = vadd.f32 %v1599, %v1601
        %v1603 = vadd.f32 %v1600, %v1601
        %v1604 = vpack.c.bf16 %v1602, %v1602
        %v1605 = vpack.c.bf16 %v1603, %v1603
        %v1606 = vld [vmem:[%s733] sm:$0xf]
        %v1607 = vld [vmem:[%s733 + $0x4] sm:$0xf]
        %v1608 = vld [vmem:[%s733 + $0x8] sm:$0xf]
        %v1609 = vld [vmem:[%s733 + $0xc] sm:$0xf]
        %v1610 = vunpack.c.l.bf16 %v1606
        %v1611 = vunpack.c.l.bf16 %v1607
        %v1612 = vunpack.c.l.bf16 %v1608
        %v1613 = vunpack.c.l.bf16 %v1609
        %v1614 = vld [vmem:[%s792 + $0x8] sm:$0x1]
        %v1615 = vld [vmem:[%s792 + $0x9] sm:$0x1]
        %v1616 = vsel %vm822, %v1610, 0.0
        %1617 = vadd.xlane.f32.xlu0 %v1616
        %v1618 = vpop.xlane.xlu0 %1617
        %v1619 = vsel %vm822, %v1611, 0.0
        %1620 = vadd.xlane.f32.xlu0 %v1619
        %v1621 = vpop.xlane.xlu0 %1620
        %v1622 = vsel %vm822, %v1612, 0.0
        %1623 = vadd.xlane.f32.xlu0 %v1622
        %v1624 = vpop.xlane.xlu0 %1623
        %v1625 = vsel %vm822, %v1613, 0.0
        %1626 = vadd.xlane.f32.xlu0 %v1625
        %v1627 = vpop.xlane.xlu0 %1626
        %v1628 = vmul.f32 %v1618, %v835
        %v1629 = vmul.f32 %v1621, %v835
        %v1630 = vmul.f32 %v1624, %v835
        %v1631 = vmul.f32 %v1627, %v835
        %v1632 = vsub.f32 %v1610, %v1628
        %v1633 = vsub.f32 %v1611, %v1629
        %v1634 = vsub.f32 %v1612, %v1630
        %v1635 = vsub.f32 %v1613, %v1631
        %v1636 = vmul.f32 %v1632, %v1632
        %v1637 = vmul.f32 %v1633, %v1633
        %v1638 = vmul.f32 %v1634, %v1634
        %v1639 = vmul.f32 %v1635, %v1635
        %v1640 = vsel %vm822, %v1636, 0.0
        %1641 = vadd.xlane.f32.xlu0 %v1640
        %v1642 = vpop.xlane.xlu0 %1641
        %v1643 = vsel %vm822, %v1637, 0.0
        %1644 = vadd.xlane.f32.xlu0 %v1643
        %v1645 = vpop.xlane.xlu0 %1644
        %v1646 = vsel %vm822, %v1638, 0.0
        %1647 = vadd.xlane.f32.xlu0 %v1646
        %v1648 = vpop.xlane.xlu0 %1647
        %v1649 = vsel %vm822, %v1639, 0.0
        %1650 = vadd.xlane.f32.xlu0 %v1649
        %v1651 = vpop.xlane.xlu0 %1650
        %v1652 = vmul.f32 %v1642, %v835
        %v1653 = vmul.f32 %v1645, %v835
        %v1654 = vmul.f32 %v1648, %v835
        %v1655 = vmul.f32 %v1651, %v835
        %v1656 = vadd.f32 %v1652, 1e-05
        %v1657 = vadd.f32 %v1653, 1e-05
        %v1658 = vadd.f32 %v1654, 1e-05
        %v1659 = vadd.f32 %v1655, 1e-05
        %v1660 = vrsqrt.pop %v1656
        %v1661 = vmul.f32 %v1660, %v1656
        %v1662 = vmul.f32 %v1661, %v1660
        %v1663 = vmul.f32 0.5, %v1662
        %v1664 = vsub.f32 1.5, %v1663
        %v1665 = vmul.f32 %v1660, %v1664
        %vm1666 = vweird.f32 %v1656
        %vm1667 = vweird.f32 %v1660
        %vm1668 = vmor %vm1666, %vm1667
        %v1669 = vsel %vm1668, %v1660, %v1665
        %v1670 = vrsqrt.pop %v1657
        %v1671 = vmul.f32 %v1670, %v1657
        %v1672 = vmul.f32 %v1671, %v1670
        %v1673 = vmul.f32 0.5, %v1672
        %v1674 = vsub.f32 1.5, %v1673
        %v1675 = vmul.f32 %v1670, %v1674
        %vm1676 = vweird.f32 %v1657
        %vm1677 = vweird.f32 %v1670
        %vm1678 = vmor %vm1676, %vm1677
        %v1679 = vsel %vm1678, %v1670, %v1675
        %v1680 = vrsqrt.pop %v1658
        %v1681 = vmul.f32 %v1680, %v1658
        %v1682 = vmul.f32 %v1681, %v1680
        %v1683 = vmul.f32 0.5, %v1682
        %v1684 = vsub.f32 1.5, %v1683
        %v1685 = vmul.f32 %v1680, %v1684
        %vm1686 = vweird.f32 %v1658
        %vm1687 = vweird.f32 %v1680
        %vm1688 = vmor %vm1686, %vm1687
        %v1689 = vsel %vm1688, %v1680, %v1685
        %v1690 = vrsqrt.pop %v1659
        %v1691 = vmul.f32 %v1690, %v1659
        %v1692 = vmul.f32 %v1691, %v1690
        %v1693 = vmul.f32 0.5, %v1692
        %v1694 = vsub.f32 1.5, %v1693
        %v1695 = vmul.f32 %v1690, %v1694
        %vm1696 = vweird.f32 %v1659
        %vm1697 = vweird.f32 %v1690
        %vm1698 = vmor %vm1696, %vm1697
        %v1699 = vsel %vm1698, %v1690, %v1695
        %v1700 = vmul.f32 %v1632, %v1669
        %v1701 = vmul.f32 %v1633, %v1679
        %v1702 = vmul.f32 %v1634, %v1689
        %v1703 = vmul.f32 %v1635, %v1699
        %v1704 = vperm.slane %v1614, 0
        %v1705 = vmul.f32 %v1700, %v1704
        %v1706 = vmul.f32 %v1701, %v1704
        %v1707 = vmul.f32 %v1702, %v1704
        %v1708 = vmul.f32 %v1703, %v1704
        %v1709 = vperm.slane %v1615, 0
        %v1710 = vadd.f32 %v1705, %v1709
        %v1711 = vadd.f32 %v1706, %v1709
        %v1712 = vadd.f32 %v1707, %v1709
        %v1713 = vadd.f32 %v1708, %v1709
        %v1714 = vpack.c.bf16 %v1710, %v1710
        %v1715 = vpack.c.bf16 %v1711, %v1711
        %v1716 = vpack.c.bf16 %v1712, %v1712
        %v1717 = vpack.c.bf16 %v1713, %v1713
        %v1718 = vld [vmem:[%s767] sm:$0xf]
        %v1719 = vld [vmem:[%s767 + $0x4] sm:$0xf]
        %v1720 = vld [vmem:[%s767 + $0x8] sm:$0xf]
        %v1721 = vld [vmem:[%s767 + $0xc] sm:$0xf]
        %v1724 = vunpack.c.l.b16 %v1604
        %v1725 = vunpack.c.l.b16 %v1605
        %v1726 = vpack.c.b16 %v1725, %v1724
        %v1731 = vunpack.c.l.b16 %v1718
        %v1732 = vunpack.c.l.b16 %v1719
        %v1733 = vunpack.c.l.b16 %v1720
        %v1734 = vunpack.c.l.b16 %v1721
        %v1735 = vpack.c.b16 %v1732, %v1731
        %v1736 = vpack.c.b16 %v1734, %v1733
        %v1740 = vsel %vm822, %v1726, 0
        %1742 = vmatpush.bf16.msra.mxu0 0
        %1743 = vmatpush.bf16.msra.mxu0 0
        %1744 = vmatpush.bf16.msra.mxu0 0
        %1745 = vmatpush.bf16.msra.mxu0 0
        %1746 = vmatpush.bf16.msra.mxu0 0
        %1747 = vmatpush.bf16.msra.mxu0 0
        %1748 = vmatpush.bf16.msra.mxu0 %v1736
        %1749 = vmatpush.bf16.msra.mxu0 %v1735
        %1750 = vmatmul.bf16.gmra.mxu0 %v1740
        %v1751 = vpop.f32.mrf.mxu0
        %v1752 = vadd.f32 0.0, %v1751
        %v1753 = vpop.f32.mrf.mxu0
        %v1754 = vadd.f32 0.0, %v1753
        %1755 = vdwg.mxu0
        %v1756 = vld [vmem:[%s772] sm:$0xf]
        %v1757 = vld [vmem:[%s772 + $0x4] sm:$0xf]
        %v1758 = vld [vmem:[%s772 + $0x8] sm:$0xf]
        %v1759 = vld [vmem:[%s772 + $0xc] sm:$0xf]
        %v1764 = vunpack.c.l.b16 %v1714
        %v1765 = vunpack.c.l.b16 %v1715
        %v1766 = vunpack.c.l.b16 %v1716
        %v1767 = vunpack.c.l.b16 %v1717
        %v1768 = vpack.c.b16 %v1765, %v1764
        %v1769 = vpack.c.b16 %v1767, %v1766
        %v1774 = vunpack.c.l.b16 %v1756
        %v1775 = vunpack.c.l.b16 %v1757
        %v1776 = vunpack.c.l.b16 %v1758
        %v1777 = vunpack.c.l.b16 %v1759
        %v1778 = vpack.c.b16 %v1775, %v1774
        %v1779 = vpack.c.b16 %v1777, %v1776
        %v1783 = vsel %vm822, %v1768, 0
        %v1786 = vsel %vm822, %v1769, 0
        %1788 = vmatpush.bf16.msra.mxu0 0
        %1789 = vmatpush.bf16.msra.mxu0 0
        %1790 = vmatpush.bf16.msra.mxu0 0
        %1791 = vmatpush.bf16.msra.mxu0 0
        %1792 = vmatpush.bf16.msra.mxu0 0
        %1793 = vmatpush.bf16.msra.mxu0 0
        %1794 = vmatpush.bf16.msra.mxu0 %v1779
        %1795 = vmatpush.bf16.msra.mxu0 %v1778
        %1796 = vmatmul.bf16.gmra.mxu0 %v1783
        %v1797 = vpop.f32.mrf.mxu0
        %v1798 = vadd.f32 0.0, %v1797
        %v1799 = vpop.f32.mrf.mxu0
        %v1800 = vadd.f32 0.0, %v1799
        %1801 = vmatmul.bf16.gmra.mxu0 %v1786
        %v1802 = vpop.f32.mrf.mxu0
        %v1803 = vadd.f32 0.0, %v1802
        %v1804 = vpop.f32.mrf.mxu0
        %v1805 = vadd.f32 0.0, %v1804
        %1806 = vdwg.mxu0
        %v1807 = vld [vmem:[%s792 + $0xa] sm:$0x1]
        %v1808 = vperm.slane %v1807, 0
        %v1809 = vadd.f32 %v1752, %v1808
        %v1810 = vadd.f32 %v1754, %v1808
        %v1811 = vpack.c.bf16 %v1809, %v1809
        %v1812 = vpack.c.bf16 %v1810, %v1810
        %v1813 = vld [vmem:[%s792 + $0xb] sm:$0x1]
        %v1814 = vperm.slane %v1813, 0
        %v1815 = vadd.f32 %v1798, %v1814
        %v1816 = vadd.f32 %v1800, %v1814
        %v1817 = vadd.f32 %v1803, %v1814
        %v1818 = vadd.f32 %v1805, %v1814
        %v1819 = vpack.c.bf16 %v1815, %v1815
        %v1820 = vpack.c.bf16 %v1816, %v1816
        %v1821 = vpack.c.bf16 %v1817, %v1817
        %v1822 = vpack.c.bf16 %v1818, %v1818
        %v1823 = vld [vmem:[%s792 + $0xc] sm:$0x1]
        %v1824 = vperm.slane %v1823, 0
        %1826 = vrot.lane.b32.xlu0 %v1824, 32
        %v1827 = vpop.permute.xlu0 %1826
        %v1829 = vadd.f32 %v1798, %v1827
        %v1830 = vadd.f32 %v1800, %v1827
        %v1831 = vadd.f32 %v1803, %v1827
        %v1832 = vadd.f32 %v1805, %v1827
        %v1833 = vpack.c.bf16 %v1829, %v1829
        %v1834 = vpack.c.bf16 %v1830, %v1830
        %v1835 = vpack.c.bf16 %v1831, %v1831
        %v1836 = vpack.c.bf16 %v1832, %v1832
        %v1837 = vld [vmem:[%s745] sm:$0xff]
        %v1838 = vld [vmem:[%s745 + $0x8] sm:$0xff]
        %v1839 = vlaneseq
        %v1840 = vand.u32 %v1839, 127
        %v1841 = vmul.u32 %v1837, 8
        %v1842 = vmul.u32 %v1838, 8
        %1843 = vset.pattern.permute.xlu0 0
        %1844 = vperm.xlu0 %1843, %v1841
        %v1845 = vpop.permute.xlu0 %1844
        %1846 = vset.pattern.permute.xlu0 0
        %1847 = vperm.xlu0 %1846, %v1842
        %v1848 = vpop.permute.xlu0 %1847
        %vm1849 = vcmp.ge.s32.totalorder %v1840, %v1845
        %vm1850 = vcmp.ge.s32.totalorder %v1840, %v1848
        %v1851 = vadd.s32 %v1841, 8
        %v1852 = vadd.s32 %v1842, 8
        %1853 = vset.pattern.permute.xlu0 0
        %1854 = vperm.xlu0 %1853, %v1851
        %v1855 = vpop.permute.xlu0 %1854
        %1856 = vset.pattern.permute.xlu0 0
        %1857 = vperm.xlu0 %1856, %v1852
        %v1858 = vpop.permute.xlu0 %1857
        %vm1859 = vcmp.lt.s32.totalorder %v1840, %v1855
        %vm1860 = vcmp.lt.s32.totalorder %v1840, %v1858
        %vm1861 = vmand %vm1849, %vm1859
        %vm1862 = vmand %vm1850, %vm1860
        %v1863 = vsel %vm1861, 1, 0
        %v1864 = vsel %vm1862, 1, 0
        %v1865 = vcvt.s32.f32 %v1863
        %v1866 = vcvt.s32.f32 %v1864
        %v1869 = vunpack.c.l.b16 %v1819
        %v1870 = vunpack.c.l.b16 %v1820
        %v1871 = vpack.c.b16 %v1870, %v1869
        %v1873 = vsel %vm955, %v1811, 0
        %v1876 = vsel %vm955, %v1871, 0
        %1878 = vmatpush.bf16.xpose.msra.mxu0 0
        %1879 = vmatpush.bf16.xpose.msra.mxu0 0
        %1880 = vmatpush.bf16.xpose.msra.mxu0 0
        %1881 = vmatpush.bf16.xpose.msra.mxu0 0
        %1882 = vmatpush.bf16.xpose.msra.mxu0 0
        %1883 = vmatpush.bf16.xpose.msra.mxu0 0
        %1884 = vmatpush.bf16.xpose.msra.mxu0 0
        %1885 = vmatpush.bf16.xpose.msra.mxu0 %v1876
        %1886 = vmatmul.bf16.gmra.mxu0 %v1873
        %v1887 = vpop.f32.mrf.mxu0
        %v1888 = vadd.f32 0.0, %v1887
        %v1889 = vpop.f32.mrf.mxu0
        %1890 = vdwg.mxu0
        %v1893 = vunpack.c.l.b16 %v1821
        %v1894 = vunpack.c.l.b16 %v1822
        %v1895 = vpack.c.b16 %v1894, %v1893
        %v1897 = vsel %vm955, %v1812, 0
        %v1900 = vsel %vm955, %v1895, 0
        %1902 = vmatpush.bf16.xpose.msra.mxu0 0
        %1903 = vmatpush.bf16.xpose.msra.mxu0 0
        %1904 = vmatpush.bf16.xpose.msra.mxu0 0
        %1905 = vmatpush.bf16.xpose.msra.mxu0 0
        %1906 = vmatpush.bf16.xpose.msra.mxu0 0
        %1907 = vmatpush.bf16.xpose.msra.mxu0 0
        %1908 = vmatpush.bf16.xpose.msra.mxu0 0
        %1909 = vmatpush.bf16.xpose.msra.mxu0 %v1900
        %1910 = vmatmul.bf16.gmra.mxu0 %v1897
        %v1911 = vpop.f32.mrf.mxu0
        %v1912 = vadd.f32 0.0, %v1911
        %v1913 = vpop.f32.mrf.mxu0
        %1914 = vdwg.mxu0
        %v1915 = vmul.f32 %v1888, 0.35355338
        %v1916 = vmul.f32 %v1912, 0.35355338
        %v1917 = vxor.u32 %v1915, 2147483648
        %v1918 = vxor.u32 %v1916, 2147483648
        %v1919 = vmul.f32 %v1917, 1.442695
        %v1920 = vpow.pop %v1919
        %v1921 = vmul.f32 %v1918, 1.442695
        %v1922 = vpow.pop %v1921
        %v1923 = vadd.f32 %v1920, 1.0
        %v1924 = vadd.f32 %v1922, 1.0
        %v1925 = vrcp.pop %v1923
        %v1926 = vmul.f32 %v1923, %v1925
        %v1927 = vsub.f32 1.0, %v1926
        %v1928 = vmul.f32 %v1925, %v1927
        %v1929 = vadd.f32 %v1925, %v1928
        %vm1930 = vweird.f32 %v1923
        %vm1931 = vweird.f32 %v1925
        %vm1932 = vmor %vm1930, %vm1931
        %v1933 = vsel %vm1932, %v1925, %v1929
        %v1934 = vand.u32 2147483647, %v1923
        %vm1935 = vcmp.eq.f32.partialorder %v1934, 8.507059e+37
        %v1936 = vand.u32 %v1923, 2147483648
        %v1937 = vor.u32 1.1754944e-38, %v1936
        %v1938 = vsel %vm1935, %v1937, %v1933
        %v1939 = vmul.f32 1.0, %v1938
        %v1940 = vrcp.pop %v1924
        %v1941 = vmul.f32 %v1924, %v1940
        %v1942 = vsub.f32 1.0, %v1941
        %v1943 = vmul.f32 %v1940, %v1942
        %v1944 = vadd.f32 %v1940, %v1943
        %vm1945 = vweird.f32 %v1924
        %vm1946 = vweird.f32 %v1940
        %vm1947 = vmor %vm1945, %vm1946
        %v1948 = vsel %vm1947, %v1940, %v1944
        %v1949 = vand.u32 2147483647, %v1924
        %vm1950 = vcmp.eq.f32.partialorder %v1949, 8.507059e+37
        %v1951 = vand.u32 %v1924, 2147483648
        %v1952 = vor.u32 1.1754944e-38, %v1951
        %v1953 = vsel %vm1950, %v1952, %v1948
        %v1954 = vmul.f32 1.0, %v1953
        %v1955 = vmul.f32 %v1939, %v1865
        %v1956 = vmul.f32 %v1954, %v1866
        %v1957 = vadd.f32 %v1955, 0.0
        %v1958 = vadd.f32 %v1956, 0.0
        %v1959 = vpack.c.bf16 %v1955, %v1955
        %v1960 = vpack.c.bf16 %v1956, %v1956
        %v1963 = vunpack.c.l.b16 %v1833
        %v1964 = vunpack.c.l.b16 %v1834
        %v1965 = vpack.c.b16 %v1964, %v1963
        %1966 = vrot.lane.b32.xlu0 %v1965, 96
        %v1967 = vpop.permute.xlu0 %1966
        %vm1969 = vcmask 130048
        %v1971 = vsel %vm1969, %v1959, 0
        %1973 = vmatpush.bf16.msra.mxu0 0
        %1974 = vmatpush.bf16.msra.mxu0 0
        %1975 = vmatpush.bf16.msra.mxu0 0
        %1976 = vmatpush.bf16.msra.mxu0 0
        %1977 = vmatpush.bf16.msra.mxu0 0
        %1978 = vmatpush.bf16.msra.mxu0 0
        %1979 = vmatpush.bf16.msra.mxu0 0
        %1980 = vmatpush.bf16.msra.mxu0 %v1967
        %1981 = vmatmul.bf16.gmra.mxu0 %v1971
        %v1982 = vpop.f32.mrf.mxu0
        %v1983 = vadd.f32 0.0, %v1982
        %v1984 = vpop.f32.mrf.mxu0
        %1985 = vdwg.mxu0
        %v1988 = vunpack.c.l.b16 %v1835
        %v1989 = vunpack.c.l.b16 %v1836
        %v1990 = vpack.c.b16 %v1989, %v1988
        %1991 = vrot.lane.b32.xlu0 %v1990, 96
        %v1992 = vpop.permute.xlu0 %1991
        %v1995 = vsel %vm1969, %v1960, 0
        %1997 = vmatpush.bf16.msra.mxu0 0
        %1998 = vmatpush.bf16.msra.mxu0 0
        %1999 = vmatpush.bf16.msra.mxu0 0
        %2000 = vmatpush.bf16.msra.mxu0 0
        %2001 = vmatpush.bf16.msra.mxu0 0
        %2002 = vmatpush.bf16.msra.mxu0 0
        %2003 = vmatpush.bf16.msra.mxu0 0
        %2004 = vmatpush.bf16.msra.mxu0 %v1992
        %2005 = vmatmul.bf16.gmra.mxu0 %v1995
        %v2006 = vpop.f32.mrf.mxu0
        %v2007 = vadd.f32 0.0, %v2006
        %v2008 = vpop.f32.mrf.mxu0
        %2009 = vdwg.mxu0
        %2010 = vst.msk [vmem:[#allocation4] sm:$0xff] %vm955, %v1983
        %2011 = vst.msk [vmem:[#allocation4 + $0x8] sm:$0xff] %vm955, %v2007
        %v2013 = vunpack.c.l.b16 %v1811
        %v2014 = vpack.c.b16 %v2013, %v2013
        %2015 = vrot.lane.b32.xlu0 %v2014, 120
        %v2016 = vpop.permute.xlu0 %2015
        %2017 = vrot.lane.b32.xlu0 %v1871, 120
        %v2018 = vpop.permute.xlu0 %2017
        %v2020 = vsel %vm955, %v2016, 0
        %v2023 = vsel %vm955, %v2018, 0
        %2025 = vmatpush.bf16.xpose.msra.mxu0 0
        %2026 = vmatpush.bf16.xpose.msra.mxu0 0
        %2027 = vmatpush.bf16.xpose.msra.mxu0 0
        %2028 = vmatpush.bf16.xpose.msra.mxu0 0
        %2029 = vmatpush.bf16.xpose.msra.mxu0 0
        %2030 = vmatpush.bf16.xpose.msra.mxu0 0
        %2031 = vmatpush.bf16.xpose.msra.mxu0 0
        %2032 = vmatpush.bf16.xpose.msra.mxu0 %v2023
        %2033 = vmatmul.bf16.gmra.mxu0 %v2020
        %v2034 = vpop.f32.mrf.mxu0
        %v2035 = vadd.f32 0.0, %v2034
        %v2036 = vpop.f32.mrf.mxu0
        %2037 = vdwg.mxu0
        %v2039 = vunpack.c.l.b16 %v1812
        %v2040 = vpack.c.b16 %v2039, %v2039
        %2041 = vrot.lane.b32.xlu0 %v2040, 120
        %v2042 = vpop.permute.xlu0 %2041
        %2043 = vrot.lane.b32.xlu0 %v1895, 120
        %v2044 = vpop.permute.xlu0 %2043
        %v2046 = vsel %vm955, %v2042, 0
        %v2049 = vsel %vm955, %v2044, 0
        %2051 = vmatpush.bf16.xpose.msra.mxu0 0
        %2052 = vmatpush.bf16.xpose.msra.mxu0 0
        %2053 = vmatpush.bf16.xpose.msra.mxu0 0
        %2054 = vmatpush.bf16.xpose.msra.mxu0 0
        %2055 = vmatpush.bf16.xpose.msra.mxu0 0
        %2056 = vmatpush.bf16.xpose.msra.mxu0 0
        %2057 = vmatpush.bf16.xpose.msra.mxu0 0
        %2058 = vmatpush.bf16.xpose.msra.mxu0 %v2049
        %2059 = vmatmul.bf16.gmra.mxu0 %v2046
        %v2060 = vpop.f32.mrf.mxu0
        %v2061 = vadd.f32 0.0, %v2060
        %v2062 = vpop.f32.mrf.mxu0
        %2063 = vdwg.mxu0
        %v2064 = vmul.f32 %v2035, 0.35355338
        %v2065 = vmul.f32 %v2061, 0.35355338
        %v2066 = vxor.u32 %v2064, 2147483648
        %v2067 = vxor.u32 %v2065, 2147483648
        %v2068 = vmul.f32 %v2066, 1.442695
        %v2069 = vpow.pop %v2068
        %v2070 = vmul.f32 %v2067, 1.442695
        %v2071 = vpow.pop %v2070
        %v2072 = vadd.f32 %v2069, 1.0
        %v2073 = vadd.f32 %v2071, 1.0
        %v2074 = vrcp.pop %v2072
        %v2075 = vmul.f32 %v2072, %v2074
        %v2076 = vsub.f32 1.0, %v2075
        %v2077 = vmul.f32 %v2074, %v2076
        %v2078 = vadd.f32 %v2074, %v2077
        %vm2079 = vweird.f32 %v2072
        %vm2080 = vweird.f32 %v2074
        %vm2081 = vmor %vm2079, %vm2080
        %v2082 = vsel %vm2081, %v2074, %v2078
        %v2083 = vand.u32 2147483647, %v2072
        %vm2084 = vcmp.eq.f32.partialorder %v2083, 8.507059e+37
        %v2085 = vand.u32 %v2072, 2147483648
        %v2086 = vor.u32 1.1754944e-38, %v2085
        %v2087 = vsel %vm2084, %v2086, %v2082
        %v2088 = vmul.f32 1.0, %v2087
        %v2089 = vrcp.pop %v2073
        %v2090 = vmul.f32 %v2073, %v2089
        %v2091 = vsub.f32 1.0, %v2090
        %v2092 = vmul.f32 %v2089, %v2091
        %v2093 = vadd.f32 %v2089, %v2092
        %vm2094 = vweird.f32 %v2073
        %vm2095 = vweird.f32 %v2089
        %vm2096 = vmor %vm2094, %vm2095
        %v2097 = vsel %vm2096, %v2089, %v2093
        %v2098 = vand.u32 2147483647, %v2073
        %vm2099 = vcmp.eq.f32.partialorder %v2098, 8.507059e+37
        %v2100 = vand.u32 %v2073, 2147483648
        %v2101 = vor.u32 1.1754944e-38, %v2100
        %v2102 = vsel %vm2099, %v2101, %v2097
        %v2103 = vmul.f32 1.0, %v2102
        %v2104 = vmul.f32 %v2088, %v1865
        %v2105 = vmul.f32 %v2103, %v1866
        %v2106 = vadd.f32 %v1957, %v2104
        %v2107 = vadd.f32 %v1958, %v2105
        %v2108 = vpack.c.bf16 %v2104, %v2104
        %v2109 = vpack.c.bf16 %v2105, %v2105
        %2110 = vrot.lane.b32.xlu0 %v1965, 88
        %v2111 = vpop.permute.xlu0 %2110
        %v2114 = vsel %vm1969, %v2108, 0
        %2116 = vmatpush.bf16.msra.mxu0 0
        %2117 = vmatpush.bf16.msra.mxu0 0
        %2118 = vmatpush.bf16.msra.mxu0 0
        %2119 = vmatpush.bf16.msra.mxu0 0
        %2120 = vmatpush.bf16.msra.mxu0 0
        %2121 = vmatpush.bf16.msra.mxu0 0
        %2122 = vmatpush.bf16.msra.mxu0 0
        %2123 = vmatpush.bf16.msra.mxu0 %v2111
        %2124 = vmatmul.bf16.gmra.mxu0 %v2114
        %v2125 = vpop.f32.mrf.mxu0
        %v2126 = vadd.f32 0.0, %v2125
        %v2127 = vpop.f32.mrf.mxu0
        %2128 = vdwg.mxu0
        %2129 = vrot.lane.b32.xlu0 %v1990, 88
        %v2130 = vpop.permute.xlu0 %2129
        %v2133 = vsel %vm1969, %v2109, 0
        %2135 = vmatpush.bf16.msra.mxu0 0
        %2136 = vmatpush.bf16.msra.mxu0 0
        %2137 = vmatpush.bf16.msra.mxu0 0
        %2138 = vmatpush.bf16.msra.mxu0 0
        %2139 = vmatpush.bf16.msra.mxu0 0
        %2140 = vmatpush.bf16.msra.mxu0 0
        %2141 = vmatpush.bf16.msra.mxu0 0
        %2142 = vmatpush.bf16.msra.mxu0 %v2130
        %2143 = vmatmul.bf16.gmra.mxu0 %v2133
        %v2144 = vpop.f32.mrf.mxu0
        %v2145 = vadd.f32 0.0, %v2144
        %v2146 = vpop.f32.mrf.mxu0
        %2147 = vdwg.mxu0
        %2150 = vrot.lane.b32.xlu0 %v2126, 8
        %v2151 = vpop.permute.xlu0 %2150
        %2152 = vrot.lane.b32.xlu0 %v2145, 8
        %v2153 = vpop.permute.xlu0 %2152
        %vm2156 = vcmask 130112
        %2157 = vst.msk [vmem:[#allocation4] sm:$0xff] %vm2156, %v2151
        %2158 = vst.msk [vmem:[#allocation4 + $0x8] sm:$0xff] %vm2156, %v2153
        %2159 = vrot.lane.b32.xlu0 %v2014, 112
        %v2160 = vpop.permute.xlu0 %2159
        %2161 = vrot.lane.b32.xlu0 %v1871, 112
        %v2162 = vpop.permute.xlu0 %2161
        %v2164 = vsel %vm955, %v2160, 0
        %v2167 = vsel %vm955, %v2162, 0
        %2169 = vmatpush.bf16.xpose.msra.mxu0 0
        %2170 = vmatpush.bf16.xpose.msra.mxu0 0
        %2171 = vmatpush.bf16.xpose.msra.mxu0 0
        %2172 = vmatpush.bf16.xpose.msra.mxu0 0
        %2173 = vmatpush.bf16.xpose.msra.mxu0 0
        %2174 = vmatpush.bf16.xpose.msra.mxu0 0
        %2175 = vmatpush.bf16.xpose.msra.mxu0 0
        %2176 = vmatpush.bf16.xpose.msra.mxu0 %v2167
        %2177 = vmatmul.bf16.gmra.mxu0 %v2164
        %v2178 = vpop.f32.mrf.mxu0
        %v2179 = vadd.f32 0.0, %v2178
        %v2180 = vpop.f32.mrf.mxu0
        %2181 = vdwg.mxu0
        %2182 = vrot.lane.b32.xlu0 %v2040, 112
        %v2183 = vpop.permute.xlu0 %2182
        %2184 = vrot.lane.b32.xlu0 %v1895, 112
        %v2185 = vpop.permute.xlu0 %2184
        %v2187 = vsel %vm955, %v2183, 0
        %v2190 = vsel %vm955, %v2185, 0
        %2192 = vmatpush.bf16.xpose.msra.mxu0 0
        %2193 = vmatpush.bf16.xpose.msra.mxu0 0
        %2194 = vmatpush.bf16.xpose.msra.mxu0 0
        %2195 = vmatpush.bf16.xpose.msra.mxu0 0
        %2196 = vmatpush.bf16.xpose.msra.mxu0 0
        %2197 = vmatpush.bf16.xpose.msra.mxu0 0
        %2198 = vmatpush.bf16.xpose.msra.mxu0 0
        %2199 = vmatpush.bf16.xpose.msra.mxu0 %v2190
        %2200 = vmatmul.bf16.gmra.mxu0 %v2187
        %v2201 = vpop.f32.mrf.mxu0
        %v2202 = vadd.f32 0.0, %v2201
        %v2203 = vpop.f32.mrf.mxu0
        %2204 = vdwg.mxu0
        %v2205 = vmul.f32 %v2179, 0.35355338
        %v2206 = vmul.f32 %v2202, 0.35355338
        %v2207 = vxor.u32 %v2205, 2147483648
        %v2208 = vxor.u32 %v2206, 2147483648
        %v2209 = vmul.f32 %v2207, 1.442695
        %v2210 = vpow.pop %v2209
        %v2211 = vmul.f32 %v2208, 1.442695
        %v2212 = vpow.pop %v2211
        %v2213 = vadd.f32 %v2210, 1.0
        %v2214 = vadd.f32 %v2212, 1.0
        %v2215 = vrcp.pop %v2213
        %v2216 = vmul.f32 %v2213, %v2215
        %v2217 = vsub.f32 1.0, %v2216
        %v2218 = vmul.f32 %v2215, %v2217
        %v2219 = vadd.f32 %v2215, %v2218
        %vm2220 = vweird.f32 %v2213
        %vm2221 = vweird.f32 %v2215
        %vm2222 = vmor %vm2220, %vm2221
        %v2223 = vsel %vm2222, %v2215, %v2219
        %v2224 = vand.u32 2147483647, %v2213
        %vm2225 = vcmp.eq.f32.partialorder %v2224, 8.507059e+37
        %v2226 = vand.u32 %v2213, 2147483648
        %v2227 = vor.u32 1.1754944e-38, %v2226
        %v2228 = vsel %vm2225, %v2227, %v2223
        %v2229 = vmul.f32 1.0, %v2228
        %v2230 = vrcp.pop %v2214
        %v2231 = vmul.f32 %v2214, %v2230
        %v2232 = vsub.f32 1.0, %v2231
        %v2233 = vmul.f32 %v2230, %v2232
        %v2234 = vadd.f32 %v2230, %v2233
        %vm2235 = vweird.f32 %v2214
        %vm2236 = vweird.f32 %v2230
        %vm2237 = vmor %vm2235, %vm2236
        %v2238 = vsel %vm2237, %v2230, %v2234
        %v2239 = vand.u32 2147483647, %v2214
        %vm2240 = vcmp.eq.f32.partialorder %v2239, 8.507059e+37
        %v2241 = vand.u32 %v2214, 2147483648
        %v2242 = vor.u32 1.1754944e-38, %v2241
        %v2243 = vsel %vm2240, %v2242, %v2238
        %v2244 = vmul.f32 1.0, %v2243
        %v2245 = vmul.f32 %v2229, %v1865
        %v2246 = vmul.f32 %v2244, %v1866
        %v2247 = vadd.f32 %v2106, %v2245
        %v2248 = vadd.f32 %v2107, %v2246
        %v2249 = vpack.c.bf16 %v2245, %v2245
        %v2250 = vpack.c.bf16 %v2246, %v2246
        %2251 = vrot.lane.b32.xlu0 %v1965, 80
        %v2252 = vpop.permute.xlu0 %2251
        %v2255 = vsel %vm1969, %v2249, 0
        %2257 = vmatpush.bf16.msra.mxu0 0
        %2258 = vmatpush.bf16.msra.mxu0 0
        %2259 = vmatpush.bf16.msra.mxu0 0
        %2260 = vmatpush.bf16.msra.mxu0 0
        %2261 = vmatpush.bf16.msra.mxu0 0
        %2262 = vmatpush.bf16.msra.mxu0 0
        %2263 = vmatpush.bf16.msra.mxu0 0
        %2264 = vmatpush.bf16.msra.mxu0 %v2252
        %2265 = vmatmul.bf16.gmra.mxu0 %v2255
        %v2266 = vpop.f32.mrf.mxu0
        %v2267 = vadd.f32 0.0, %v2266
        %v2268 = vpop.f32.mrf.mxu0
        %2269 = vdwg.mxu0
        %2270 = vrot.lane.b32.xlu0 %v1990, 80
        %v2271 = vpop.permute.xlu0 %2270
        %v2274 = vsel %vm1969, %v2250, 0
        %2276 = vmatpush.bf16.msra.mxu0 0
        %2277 = vmatpush.bf16.msra.mxu0 0
        %2278 = vmatpush.bf16.msra.mxu0 0
        %2279 = vmatpush.bf16.msra.mxu0 0
        %2280 = vmatpush.bf16.msra.mxu0 0
        %2281 = vmatpush.bf16.msra.mxu0 0
        %2282 = vmatpush.bf16.msra.mxu0 0
        %2283 = vmatpush.bf16.msra.mxu0 %v2271
        %2284 = vmatmul.bf16.gmra.mxu0 %v2274
        %v2285 = vpop.f32.mrf.mxu0
        %v2286 = vadd.f32 0.0, %v2285
        %v2287 = vpop.f32.mrf.mxu0
        %2288 = vdwg.mxu0
        %2291 = vrot.lane.b32.xlu0 %v2267, 16
        %v2292 = vpop.permute.xlu0 %2291
        %2293 = vrot.lane.b32.xlu0 %v2286, 16
        %v2294 = vpop.permute.xlu0 %2293
        %vm2297 = vcmask 195712
        %2298 = vst.msk [vmem:[#allocation4] sm:$0xff] %vm2297, %v2292
        %2299 = vst.msk [vmem:[#allocation4 + $0x8] sm:$0xff] %vm2297, %v2294
        %2300 = vrot.lane.b32.xlu0 %v2014, 104
        %v2301 = vpop.permute.xlu0 %2300
        %2302 = vrot.lane.b32.xlu0 %v1871, 104
        %v2303 = vpop.permute.xlu0 %2302
        %v2305 = vsel %vm955, %v2301, 0
        %v2308 = vsel %vm955, %v2303, 0
        %2310 = vmatpush.bf16.xpose.msra.mxu0 0
        %2311 = vmatpush.bf16.xpose.msra.mxu0 0
        %2312 = vmatpush.bf16.xpose.msra.mxu0 0
        %2313 = vmatpush.bf16.xpose.msra.mxu0 0
        %2314 = vmatpush.bf16.xpose.msra.mxu0 0
        %2315 = vmatpush.bf16.xpose.msra.mxu0 0
        %2316 = vmatpush.bf16.xpose.msra.mxu0 0
        %2317 = vmatpush.bf16.xpose.msra.mxu0 %v2308
        %2318 = vmatmul.bf16.gmra.mxu0 %v2305
        %v2319 = vpop.f32.mrf.mxu0
        %v2320 = vadd.f32 0.0, %v2319
        %v2321 = vpop.f32.mrf.mxu0
        %2322 = vdwg.mxu0
        %2323 = vrot.lane.b32.xlu0 %v2040, 104
        %v2324 = vpop.permute.xlu0 %2323
        %2325 = vrot.lane.b32.xlu0 %v1895, 104
        %v2326 = vpop.permute.xlu0 %2325
        %v2328 = vsel %vm955, %v2324, 0
        %v2331 = vsel %vm955, %v2326, 0
        %2333 = vmatpush.bf16.xpose.msra.mxu0 0
        %2334 = vmatpush.bf16.xpose.msra.mxu0 0
        %2335 = vmatpush.bf16.xpose.msra.mxu0 0
        %2336 = vmatpush.bf16.xpose.msra.mxu0 0
        %2337 = vmatpush.bf16.xpose.msra.mxu0 0
        %2338 = vmatpush.bf16.xpose.msra.mxu0 0
        %2339 = vmatpush.bf16.xpose.msra.mxu0 0
        %2340 = vmatpush.bf16.xpose.msra.mxu0 %v2331
        %2341 = vmatmul.bf16.gmra.mxu0 %v2328
        %v2342 = vpop.f32.mrf.mxu0
        %v2343 = vadd.f32 0.0, %v2342
        %v2344 = vpop.f32.mrf.mxu0
        %2345 = vdwg.mxu0
        %v2346 = vmul.f32 %v2320, 0.35355338
        %v2347 = vmul.f32 %v2343, 0.35355338
        %v2348 = vxor.u32 %v2346, 2147483648
        %v2349 = vxor.u32 %v2347, 2147483648
        %v2350 = vmul.f32 %v2348, 1.442695
        %v2351 = vpow.pop %v2350
        %v2352 = vmul.f32 %v2349, 1.442695
        %v2353 = vpow.pop %v2352
        %v2354 = vadd.f32 %v2351, 1.0
        %v2355 = vadd.f32 %v2353, 1.0
        %v2356 = vrcp.pop %v2354
        %v2357 = vmul.f32 %v2354, %v2356
        %v2358 = vsub.f32 1.0, %v2357
        %v2359 = vmul.f32 %v2356, %v2358
        %v2360 = vadd.f32 %v2356, %v2359
        %vm2361 = vweird.f32 %v2354
        %vm2362 = vweird.f32 %v2356
        %vm2363 = vmor %vm2361, %vm2362
        %v2364 = vsel %vm2363, %v2356, %v2360
        %v2365 = vand.u32 2147483647, %v2354
        %vm2366 = vcmp.eq.f32.partialorder %v2365, 8.507059e+37
        %v2367 = vand.u32 %v2354, 2147483648
        %v2368 = vor.u32 1.1754944e-38, %v2367
        %v2369 = vsel %vm2366, %v2368, %v2364
        %v2370 = vmul.f32 1.0, %v2369
        %v2371 = vrcp.pop %v2355
        %v2372 = vmul.f32 %v2355, %v2371
        %v2373 = vsub.f32 1.0, %v2372
        %v2374 = vmul.f32 %v2371, %v2373
        %v2375 = vadd.f32 %v2371, %v2374
        %vm2376 = vweird.f32 %v2355
        %vm2377 = vweird.f32 %v2371
        %vm2378 = vmor %vm2376, %vm2377
        %v2379 = vsel %vm2378, %v2371, %v2375
        %v2380 = vand.u32 2147483647, %v2355
        %vm2381 = vcmp.eq.f32.partialorder %v2380, 8.507059e+37
        %v2382 = vand.u32 %v2355, 2147483648
        %v2383 = vor.u32 1.1754944e-38, %v2382
        %v2384 = vsel %vm2381, %v2383, %v2379
        %v2385 = vmul.f32 1.0, %v2384
        %v2386 = vmul.f32 %v2370, %v1865
        %v2387 = vmul.f32 %v2385, %v1866
        %v2388 = vadd.f32 %v2247, %v2386
        %v2389 = vadd.f32 %v2248, %v2387
        %v2390 = vpack.c.bf16 %v2386, %v2386
        %v2391 = vpack.c.bf16 %v2387, %v2387
        %2392 = vrot.lane.b32.xlu0 %v1965, 72
        %v2393 = vpop.permute.xlu0 %2392
        %v2396 = vsel %vm1969, %v2390, 0
        %2398 = vmatpush.bf16.msra.mxu0 0
        %2399 = vmatpush.bf16.msra.mxu0 0
        %2400 = vmatpush.bf16.msra.mxu0 0
        %2401 = vmatpush.bf16.msra.mxu0 0
        %2402 = vmatpush.bf16.msra.mxu0 0
        %2403 = vmatpush.bf16.msra.mxu0 0
        %2404 = vmatpush.bf16.msra.mxu0 0
        %2405 = vmatpush.bf16.msra.mxu0 %v2393
        %2406 = vmatmul.bf16.gmra.mxu0 %v2396
        %v2407 = vpop.f32.mrf.mxu0
        %v2408 = vadd.f32 0.0, %v2407
        %v2409 = vpop.f32.mrf.mxu0
        %2410 = vdwg.mxu0
        %2411 = vrot.lane.b32.xlu0 %v1990, 72
        %v2412 = vpop.permute.xlu0 %2411
        %v2415 = vsel %vm1969, %v2391, 0
        %2417 = vmatpush.bf16.msra.mxu0 0
        %2418 = vmatpush.bf16.msra.mxu0 0
        %2419 = vmatpush.bf16.msra.mxu0 0
        %2420 = vmatpush.bf16.msra.mxu0 0
        %2421 = vmatpush.bf16.msra.mxu0 0
        %2422 = vmatpush.bf16.msra.mxu0 0
        %2423 = vmatpush.bf16.msra.mxu0 0
        %2424 = vmatpush.bf16.msra.mxu0 %v2412
        %2425 = vmatmul.bf16.gmra.mxu0 %v2415
        %v2426 = vpop.f32.mrf.mxu0
        %v2427 = vadd.f32 0.0, %v2426
        %v2428 = vpop.f32.mrf.mxu0
        %2429 = vdwg.mxu0
        %2432 = vrot.lane.b32.xlu0 %v2408, 24
        %v2433 = vpop.permute.xlu0 %2432
        %2434 = vrot.lane.b32.xlu0 %v2427, 24
        %v2435 = vpop.permute.xlu0 %2434
        %vm2438 = vcmask 261312
        %2439 = vst.msk [vmem:[#allocation4] sm:$0xff] %vm2438, %v2433
        %2440 = vst.msk [vmem:[#allocation4 + $0x8] sm:$0xff] %vm2438, %v2435
        %v2441 = vld [vmem:[#allocation2] sm:$0xff]
        %v2442 = vld [vmem:[#allocation2 + $0x8] sm:$0xff]
        %v2443 = vadd.f32 %v2441, %v2388
        %v2444 = vadd.f32 %v2442, %v2389
        %2445 = vst.msk [vmem:[#allocation2] sm:$0xff] %vm1969, %v2443
        %2446 = vst.msk [vmem:[#allocation2 + $0x8] sm:$0xff] %vm1969, %v2444
        %v2447 = vld [vmem:[#allocation4] sm:$0xff]
        %v2448 = vld [vmem:[#allocation4 + $0x8] sm:$0xff]
        %v2449 = vld [vmem:[%s792 + $0xd] sm:$0x1]
        %v2450 = vld [vmem:[%s792 + $0xe] sm:$0x1]
        %v2451 = vsel %vm822, %v2447, 0.0
        %2452 = vadd.xlane.f32.xlu0 %v2451
        %v2453 = vpop.xlane.xlu0 %2452
        %v2454 = vsel %vm822, %v2448, 0.0
        %2455 = vadd.xlane.f32.xlu0 %v2454
        %v2456 = vpop.xlane.xlu0 %2455
        %v2457 = vmul.f32 %v2453, %v835
        %v2458 = vmul.f32 %v2456, %v835
        %v2459 = vsub.f32 %v2447, %v2457
        %v2460 = vsub.f32 %v2448, %v2458
        %v2461 = vmul.f32 %v2459, %v2459
        %v2462 = vmul.f32 %v2460, %v2460
        %v2463 = vsel %vm822, %v2461, 0.0
        %2464 = vadd.xlane.f32.xlu0 %v2463
        %v2465 = vpop.xlane.xlu0 %2464
        %v2466 = vsel %vm822, %v2462, 0.0
        %2467 = vadd.xlane.f32.xlu0 %v2466
        %v2468 = vpop.xlane.xlu0 %2467
        %v2469 = vmul.f32 %v2465, %v835
        %v2470 = vmul.f32 %v2468, %v835
        %v2471 = vadd.f32 %v2469, 1e-05
        %v2472 = vadd.f32 %v2470, 1e-05
        %v2473 = vrsqrt.pop %v2471
        %v2474 = vmul.f32 %v2473, %v2471
        %v2475 = vmul.f32 %v2474, %v2473
        %v2476 = vmul.f32 0.5, %v2475
        %v2477 = vsub.f32 1.5, %v2476
        %v2478 = vmul.f32 %v2473, %v2477
        %vm2479 = vweird.f32 %v2471
        %vm2480 = vweird.f32 %v2473
        %vm2481 = vmor %vm2479, %vm2480
        %v2482 = vsel %vm2481, %v2473, %v2478
        %v2483 = vrsqrt.pop %v2472
        %v2484 = vmul.f32 %v2483, %v2472
        %v2485 = vmul.f32 %v2484, %v2483
        %v2486 = vmul.f32 0.5, %v2485
        %v2487 = vsub.f32 1.5, %v2486
        %v2488 = vmul.f32 %v2483, %v2487
        %vm2489 = vweird.f32 %v2472
        %vm2490 = vweird.f32 %v2483
        %vm2491 = vmor %vm2489, %vm2490
        %v2492 = vsel %vm2491, %v2483, %v2488
        %v2493 = vmul.f32 %v2459, %v2482
        %v2494 = vmul.f32 %v2460, %v2492
        %v2495 = vperm.slane %v2449, 0
        %v2496 = vmul.f32 %v2493, %v2495
        %v2497 = vmul.f32 %v2494, %v2495
        %v2498 = vperm.slane %v2450, 0
        %v2499 = vadd.f32 %v2496, %v2498
        %v2500 = vadd.f32 %v2497, %v2498
        %v2501 = vld [vmem:[%s777] sm:$0xf]
        %v2502 = vld [vmem:[%s777 + $0x4] sm:$0xf]
        %v2503 = vld [vmem:[%s777 + $0x8] sm:$0xf]
        %v2504 = vld [vmem:[%s777 + $0xc] sm:$0xf]
        %v2505 = vld [vmem:[%s777 + $0x10] sm:$0xf]
        %v2506 = vld [vmem:[%s777 + $0x14] sm:$0xf]
        %v2507 = vld [vmem:[%s777 + $0x18] sm:$0xf]
        %v2508 = vld [vmem:[%s777 + $0x1c] sm:$0xf]
        %v2509 = vpack.c.bf16 %v1550, %v1550
        %v2510 = vpack.c.bf16 %v1551, %v1551
        %v2513 = vunpack.c.l.b16 %v2509
        %v2514 = vunpack.c.l.b16 %v2510
        %v2515 = vpack.c.b16 %v2514, %v2513
        %v2520 = vunpack.c.l.b16 %v2501
        %v2521 = vunpack.c.l.b16 %v2502
        %v2522 = vunpack.c.l.b16 %v2503
        %v2523 = vunpack.c.l.b16 %v2504
        %v2524 = vpack.c.b16 %v2521, %v2520
        %v2525 = vpack.c.b16 %v2523, %v2522
        %v2529 = vsel %vm822, %v2515, 0
        %2531 = vmatpush.bf16.msra.mxu0 0
        %2532 = vmatpush.bf16.msra.mxu0 0
        %2533 = vmatpush.bf16.msra.mxu0 0
        %2534 = vmatpush.bf16.msra.mxu0 0
        %2535 = vmatpush.bf16.msra.mxu0 0
        %2536 = vmatpush.bf16.msra.mxu0 0
        %2537 = vmatpush.bf16.msra.mxu0 %v2525
        %2538 = vmatpush.bf16.msra.mxu0 %v2524
        %2539 = vmatmul.bf16.gmra.mxu0 %v2529
        %v2540 = vpop.f32.mrf.mxu0
        %v2541 = vadd.f32 0.0, %v2540
        %v2542 = vpop.f32.mrf.mxu0
        %v2543 = vadd.f32 0.0, %v2542
        %2544 = vdwg.mxu0
        %v2545 = vpack.c.bf16 %v2499, %v2499
        %v2546 = vpack.c.bf16 %v2500, %v2500
        %v2549 = vunpack.c.l.b16 %v2545
        %v2550 = vunpack.c.l.b16 %v2546
        %v2551 = vpack.c.b16 %v2550, %v2549
        %v2556 = vunpack.c.l.b16 %v2505
        %v2557 = vunpack.c.l.b16 %v2506
        %v2558 = vunpack.c.l.b16 %v2507
        %v2559 = vunpack.c.l.b16 %v2508
        %v2560 = vpack.c.b16 %v2557, %v2556
        %v2561 = vpack.c.b16 %v2559, %v2558
        %v2565 = vsel %vm822, %v2551, 0
        %2567 = vmatpush.bf16.msra.mxu0 0
        %2568 = vmatpush.bf16.msra.mxu0 0
        %2569 = vmatpush.bf16.msra.mxu0 0
        %2570 = vmatpush.bf16.msra.mxu0 0
        %2571 = vmatpush.bf16.msra.mxu0 0
        %2572 = vmatpush.bf16.msra.mxu0 0
        %2573 = vmatpush.bf16.msra.mxu0 %v2561
        %2574 = vmatpush.bf16.msra.mxu0 %v2560
        %2575 = vmatmul.bf16.gmra.mxu0 %v2565
        %v2576 = vpop.f32.mrf.mxu0
        %v2577 = vadd.f32 0.0, %v2576
        %v2578 = vpop.f32.mrf.mxu0
        %v2579 = vadd.f32 0.0, %v2578
        %2580 = vdwg.mxu0
        %v2581 = vadd.f32 %v2541, %v2577
        %v2582 = vadd.f32 %v2543, %v2579
        %v2583 = vld [vmem:[%s792 + $0xf] sm:$0x1]
        %v2584 = vperm.slane %v2583, 0
        %v2585 = vadd.f32 %v2581, %v2584
        %v2586 = vadd.f32 %v2582, %v2584
        %v2587 = vmax.f32 %v2585, 0.0
        %v2588 = vmax.f32 %v2586, 0.0
        %v2589 = vld [vmem:[%s792 + $0x16] sm:$0x1]
        %v2590 = vld [vmem:[%s792 + $0x10] sm:$0x1]
        %v2591 = vperm.slane %v2590, 0
        %v2592 = vmul.f32 %v2587, %v2591
        %v2593 = vmul.f32 %v2588, %v2591
        %v2594 = vsel %vm822, %v2592, 0.0
        %2595 = vadd.xlane.f32.xlu0 %v2594
        %v2596 = vpop.xlane.xlu0 %2595
        %v2597 = vsel %vm822, %v2593, 0.0
        %2598 = vadd.xlane.f32.xlu0 %v2597
        %v2599 = vpop.xlane.xlu0 %2598
        %v2600 = vperm.slane %v2589, 0
        %v2601 = vadd.f32 %v2596, %v2600
        %v2602 = vadd.f32 %v2599, %v2600
        %v2603 = vxor.u32 %v2601, 2147483648
        %v2604 = vxor.u32 %v2602, 2147483648
        %v2605 = vmul.f32 %v2603, 1.442695
        %v2606 = vpow.pop %v2605
        %v2607 = vmul.f32 %v2604, 1.442695
        %v2608 = vpow.pop %v2607
        %v2609 = vadd.f32 %v2606, 1.0
        %v2610 = vadd.f32 %v2608, 1.0
        %v2611 = vrcp.pop %v2609
        %v2612 = vmul.f32 %v2609, %v2611
        %v2613 = vsub.f32 1.0, %v2612
        %v2614 = vmul.f32 %v2611, %v2613
        %v2615 = vadd.f32 %v2611, %v2614
        %vm2616 = vweird.f32 %v2609
        %vm2617 = vweird.f32 %v2611
        %vm2618 = vmor %vm2616, %vm2617
        %v2619 = vsel %vm2618, %v2611, %v2615
        %v2620 = vand.u32 2147483647, %v2609
        %vm2621 = vcmp.eq.f32.partialorder %v2620, 8.507059e+37
        %v2622 = vand.u32 %v2609, 2147483648
        %v2623 = vor.u32 1.1754944e-38, %v2622
        %v2624 = vsel %vm2621, %v2623, %v2619
        %v2625 = vmul.f32 1.0, %v2624
        %v2626 = vrcp.pop %v2610
        %v2627 = vmul.f32 %v2610, %v2626
        %v2628 = vsub.f32 1.0, %v2627
        %v2629 = vmul.f32 %v2626, %v2628
        %v2630 = vadd.f32 %v2626, %v2629
        %vm2631 = vweird.f32 %v2610
        %vm2632 = vweird.f32 %v2626
        %vm2633 = vmor %vm2631, %vm2632
        %v2634 = vsel %vm2633, %v2626, %v2630
        %v2635 = vand.u32 2147483647, %v2610
        %vm2636 = vcmp.eq.f32.partialorder %v2635, 8.507059e+37
        %v2637 = vand.u32 %v2610, 2147483648
        %v2638 = vor.u32 1.1754944e-38, %v2637
        %v2639 = vsel %vm2636, %v2638, %v2634
        %v2640 = vmul.f32 1.0, %v2639
        %v2641 = vld [vmem:[#allocation3] sm:$0xff]
        %v2642 = vld [vmem:[#allocation3 + $0x8] sm:$0xff]
        %v2643 = vadd.f32 %v2641, %v2625
        %v2644 = vadd.f32 %v2642, %v2640
        %vm2645 = vcmask 7168
        %2646 = vst.msk [vmem:[#allocation3] sm:$0xff] %vm2645, %v2643
        %2647 = vst.msk [vmem:[#allocation3 + $0x8] sm:$0xff] %vm2645, %v2644
        %v2648 = vsub.f32 1.0, %v2625
        %v2649 = vsub.f32 1.0, %v2640
        %2651 = vset.pattern.permute.xlu0 0
        %2652 = vperm.xlu0 %2651, %v2648
        %v2653 = vpop.permute.xlu0 %2652
        %2656 = vset.pattern.permute.xlu0 0
        %2657 = vperm.xlu0 %2656, %v2649
        %v2658 = vpop.permute.xlu0 %2657
        %v2660 = vmul.f32 %v2653, %v1550
        %v2661 = vmul.f32 %v2658, %v1551
        %2663 = vset.pattern.permute.xlu0 0
        %2664 = vperm.xlu0 %2663, %v2625
        %v2665 = vpop.permute.xlu0 %2664
        %2668 = vset.pattern.permute.xlu0 0
        %2669 = vperm.xlu0 %2668, %v2640
        %v2670 = vpop.permute.xlu0 %2669
        %v2672 = vmul.f32 %v2665, %v2499
        %v2673 = vmul.f32 %v2670, %v2500
        %v2674 = vadd.f32 %v2660, %v2672
        %v2675 = vadd.f32 %v2661, %v2673
        %v2676 = vld [vmem:[%s792 + $0x11] sm:$0x1]
        %v2677 = vld [vmem:[%s792 + $0x12] sm:$0x1]
        %v2678 = vsel %vm822, %v2674, 0.0
        %2679 = vadd.xlane.f32.xlu0 %v2678
        %v2680 = vpop.xlane.xlu0 %2679
        %v2681 = vsel %vm822, %v2675, 0.0
        %2682 = vadd.xlane.f32.xlu0 %v2681
        %v2683 = vpop.xlane.xlu0 %2682
        %v2684 = vmul.f32 %v2680, %v835
        %v2685 = vmul.f32 %v2683, %v835
        %v2686 = vsub.f32 %v2674, %v2684
        %v2687 = vsub.f32 %v2675, %v2685
        %v2688 = vmul.f32 %v2686, %v2686
        %v2689 = vmul.f32 %v2687, %v2687
        %v2690 = vsel %vm822, %v2688, 0.0
        %2691 = vadd.xlane.f32.xlu0 %v2690
        %v2692 = vpop.xlane.xlu0 %2691
        %v2693 = vsel %vm822, %v2689, 0.0
        %2694 = vadd.xlane.f32.xlu0 %v2693
        %v2695 = vpop.xlane.xlu0 %2694
        %v2696 = vmul.f32 %v2692, %v835
        %v2697 = vmul.f32 %v2695, %v835
        %v2698 = vadd.f32 %v2696, 1e-05
        %v2699 = vadd.f32 %v2697, 1e-05
        %v2700 = vrsqrt.pop %v2698
        %v2701 = vmul.f32 %v2700, %v2698
        %v2702 = vmul.f32 %v2701, %v2700
        %v2703 = vmul.f32 0.5, %v2702
        %v2704 = vsub.f32 1.5, %v2703
        %v2705 = vmul.f32 %v2700, %v2704
        %vm2706 = vweird.f32 %v2698
        %vm2707 = vweird.f32 %v2700
        %vm2708 = vmor %vm2706, %vm2707
        %v2709 = vsel %vm2708, %v2700, %v2705
        %v2710 = vrsqrt.pop %v2699
        %v2711 = vmul.f32 %v2710, %v2699
        %v2712 = vmul.f32 %v2711, %v2710
        %v2713 = vmul.f32 0.5, %v2712
        %v2714 = vsub.f32 1.5, %v2713
        %v2715 = vmul.f32 %v2710, %v2714
        %vm2716 = vweird.f32 %v2699
        %vm2717 = vweird.f32 %v2710
        %vm2718 = vmor %vm2716, %vm2717
        %v2719 = vsel %vm2718, %v2710, %v2715
        %v2720 = vmul.f32 %v2686, %v2709
        %v2721 = vmul.f32 %v2687, %v2719
        %v2722 = vperm.slane %v2676, 0
        %v2723 = vmul.f32 %v2720, %v2722
        %v2724 = vmul.f32 %v2721, %v2722
        %v2725 = vperm.slane %v2677, 0
        %v2726 = vadd.f32 %v2723, %v2725
        %v2727 = vadd.f32 %v2724, %v2725
        %v2728 = vld [vmem:[%s792 + $0x13] sm:$0x1]
        %v2729 = vld [vmem:[%s792 + $0x14] sm:$0x1]
        %v2730 = vsel %vm822, %v2726, 0.0
        %2731 = vadd.xlane.f32.xlu0 %v2730
        %v2732 = vpop.xlane.xlu0 %2731
        %v2733 = vsel %vm822, %v2727, 0.0
        %2734 = vadd.xlane.f32.xlu0 %v2733
        %v2735 = vpop.xlane.xlu0 %2734
        %v2736 = vmul.f32 %v2732, %v835
        %v2737 = vmul.f32 %v2735, %v835
        %v2738 = vsub.f32 %v2726, %v2736
        %v2739 = vsub.f32 %v2727, %v2737
        %v2740 = vmul.f32 %v2738, %v2738
        %v2741 = vmul.f32 %v2739, %v2739
        %v2742 = vsel %vm822, %v2740, 0.0
        %2743 = vadd.xlane.f32.xlu0 %v2742
        %v2744 = vpop.xlane.xlu0 %2743
        %v2745 = vsel %vm822, %v2741, 0.0
        %2746 = vadd.xlane.f32.xlu0 %v2745
        %v2747 = vpop.xlane.xlu0 %2746
        %v2748 = vmul.f32 %v2744, %v835
        %v2749 = vmul.f32 %v2747, %v835
        %v2750 = vadd.f32 %v2748, 1e-05
        %v2751 = vadd.f32 %v2749, 1e-05
        %v2752 = vrsqrt.pop %v2750
        %v2753 = vmul.f32 %v2752, %v2750
        %v2754 = vmul.f32 %v2753, %v2752
        %v2755 = vmul.f32 0.5, %v2754
        %v2756 = vsub.f32 1.5, %v2755
        %v2757 = vmul.f32 %v2752, %v2756
        %vm2758 = vweird.f32 %v2750
        %vm2759 = vweird.f32 %v2752
        %vm2760 = vmor %vm2758, %vm2759
        %v2761 = vsel %vm2760, %v2752, %v2757
        %v2762 = vrsqrt.pop %v2751
        %v2763 = vmul.f32 %v2762, %v2751
        %v2764 = vmul.f32 %v2763, %v2762
        %v2765 = vmul.f32 0.5, %v2764
        %v2766 = vsub.f32 1.5, %v2765
        %v2767 = vmul.f32 %v2762, %v2766
        %vm2768 = vweird.f32 %v2751
        %vm2769 = vweird.f32 %v2762
        %vm2770 = vmor %vm2768, %vm2769
        %v2771 = vsel %vm2770, %v2762, %v2767
        %v2772 = vmul.f32 %v2738, %v2761
        %v2773 = vmul.f32 %v2739, %v2771
        %v2774 = vperm.slane %v2728, 0
        %v2775 = vmul.f32 %v2772, %v2774
        %v2776 = vmul.f32 %v2773, %v2774
        %v2777 = vperm.slane %v2729, 0
        %v2778 = vadd.f32 %v2775, %v2777
        %v2779 = vadd.f32 %v2776, %v2777
        %v2780 = vpack.c.bf16 %v2778, %v2778
        %v2781 = vpack.c.bf16 %v2779, %v2779
        %v2782 = vld [vmem:[%s782] sm:$0xf]
        %v2783 = vld [vmem:[%s782 + $0x4] sm:$0xf]
        %v2784 = vld [vmem:[%s782 + $0x8] sm:$0xf]
        %v2785 = vld [vmem:[%s782 + $0xc] sm:$0xf]
        %v2788 = vunpack.c.l.b16 %v2780
        %v2789 = vunpack.c.l.b16 %v2781
        %v2790 = vpack.c.b16 %v2789, %v2788
        %v2795 = vunpack.c.l.b16 %v2782
        %v2796 = vunpack.c.l.b16 %v2783
        %v2797 = vunpack.c.l.b16 %v2784
        %v2798 = vunpack.c.l.b16 %v2785
        %v2799 = vpack.c.b16 %v2796, %v2795
        %v2800 = vpack.c.b16 %v2798, %v2797
        %v2804 = vsel %vm822, %v2790, 0
        %2806 = vmatpush.bf16.msra.mxu0 0
        %2807 = vmatpush.bf16.msra.mxu0 0
        %2808 = vmatpush.bf16.msra.mxu0 0
        %2809 = vmatpush.bf16.msra.mxu0 0
        %2810 = vmatpush.bf16.msra.mxu0 0
        %2811 = vmatpush.bf16.msra.mxu0 0
        %2812 = vmatpush.bf16.msra.mxu0 %v2800
        %2813 = vmatpush.bf16.msra.mxu0 %v2799
        %2814 = vmatmul.bf16.gmra.mxu0 %v2804
        %v2815 = vpop.f32.mrf.mxu0
        %v2816 = vadd.f32 0.0, %v2815
        %v2817 = vpop.f32.mrf.mxu0
        %v2818 = vadd.f32 0.0, %v2817
        %2819 = vdwg.mxu0
        %v2820 = vld [vmem:[%s795] sm:$0x1]
        %v2822 = vperm.slane %v2820, 0
        %v2824 = vadd.f32 %v2816, %v2822
        %v2825 = vadd.f32 %v2818, %v2822
        %v2826 = vmax.f32 %v2824, 0.0
        %v2827 = vmax.f32 %v2825, 0.0
        %v2828 = vpack.c.bf16 %v2826, %v2826
        %v2829 = vpack.c.bf16 %v2827, %v2827
        %v2830 = vld [vmem:[%s787] sm:$0xf]
        %v2831 = vld [vmem:[%s787 + $0x4] sm:$0xf]
        %v2832 = vld [vmem:[%s787 + $0x8] sm:$0xf]
        %v2833 = vld [vmem:[%s787 + $0xc] sm:$0xf]
        %v2834 = vld [vmem:[%s787 + $0x10] sm:$0xf]
        %v2835 = vld [vmem:[%s787 + $0x14] sm:$0xf]
        %v2836 = vld [vmem:[%s787 + $0x18] sm:$0xf]
        %v2837 = vld [vmem:[%s787 + $0x1c] sm:$0xf]
        %v2840 = vunpack.c.l.b16 %v2828
        %v2841 = vunpack.c.l.b16 %v2829
        %v2842 = vpack.c.b16 %v2841, %v2840
        %v2851 = vunpack.c.l.b16 %v2830
        %v2852 = vunpack.c.l.b16 %v2831
        %v2853 = vunpack.c.l.b16 %v2832
        %v2854 = vunpack.c.l.b16 %v2833
        %v2855 = vunpack.c.l.b16 %v2834
        %v2856 = vunpack.c.l.b16 %v2835
        %v2857 = vunpack.c.l.b16 %v2836
        %v2858 = vunpack.c.l.b16 %v2837
        %v2859 = vpack.c.b16 %v2852, %v2851
        %v2860 = vpack.c.b16 %v2854, %v2853
        %v2861 = vpack.c.b16 %v2856, %v2855
        %v2862 = vpack.c.b16 %v2858, %v2857
        %vm2867 = vcmask 523264
        %v2869 = vsel %vm2867, %v2842, 0
        %2871 = vmatpush.bf16.msra.mxu0 0
        %2872 = vmatpush.bf16.msra.mxu0 0
        %2873 = vmatpush.bf16.msra.mxu0 0
        %2874 = vmatpush.bf16.msra.mxu0 0
        %2875 = vmatpush.bf16.msra.mxu0 %v2862
        %2876 = vmatpush.bf16.msra.mxu0 %v2861
        %2877 = vmatpush.bf16.msra.mxu0 %v2860
        %2878 = vmatpush.bf16.msra.mxu0 %v2859
        %2879 = vmatmul.bf16.gmra.mxu0 %v2869
        %v2880 = vpop.f32.mrf.mxu0
        %v2881 = vadd.f32 0.0, %v2880
        %v2882 = vpop.f32.mrf.mxu0
        %v2883 = vadd.f32 0.0, %v2882
        %2884 = vdwg.mxu0
        %v2885 = vld [vmem:[%s792 + $0x15] sm:$0x1]
        %v2886 = vperm.slane %v2885, 0
        %v2887 = vadd.f32 %v2881, %v2886
        %v2888 = vadd.f32 %v2883, %v2886
        %v2889 = vadd.f32 %v2726, %v2887
        %v2890 = vadd.f32 %v2727, %v2888
        %2891 = vst.msk [vmem:[#allocation5] sm:$0xff] %vm822, %v2889
        %2892 = vst.msk [vmem:[#allocation5 + $0x8] sm:$0xff] %vm822, %v2890
        %p2893 = scmp.eq.s32.totalorder %s35, 1
        // Predicated region
        $region85: #{tpu_custom_call.1} parent=79 // pred_check
          %p2894 = pneg %p2893
        $region86: #{tpu_custom_call.1} parent=79 // pred_check_branch
          %2896 = sbr.rel (%p2894) target = $region88
        $region87: #{tpu_custom_call.1} parent=79 // pred_region
          %v2897 = vld [vmem:[#allocation2] sm:$0xff]
          %v2898 = vld [vmem:[#allocation2 + $0x8] sm:$0xff]
          %v2899 = vld [vmem:[%s5] sm:$0xff]
          %v2900 = vld [vmem:[%s5 + $0x8] sm:$0xff]
          %v2902 = vsel %vm1969, %v2897, 0
          %v2905 = vsel %vm1969, %v2898, 0
          %2907 = vmatpush.msra.mxu0 0.0
          %2908 = vmatpush.msra.mxu0 0.0
          %2909 = vmatpush.msra.mxu0 0.0
          %2910 = vmatpush.msra.mxu0 0.0
          %2911 = vmatpush.msra.mxu0 0.0
          %2912 = vmatpush.msra.mxu0 0.0
          %2913 = vmatpush.msra.mxu0 0.0
          %2914 = vmatpush.msra.mxu0 0.0
          %2915 = vmatpush.msra.mxu0 0.0
          %2916 = vmatpush.msra.mxu0 0.0
          %2917 = vmatpush.msra.mxu0 0.0
          %2918 = vmatpush.msra.mxu0 0.0
          %2919 = vmatpush.msra.mxu0 0.0
          %2920 = vmatpush.msra.mxu0 0.0
          %2921 = vmatpush.msra.mxu0 %v2900
          %2922 = vmatpush.msra.mxu0 %v2899
          %2923 = vmatmul.f32.gmra.mxu0 %v2902
          %v2924 = vpop.f32.mrf.mxu0
          %v2925 = vadd.f32 0.0, %v2924
          %2926 = vmatmul.f32.gmra.mxu0 %v2905
          %v2927 = vpop.f32.mrf.mxu0
          %v2928 = vadd.f32 0.0, %v2927
          %2929 = vdwg.mxu0
          %v2930 = vmul.f32 %v2925, 0.125
          %v2931 = vmul.f32 %v2928, 0.125
          %v2932 = vld [vmem:[#allocation3] sm:$0xff]
          %v2933 = vld [vmem:[#allocation3 + $0x8] sm:$0xff]
          %v2934 = vmul.f32 %v2932, 0.5
          %v2935 = vmul.f32 %v2933, 0.5
          %2936 = vset.pattern.permute.xlu0 0
          %2937 = vperm.xlu0 %2936, %v1837
          %v2938 = vpop.permute.xlu0 %2937
          %2939 = vset.pattern.permute.xlu0 0
          %2940 = vperm.xlu0 %2939, %v1838
          %v2941 = vpop.permute.xlu0 %2940
          %vm2942 = vcmp.eq.s32.totalorder %v1840, %v2938
          %vm2943 = vcmp.eq.s32.totalorder %v1840, %v2941
          %v2944 = vsel %vm2942, 1, 0
          %v2945 = vsel %vm2943, 1, 0
          %v2946 = vcvt.s32.f32 %v2944
          %v2947 = vcvt.s32.f32 %v2945
          %v2948 = vld [vmem:[%s751] sm:$0xff]
          %v2949 = vld [vmem:[%s751 + $0x8] sm:$0xff]
          %v2950 = vmul.f32 %v2948, %v2934
          %v2951 = vmul.f32 %v2949, %v2935
          %2953 = vset.pattern.permute.xlu0 0
          %2954 = vperm.xlu0 %2953, %v2950
          %v2955 = vpop.permute.xlu0 %2954
          %2958 = vset.pattern.permute.xlu0 0
          %2959 = vperm.xlu0 %2958, %v2951
          %v2960 = vpop.permute.xlu0 %2959
          %v2962 = vmul.f32 %v2946, %v2955
          %v2963 = vmul.f32 %v2947, %v2960
          %2964 = vxpose.xlu0.b32.start [1/16] %v2962, 128
          %2965 = vxpose.xlu0.b32.cont [2/16] 0.0, 128
          %2966 = vxpose.xlu0.b32.cont [3/16] 0.0, 128
          %2967 = vxpose.xlu0.b32.cont [4/16] 0.0, 128
          %2968 = vxpose.xlu0.b32.cont [5/16] 0.0, 128
          %2969 = vxpose.xlu0.b32.cont [6/16] 0.0, 128
          %2970 = vxpose.xlu0.b32.cont [7/16] 0.0, 128
          %2971 = vxpose.xlu0.b32.cont [8/16] 0.0, 128
          %2972 = vxpose.xlu0.b32.cont [9/16] 0.0, 128
          %2973 = vxpose.xlu0.b32.cont [10/16] 0.0, 128
          %2974 = vxpose.xlu0.b32.cont [11/16] 0.0, 128
          %2975 = vxpose.xlu0.b32.cont [12/16] 0.0, 128
          %2976 = vxpose.xlu0.b32.cont [13/16] 0.0, 128
          %2977 = vxpose.xlu0.b32.cont [14/16] 0.0, 128
          %2978 = vxpose.xlu0.b32.cont [15/16] 0.0, 128
          %2979 = vxpose.xlu0.b32.end [16/16] 0.0, 128
          %v2980 = vpop.trf.xlu0
          %v2981 = vpop.trf.xlu0
          %v2982 = vpop.trf.xlu0
          %v2983 = vpop.trf.xlu0
          %v2984 = vpop.trf.xlu0
          %v2985 = vpop.trf.xlu0
          %v2986 = vpop.trf.xlu0
          %v2987 = vpop.trf.xlu0
          %v2988 = vpop.trf.xlu0
          %v2989 = vpop.trf.xlu0
          %v2990 = vpop.trf.xlu0
          %v2991 = vpop.trf.xlu0
          %v2992 = vpop.trf.xlu0
          %v2993 = vpop.trf.xlu0
          %v2994 = vpop.trf.xlu0
          %v2995 = vpop.trf.xlu0
          %2996 = vxpose.xlu0.b32.start [1/16] %v2963, 128
          %2997 = vxpose.xlu0.b32.cont [2/16] 0.0, 128
          %2998 = vxpose.xlu0.b32.cont [3/16] 0.0, 128
          %2999 = vxpose.xlu0.b32.cont [4/16] 0.0, 128
          %3000 = vxpose.xlu0.b32.cont [5/16] 0.0, 128
          %3001 = vxpose.xlu0.b32.cont [6/16] 0.0, 128
          %3002 = vxpose.xlu0.b32.cont [7/16] 0.0, 128
          %3003 = vxpose.xlu0.b32.cont [8/16] 0.0, 128
          %3004 = vxpose.xlu0.b32.cont [9/16] 0.0, 128
          %3005 = vxpose.xlu0.b32.cont [10/16] 0.0, 128
          %3006 = vxpose.xlu0.b32.cont [11/16] 0.0, 128
          %3007 = vxpose.xlu0.b32.cont [12/16] 0.0, 128
          %3008 = vxpose.xlu0.b32.cont [13/16] 0.0, 128
          %3009 = vxpose.xlu0.b32.cont [14/16] 0.0, 128
          %3010 = vxpose.xlu0.b32.cont [15/16] 0.0, 128
          %3011 = vxpose.xlu0.b32.end [16/16] 0.0, 128
          %v3012 = vpop.trf.xlu0
          %v3013 = vpop.trf.xlu0
          %v3014 = vpop.trf.xlu0
          %v3015 = vpop.trf.xlu0
          %v3016 = vpop.trf.xlu0
          %v3017 = vpop.trf.xlu0
          %v3018 = vpop.trf.xlu0
          %v3019 = vpop.trf.xlu0
          %v3020 = vpop.trf.xlu0
          %v3021 = vpop.trf.xlu0
          %v3022 = vpop.trf.xlu0
          %v3023 = vpop.trf.xlu0
          %v3024 = vpop.trf.xlu0
          %v3025 = vpop.trf.xlu0
          %v3026 = vpop.trf.xlu0
          %v3027 = vpop.trf.xlu0
          %v3029 = vsel %vm955, %v2980, 0
          %3031 = vmatpush.msra.mxu0 0.0
          %3032 = vmatpush.msra.mxu0 0.0
          %3033 = vmatpush.msra.mxu0 0.0
          %3034 = vmatpush.msra.mxu0 0.0
          %3035 = vmatpush.msra.mxu0 0.0
          %3036 = vmatpush.msra.mxu0 0.0
          %3037 = vmatpush.msra.mxu0 0.0
          %3038 = vmatpush.msra.mxu0 0.0
          %3039 = vmatpush.msra.mxu0 0.0
          %3040 = vmatpush.msra.mxu0 0.0
          %3041 = vmatpush.msra.mxu0 0.0
          %3042 = vmatpush.msra.mxu0 0.0
          %3043 = vmatpush.msra.mxu0 0.0
          %3044 = vmatpush.msra.mxu0 0.0
          %3045 = vmatpush.msra.mxu0 0.0
          %3046 = vmatpush.msra.mxu0 %v2930
          %3047 = vmatmul.f32.gmra.mxu0 %v3029
          %v3048 = vpop.f32.mrf.mxu0
          %v3049 = vadd.f32 0.0, %v3048
          %3050 = vdwg.mxu0
          %v3052 = vsel %vm955, %v3012, 0
          %3054 = vmatpush.msra.mxu0 0.0
          %3055 = vmatpush.msra.mxu0 0.0
          %3056 = vmatpush.msra.mxu0 0.0
          %3057 = vmatpush.msra.mxu0 0.0
          %3058 = vmatpush.msra.mxu0 0.0
          %3059 = vmatpush.msra.mxu0 0.0
          %3060 = vmatpush.msra.mxu0 0.0
          %3061 = vmatpush.msra.mxu0 0.0
          %3062 = vmatpush.msra.mxu0 0.0
          %3063 = vmatpush.msra.mxu0 0.0
          %3064 = vmatpush.msra.mxu0 0.0
          %3065 = vmatpush.msra.mxu0 0.0
          %3066 = vmatpush.msra.mxu0 0.0
          %3067 = vmatpush.msra.mxu0 0.0
          %3068 = vmatpush.msra.mxu0 0.0
          %3069 = vmatpush.msra.mxu0 %v2931
          %3070 = vmatmul.f32.gmra.mxu0 %v3052
          %v3071 = vpop.f32.mrf.mxu0
          %v3072 = vadd.f32 0.0, %v3071
          %3073 = vdwg.mxu0
          %vm3074 = vcmask 58368
          %v3075 = vsel %vm3074, %v2980, 0.0
          %3076 = vadd.xlane.f32.xlu0 %v3075
          %v3077 = vpop.xlane.xlu0 %3076
          %v3078 = vsel %vm3074, %v3012, 0.0
          %3079 = vadd.xlane.f32.xlu0 %v3078
          %v3080 = vpop.xlane.xlu0 %3079
          %v3081 = vmax.f32 %v3077, 1e-09
          %v3082 = vmax.f32 %v3080, 1e-09
          %v3083 = vrcp.pop %v3081
          %v3084 = vrcp.pop %v3082
          %v3085 = vmul.f32 %v3049, %v3083
          %v3086 = vmul.f32 %v3072, %v3084
          %3087 = vst.msk [vmem:[#allocation7] sm:$0x3] %vm3074, %v3085
          %3088 = vst.msk [vmem:[#allocation7 + $0x2] sm:$0x3] %vm3074, %v3086
        $region88: #{tpu_custom_call.1} parent=79 // pred_fallthru
          _
        // Predicated region
        $region89: #{tpu_custom_call.1} parent=79 // pred_check
          %p3089 = pneg %p445
        $region90: #{tpu_custom_call.1} parent=79 // pred_check_branch
          %3091 = sbr.rel (%p3089) target = $region92
        $region91: #{tpu_custom_call.1} parent=79 // pred_region
          %s3092 = smul.u32 2, %s34
          %3094 = vsyncadd [#allocation6], 0
          %s3095 = smul.addr %s3092, 8
          %s3096 = scalar_lea.hbm %s15, %s3095
          %s3097 = sshll.u32 [#allocation5], 4
          %s3098 = int_to_ptr.vmem [resolvable:$true] %s3097
          %s3099 = sshll.u32 %s3096, 4
          %s3100 = int_to_ptr.hbm [resolvable:$true] %s3099
          %3105 = dma.vmem_to_hbm [thread:$0]  %s3098, 256, %s3100, [#allocation6], 128, 128, 8
        $region92: #{tpu_custom_call.1} parent=79 // pred_fallthru
          _
        // Predicated region
        $region93: #{tpu_custom_call.1} parent=79 // pred_check
          %p3106 = pneg %p471
        $region94: #{tpu_custom_call.1} parent=79 // pred_check_branch
          %3108 = sbr.rel (%p3106) target = $region96
        $region95: #{tpu_custom_call.1} parent=79 // pred_region
          %s3109 = smul.u32 2, %s34
          %3111 = vsyncadd [#allocation8], 0
          %s3112 = smul.addr %s3109, 2
          %s3113 = scalar_lea.hbm %s16, %s3112
          %s3114 = sshll.u32 [#allocation7], 4
          %s3115 = int_to_ptr.vmem [resolvable:$true] %s3114
          %s3116 = sshll.u32 %s3113, 4
          %s3117 = int_to_ptr.hbm [resolvable:$true] %s3116
          %3122 = dma.vmem_to_hbm [thread:$0]  %s3115, 64, %s3117, [#allocation8], 32, 32, 2
        $region96: #{tpu_custom_call.1} parent=79 // pred_fallthru
          _
        // Predicated region
        $region97: #{tpu_custom_call.1} parent=79 // pred_check
          %p3123 = pneg %p445
        $region98: #{tpu_custom_call.1} parent=79 // pred_check_branch
          %3125 = sbr.rel (%p3123) target = $region100
        $region99: #{tpu_custom_call.1} parent=79 // pred_region
          %3127 = dma.done [#allocation6], 256
        $region100: #{tpu_custom_call.1} parent=79 // pred_fallthru
          _
        // Predicated region
        $region101: #{tpu_custom_call.1} parent=79 // pred_check
          %p3128 = pneg %p471
        $region102: #{tpu_custom_call.1} parent=79 // pred_check_branch
          %3130 = sbr.rel (%p3128) target = $region104
        $region103: #{tpu_custom_call.1} parent=79 // pred_region
          %3132 = dma.done [#allocation8], 64
        $region104: #{tpu_custom_call.1} parent=79 // pred_fallthru
          _
      $region80: #{tpu_custom_call.1} parent=5 // pred_fallthru
        _
      %p3133 = scmp.le.s32.totalorder 2, %s25
      // Predicated region
      $region105: #{tpu_custom_call.1} parent=5 // pred_check
        %p3134 = pneg %p3133
      $region106: #{tpu_custom_call.1} parent=5 // pred_check_branch
        %3136 = sbr.rel (%p3134) target = $region108
      $region107: #{tpu_custom_call.1} parent=5 // pred_region
        %s3137 = ssub.s32 %s25, 2
      $region108: #{tpu_custom_call.1} parent=5 // pred_fallthru
        _
    $region6: #{tpu_custom_call.1} parent=1 // loop_footer
      %s29 = sadd.s32 1, %s25
    $region7: #{tpu_custom_call.1} parent=1 // loop_footer_branch
      %24 = sbr.rel target = $region3
    $region8: #{tpu_custom_call.1} parent=1 // loop_exit
      _
    %3138 = vsyncpa [#allocation6], 1
    %s3139 = scalar_lea.sflag [#allocation6], 1
    %3140 = vsyncpa %s3139, 1
    %3141 = vsyncpa [#allocation8], 1

</llo_original>
